<compile_context>
chip_gen: v5e
topology: v5e:2x2
jax: 0.10.0
libtpu: 0.0.40
codegen_flags: <defaults>
</compile_context>

<pallas_src>
import functools

import jax
import jax.numpy as jnp
import numpy as np
from jax.experimental import pallas as pl
from jax.experimental.pallas import tpu as pltpu


# Static network geometry (MNIST 28x28 input, implied by Linear(50*5*5, ...)).
C1, C2, F1 = 5, 50, 100          # conv1 / conv2 / fc1 output features
K = 5                            # conv kernel size
OH2 = 5                          # conv2 output spatial (28 -> 13 -> 5)
LANE = 128                       # lane width: every GEMM N dim padded to this
TB = 8                           # images per grid step (8-sublane aligned)
KCONV = 640                      # 25 taps * 25 patch values = 625 -> pad 640


def _pad_to(a, shape):
    return jnp.pad(a, [(0, t - s) for s, t in zip(a.shape, shape)])


# ----------------------------------------------------------------------------
# The single fused kernel: conv1 + conv2 + fc1 + fc2, all VMEM-resident.
# ----------------------------------------------------------------------------
def _small_net_kernel(p1_ref, w1_ref, b1_ref, w2_ref, b2_ref, w3_ref, b3_ref,
                      w4_ref, b4_ref, out_ref, fc_in_ref, *, tb):
    f32, bf16 = jnp.float32, jnp.bfloat16
    sp2 = OH2 * OH2                      # 25 conv2 output positions / image

    # ---- conv1 (+bias, ReLU): ONE GEMM --------------------------------------
    # Rows: p * tb + b (p-major, 8-aligned).  Block-diagonal w1 produces all
    # (tap, cin) conv1 activations at once: col = tap*5 + cin (125 used).
    h1 = jnp.dot(p1_ref[...], w1_ref[...], preferred_element_type=f32)
    h1 = jnp.maximum(h1 + b1_ref[...], 0.0).astype(bf16)          # (25*tb, 128)

    # ---- conv2 (+bias, ReLU): ONE GEMM over the folded (tap, cin) K axis ----
    h2 = jnp.dot(h1, w2_ref[...], preferred_element_type=f32)
    h2 = jnp.maximum(h2 + b2_ref[...], 0.0).astype(bf16)          # (25*tb, 128)

    # ---- repack to the lane-wide fc1 input (tb, 25*128) ---------------------
    # 25 static, 8-sublane-aligned, 128-lane-dense stores (full vregs, no
    # masked / strided sublane gathers).
    for p in range(sp2):
        fc_in_ref[:, p * LANE:(p + 1) * LANE] = h2[p * tb:(p + 1) * tb, :]

    # ---- fc1 (+bias, ReLU): single (tb, 3200) @ (3200, 128) GEMM ------------
    # The NCHW flatten permutation is folded into w3's row order (p*128 + cin).
    y1 = jnp.dot(fc_in_ref[...], w3_ref[...], preferred_element_type=f32)
    y1 = jnp.maximum(y1 + b3_ref[...], 0.0).astype(bf16)          # (tb, 128)

    # ---- fc2 (+bias) ---------------------------------------------------------
    out = jnp.dot(y1, w4_ref[...], preferred_element_type=f32) + b4_ref[...]
    out_ref[...] = out.astype(out_ref.dtype)


# ----------------------------------------------------------------------------
# Plain-JAX glue on the raw input only: conv2-ordered im2col (one-time).
# ----------------------------------------------------------------------------
def _conv2_driven_patches(x, tb):
    """(B,1,28,28) -> bf16 (ntiles*25*tb, 640).

    Row (tile i, conv2 position p=u*5+v, local image b) = i*25*tb + p*tb + b.
    Columns: tap-major — for tap t = kh*5+kw, cols [t*25, t*25+25) hold the 5x5
    conv1 input patch at conv1 output position (2u+kh, 2v+kw); 625 -> 640 pad.
    Padded images are all-zero rows and never mix with real rows (every row is
    an independent sample through the whole network).
    """
    batch = x.shape[0]
    ntiles = pl.cdiv(batch, tb)
    xp = jnp.pad(x[:, 0], ((0, 0), (1, 1), (1, 1)))                  # (B,30,30)
    idx = (4 * jnp.arange(OH2)[:, None, None]
           + 2 * jnp.arange(K)[None, :, None]
           + jnp.arange(K)[None, None, :])                           # (pos,k,i)
    pat = xp[:, idx[:, None, :, None, :, None], idx[None, :, None, :, None, :]]
    pat = pat.reshape(batch, OH2 * OH2, K ** 4)                      # (B,25,625)
    pat = jnp.pad(pat, ((0, ntiles * tb - batch), (0, 0), (0, KCONV - K ** 4)))
    pat = pat.reshape(ntiles, tb, OH2 * OH2, KCONV)
    pat = jnp.transpose(pat, (0, 2, 1, 3)).reshape(ntiles * OH2 * OH2 * tb, KCONV)
    return pat.astype(jnp.bfloat16)


def small_network_forward(params, x, *, out_dim):
    batch = x.shape[0]
    ntiles = pl.cdiv(batch, TB)
    p1 = _conv2_driven_patches(x, TB)

    rows = OH2 * OH2 * TB                       # 200 GEMM rows per grid step
    const2 = lambda i: (0, 0)
    out_padded = pl.pallas_call(
        functools.partial(_small_net_kernel, tb=TB),
        out_shape=jax.ShapeDtypeStruct((ntiles * TB, LANE), jnp.float32),
        grid=(ntiles,),
        in_specs=[
            pl.BlockSpec((rows, KCONV), lambda i: (i, 0)),   # conv1 patches
            pl.BlockSpec((KCONV, LANE), const2),             # w1 (block-diag)
            pl.BlockSpec((1, LANE), const2),                 # b1 (tiled per tap)
            pl.BlockSpec((LANE, LANE), const2),              # w2 (folded taps)
            pl.BlockSpec((1, LANE), const2),                 # b2
            pl.BlockSpec((OH2 * OH2 * LANE, LANE), const2),  # w3 (3200, 128)
            pl.BlockSpec((1, LANE), const2),                 # b3
            pl.BlockSpec((LANE, LANE), const2),              # w4
            pl.BlockSpec((1, LANE), const2),                 # b4
        ],
        out_specs=pl.BlockSpec((TB, LANE), lambda i: (i, 0)),
        scratch_shapes=[pltpu.VMEM((TB, OH2 * OH2 * LANE), jnp.bfloat16)],
        compiler_params=pltpu.CompilerParams(
            dimension_semantics=("parallel",)),
    )(p1, params["w1"], params["b1"], params["w2"], params["b2"],
      params["w3"], params["b3"], params["w4"], params["b4"])
    # Only the final (batch, out_dim) slice happens outside the kernel.
    return out_padded[:batch, :out_dim]


# ----------------------------------------------------------------------------
# Init: PyTorch-style parameters, plus a one-time repack into padded bf16.
# ----------------------------------------------------------------------------
def small_network_init(key, out_dim):
    """PyTorch-default-ish U(-1/sqrt(fan_in), +) parameters in PyTorch layout."""
    ks = jax.random.split(key, 8)

    def uniform(k, shape, fan_in):
        bound = 1.0 / (fan_in ** 0.5)
        return jax.random.uniform(k, shape, jnp.float32, -bound, bound)

    return {
        "conv1_w": uniform(ks[0], (C1, 1, K, K), 1 * K * K),
        "conv1_b": uniform(ks[1], (C1,), 1 * K * K),
        "conv2_w": uniform(ks[2], (C2, C1, K, K), C1 * K * K),
        "conv2_b": uniform(ks[3], (C2,), C1 * K * K),
        "fc1_w": uniform(ks[4], (F1, C2 * OH2 * OH2), C2 * OH2 * OH2),
        "fc1_b": uniform(ks[5], (F1,), C2 * OH2 * OH2),
        "fc2_w": uniform(ks[6], (out_dim, F1), F1),
        "fc2_b": uniform(ks[7], (out_dim,), F1),
    }


def pack_params(raw):
    """One-time repack into padded / transposed / bf16 MXU-friendly matrices."""
    bf16, f32 = jnp.bfloat16, jnp.float32
    out_dim = raw["fc2_w"].shape[0]
    assert out_dim <= LANE

    # conv1: block-diagonal over the 25 conv2 taps.
    # Row t*25 + q (q = conv1 tap i*5+j), col t*5 + c  ->  conv1_w[c,0,i,j].
    base = raw["conv1_w"].reshape(C1, K * K).T                      # (25, 5)
    w1 = jnp.kron(jnp.eye(K * K, dtype=f32), base)                  # (625, 125)
    w1 = _pad_to(w1, (KCONV, LANE)).astype(bf16)                    # (640, 128)
    b1 = _pad_to(jnp.tile(raw["conv1_b"], K * K)[None, :], (1, LANE)).astype(f32)

    # conv2: folded (tap, cin) contraction.  Row t*5 + c, col cout.
    w2 = jnp.transpose(raw["conv2_w"], (2, 3, 1, 0)).reshape(K * K * C1, C2)
    w2 = _pad_to(w2, (LANE, LANE)).astype(bf16)                     # (128, 128)
    b2 = _pad_to(raw["conv2_b"][None, :], (1, LANE)).astype(f32)

    # fc1: NCHW flatten folded into the row order p*128 + c.
    w3 = jnp.transpose(raw["fc1_w"].reshape(F1, C2, OH2 * OH2), (2, 1, 0))
    w3 = _pad_to(w3, (OH2 * OH2, LANE, LANE)).astype(bf16)
    w3 = w3.reshape(OH2 * OH2 * LANE, LANE)                         # (3200, 128)
    b3 = _pad_to(raw["fc1_b"][None, :], (1, LANE)).astype(f32)

    # fc2.
    w4 = _pad_to(raw["fc2_w"].T, (LANE, LANE)).astype(bf16)         # (128, 128)
    b4 = _pad_to(raw["fc2_b"][None, :], (1, LANE)).astype(f32)

    return {"w1": w1, "b1": b1, "w2": w2, "b2": b2,
            "w3": w3, "b3": b3, "w4": w4, "b4": b4}


# ----------------------------------------------------------------------------
# Pure-JAX f32 reference (matches the PyTorch module) for validation.
# ----------------------------------------------------------------------------
def _reference_forward(raw, x):
    hi = jax.lax.Precision.HIGHEST
    dn = ("NCHW", "OIHW", "NCHW")
    h = jax.lax.conv_general_dilated(x, raw["conv1_w"], (2, 2), [(1, 1), (1, 1)],
                                     dimension_numbers=dn, precision=hi)
    h = jnp.maximum(h + raw["conv1_b"][None, :, None, None], 0.0)
    h = jax.lax.conv_general_dilated(h, raw["conv2_w"], (2, 2), [(0, 0), (0, 0)],
                                     dimension_numbers=dn, precision=hi)
    h = jnp.maximum(h + raw["conv2_b"][None, :, None, None], 0.0)
    h = h.reshape(x.shape[0], -1)
    h = jnp.maximum(jnp.dot(h, raw["fc1_w"].T, precision=hi) + raw["fc1_b"], 0.0)
    return jnp.dot(h, raw["fc2_w"].T, precision=hi) + raw["fc2_b"]


if __name__ == "__main__":
    out_dim = 10
    key = jax.random.PRNGKey(0)
    k_param, k_x = jax.random.split(key)

    raw = small_network_init(k_param, out_dim)
    params = pack_params(raw)
    # MNIST-shaped input implied by the Linear(50*5*5, ...) layer.
    x = jax.random.normal(k_x, (2, 1, 28, 28), dtype=jnp.float32)

    fwd = jax.jit(functools.partial(small_network_forward, out_dim=out_dim))
    out = jax.block_until_ready(fwd(params, x))
    assert out.shape == (2, out_dim)
    assert out.dtype == jnp.float32
    assert bool(jnp.all(jnp.isfinite(out)))

    # bf16 weights/activations (f32 accumulation) vs. the f32 reference =>
    # relaxed tolerance, per the review's correctness note.
    ref = _reference_forward(raw, x)
    np.testing.assert_allclose(np.asarray(out), np.asarray(ref),
                               rtol=5e-2, atol=5e-2)
    print("KERNEL_OK")
</pallas_src>

<mosaic_0001>
module attributes {stable_mosaic.version = 11 : i64} {
  func.func @_small_net_kernel(%arg0: i32, %arg1: memref<200x640xbf16, #tpu.memory_space<vmem>>, %arg2: memref<640x128xbf16, #tpu.memory_space<vmem>>, %arg3: memref<1x128xf32, #tpu.memory_space<vmem>>, %arg4: memref<128x128xbf16, #tpu.memory_space<vmem>>, %arg5: memref<1x128xf32, #tpu.memory_space<vmem>>, %arg6: memref<3200x128xbf16, #tpu.memory_space<vmem>>, %arg7: memref<1x128xf32, #tpu.memory_space<vmem>>, %arg8: memref<128x128xbf16, #tpu.memory_space<vmem>>, %arg9: memref<1x128xf32, #tpu.memory_space<vmem>>, %arg10: memref<8x128xf32, #tpu.memory_space<vmem>>, %arg11: memref<8x3200xbf16, #tpu.memory_space<vmem>>) attributes {dimension_semantics = [#tpu.dimension_semantics<parallel>], iteration_bounds = array<i64: 1>, scalar_prefetch = 0 : i64, scratch_operands = 1 : i64, tpu.core_type = #tpu.core_type<tc>, window_params = [{transform_indices = @transform_0, window_bounds = array<i64: 200, 640>}, {pipeline_mode = #tpu.pipeline_mode<synchronous>, transform_indices = @transform_1, window_bounds = array<i64: 640, 128>}, {pipeline_mode = #tpu.pipeline_mode<synchronous>, transform_indices = @transform_2, window_bounds = array<i64: 1, 128>}, {pipeline_mode = #tpu.pipeline_mode<synchronous>, transform_indices = @transform_3, window_bounds = array<i64: 128, 128>}, {pipeline_mode = #tpu.pipeline_mode<synchronous>, transform_indices = @transform_4, window_bounds = array<i64: 1, 128>}, {pipeline_mode = #tpu.pipeline_mode<synchronous>, transform_indices = @transform_5, window_bounds = array<i64: 3200, 128>}, {pipeline_mode = #tpu.pipeline_mode<synchronous>, transform_indices = @transform_6, window_bounds = array<i64: 1, 128>}, {pipeline_mode = #tpu.pipeline_mode<synchronous>, transform_indices = @transform_7, window_bounds = array<i64: 128, 128>}, {pipeline_mode = #tpu.pipeline_mode<synchronous>, transform_indices = @transform_8, window_bounds = array<i64: 1, 128>}, {transform_indices = @transform_9, window_bounds = array<i64: 8, 128>}]} {
    %c0 = arith.constant 0 : index
    %c0_0 = arith.constant 0 : index
    %0 = vector.load %arg1[%c0, %c0_0] : memref<200x640xbf16, #tpu.memory_space<vmem>>, vector<200x640xbf16>
    %c0_1 = arith.constant 0 : index
    %c0_2 = arith.constant 0 : index
    %1 = vector.load %arg2[%c0_1, %c0_2] : memref<640x128xbf16, #tpu.memory_space<vmem>>, vector<640x128xbf16>
    %cst = arith.constant dense<0.000000e+00> : vector<200x128xf32>
    %2 = tpu.matmul %0, %1, %cst {dimension_numbers = #tpu.dot_dimension_numbers<[1], [0], [0], [1], [0, 0, 1, 1], [], []>} : vector<200x640xbf16>, vector<640x128xbf16>, vector<200x128xf32> -> vector<200x128xf32>
    %c0_3 = arith.constant 0 : index
    %c0_4 = arith.constant 0 : index
    %3 = vector.load %arg3[%c0_3, %c0_4] : memref<1x128xf32, #tpu.memory_space<vmem>>, vector<1x128xf32>
    %4 = vector.broadcast %3 : vector<1x128xf32> to vector<200x128xf32>
    %5 = arith.addf %2, %4 : vector<200x128xf32>
    %cst_5 = arith.constant 0.000000e+00 : f32
    %6 = vector.broadcast %cst_5 : f32 to vector<200x128xf32>
    %7 = arith.maximumf %5, %6 : vector<200x128xf32>
    %8 = arith.truncf %7 : vector<200x128xf32> to vector<200x128xbf16>
    %c0_6 = arith.constant 0 : index
    %c0_7 = arith.constant 0 : index
    %9 = vector.load %arg4[%c0_6, %c0_7] : memref<128x128xbf16, #tpu.memory_space<vmem>>, vector<128x128xbf16>
    %cst_8 = arith.constant dense<0.000000e+00> : vector<200x128xf32>
    %10 = tpu.matmul %8, %9, %cst_8 {dimension_numbers = #tpu.dot_dimension_numbers<[1], [0], [0], [1], [0, 0, 1, 1], [], []>} : vector<200x128xbf16>, vector<128x128xbf16>, vector<200x128xf32> -> vector<200x128xf32>
    %c0_9 = arith.constant 0 : index
    %c0_10 = arith.constant 0 : index
    %11 = vector.load %arg5[%c0_9, %c0_10] : memref<1x128xf32, #tpu.memory_space<vmem>>, vector<1x128xf32>
    %12 = vector.broadcast %11 : vector<1x128xf32> to vector<200x128xf32>
    %13 = arith.addf %10, %12 : vector<200x128xf32>
    %cst_11 = arith.constant 0.000000e+00 : f32
    %14 = vector.broadcast %cst_11 : f32 to vector<200x128xf32>
    %15 = arith.maximumf %13, %14 : vector<200x128xf32>
    %16 = arith.truncf %15 : vector<200x128xf32> to vector<200x128xbf16>
    %17 = vector.extract_strided_slice %16 {offsets = [0, 0], sizes = [8, 128], strides = [1, 1]} : vector<200x128xbf16> to vector<8x128xbf16>
    %c0_12 = arith.constant 0 : index
    %c0_13 = arith.constant 0 : index
    %18 = vector.load %arg11[%c0_12, %c0_13] : memref<8x3200xbf16, #tpu.memory_space<vmem>>, vector<8x128xbf16>
    tpu.vector_store %arg11[%c0_12, %c0_13], %17 {strides = array<i32>} : memref<8x3200xbf16, #tpu.memory_space<vmem>>, vector<8x128xbf16>,
    %19 = vector.extract_strided_slice %16 {offsets = [8, 0], sizes = [8, 128], strides = [1, 1]} : vector<200x128xbf16> to vector<8x128xbf16>
    %c0_14 = arith.constant 0 : index
    %c128 = arith.constant 128 : index
    %20 = vector.load %arg11[%c0_14, %c128] : memref<8x3200xbf16, #tpu.memory_space<vmem>>, vector<8x128xbf16>
    tpu.vector_store %arg11[%c0_14, %c128], %19 {strides = array<i32>} : memref<8x3200xbf16, #tpu.memory_space<vmem>>, vector<8x128xbf16>,
    %21 = vector.extract_strided_slice %16 {offsets = [16, 0], sizes = [8, 128], strides = [1, 1]} : vector<200x128xbf16> to vector<8x128xbf16>
    %c0_15 = arith.constant 0 : index
    %c256 = arith.constant 256 : index
    %22 = vector.load %arg11[%c0_15, %c256] : memref<8x3200xbf16, #tpu.memory_space<vmem>>, vector<8x128xbf16>
    tpu.vector_store %arg11[%c0_15, %c256], %21 {strides = array<i32>} : memref<8x3200xbf16, #tpu.memory_space<vmem>>, vector<8x128xbf16>,
    %23 = vector.extract_strided_slice %16 {offsets = [24, 0], sizes = [8, 128], strides = [1, 1]} : vector<200x128xbf16> to vector<8x128xbf16>
    %c0_16 = arith.constant 0 : index
    %c384 = arith.constant 384 : index
    %24 = vector.load %arg11[%c0_16, %c384] : memref<8x3200xbf16, #tpu.memory_space<vmem>>, vector<8x128xbf16>
    tpu.vector_store %arg11[%c0_16, %c384], %23 {strides = array<i32>} : memref<8x3200xbf16, #tpu.memory_space<vmem>>, vector<8x128xbf16>,
    %25 = vector.extract_strided_slice %16 {offsets = [32, 0], sizes = [8, 128], strides = [1, 1]} : vector<200x128xbf16> to vector<8x128xbf16>
    %c0_17 = arith.constant 0 : index
    %c512 = arith.constant 512 : index
    %26 = vector.load %arg11[%c0_17, %c512] : memref<8x3200xbf16, #tpu.memory_space<vmem>>, vector<8x128xbf16>
    tpu.vector_store %arg11[%c0_17, %c512], %25 {strides = array<i32>} : memref<8x3200xbf16, #tpu.memory_space<vmem>>, vector<8x128xbf16>,
    %27 = vector.extract_strided_slice %16 {offsets = [40, 0], sizes = [8, 128], strides = [1, 1]} : vector<200x128xbf16> to vector<8x128xbf16>
    %c0_18 = arith.constant 0 : index
    %c640 = arith.constant 640 : index
    %28 = vector.load %arg11[%c0_18, %c640] : memref<8x3200xbf16, #tpu.memory_space<vmem>>, vector<8x128xbf16>
    tpu.vector_store %arg11[%c0_18, %c640], %27 {strides = array<i32>} : memref<8x3200xbf16, #tpu.memory_space<vmem>>, vector<8x128xbf16>,
    %29 = vector.extract_strided_slice %16 {offsets = [48, 0], sizes = [8, 128], strides = [1, 1]} : vector<200x128xbf16> to vector<8x128xbf16>
    %c0_19 = arith.constant 0 : index
    %c768 = arith.constant 768 : index
    %30 = vector.load %arg11[%c0_19, %c768] : memref<8x3200xbf16, #tpu.memory_space<vmem>>, vector<8x128xbf16>
    tpu.vector_store %arg11[%c0_19, %c768], %29 {strides = array<i32>} : memref<8x3200xbf16, #tpu.memory_space<vmem>>, vector<8x128xbf16>,
    %31 = vector.extract_strided_slice %16 {offsets = [56, 0], sizes = [8, 128], strides = [1, 1]} : vector<200x128xbf16> to vector<8x128xbf16>
    %c0_20 = arith.constant 0 : index
    %c896 = arith.constant 896 : index
    %32 = vector.load %arg11[%c0_20, %c896] : memref<8x3200xbf16, #tpu.memory_space<vmem>>, vector<8x128xbf16>
    tpu.vector_store %arg11[%c0_20, %c896], %31 {strides = array<i32>} : memref<8x3200xbf16, #tpu.memory_space<vmem>>, vector<8x128xbf16>,
    %33 = vector.extract_strided_slice %16 {offsets = [64, 0], sizes = [8, 128], strides = [1, 1]} : vector<200x128xbf16> to vector<8x128xbf16>
    %c0_21 = arith.constant 0 : index
    %c1024 = arith.constant 1024 : index
    %34 = vector.load %arg11[%c0_21, %c1024] : memref<8x3200xbf16, #tpu.memory_space<vmem>>, vector<8x128xbf16>
    tpu.vector_store %arg11[%c0_21, %c1024], %33 {strides = array<i32>} : memref<8x3200xbf16, #tpu.memory_space<vmem>>, vector<8x128xbf16>,
    %35 = vector.extract_strided_slice %16 {offsets = [72, 0], sizes = [8, 128], strides = [1, 1]} : vector<200x128xbf16> to vector<8x128xbf16>
    %c0_22 = arith.constant 0 : index
    %c1152 = arith.constant 1152 : index
    %36 = vector.load %arg11[%c0_22, %c1152] : memref<8x3200xbf16, #tpu.memory_space<vmem>>, vector<8x128xbf16>
    tpu.vector_store %arg11[%c0_22, %c1152], %35 {strides = array<i32>} : memref<8x3200xbf16, #tpu.memory_space<vmem>>, vector<8x128xbf16>,
    %37 = vector.extract_strided_slice %16 {offsets = [80, 0], sizes = [8, 128], strides = [1, 1]} : vector<200x128xbf16> to vector<8x128xbf16>
    %c0_23 = arith.constant 0 : index
    %c1280 = arith.constant 1280 : index
    %38 = vector.load %arg11[%c0_23, %c1280] : memref<8x3200xbf16, #tpu.memory_space<vmem>>, vector<8x128xbf16>
    tpu.vector_store %arg11[%c0_23, %c1280], %37 {strides = array<i32>} : memref<8x3200xbf16, #tpu.memory_space<vmem>>, vector<8x128xbf16>,
    %39 = vector.extract_strided_slice %16 {offsets = [88, 0], sizes = [8, 128], strides = [1, 1]} : vector<200x128xbf16> to vector<8x128xbf16>
    %c0_24 = arith.constant 0 : index
    %c1408 = arith.constant 1408 : index
    %40 = vector.load %arg11[%c0_24, %c1408] : memref<8x3200xbf16, #tpu.memory_space<vmem>>, vector<8x128xbf16>
    tpu.vector_store %arg11[%c0_24, %c1408], %39 {strides = array<i32>} : memref<8x3200xbf16, #tpu.memory_space<vmem>>, vector<8x128xbf16>,
    %41 = vector.extract_strided_slice %16 {offsets = [96, 0], sizes = [8, 128], strides = [1, 1]} : vector<200x128xbf16> to vector<8x128xbf16>
    %c0_25 = arith.constant 0 : index
    %c1536 = arith.constant 1536 : index
    %42 = vector.load %arg11[%c0_25, %c1536] : memref<8x3200xbf16, #tpu.memory_space<vmem>>, vector<8x128xbf16>
    tpu.vector_store %arg11[%c0_25, %c1536], %41 {strides = array<i32>} : memref<8x3200xbf16, #tpu.memory_space<vmem>>, vector<8x128xbf16>,
    %43 = vector.extract_strided_slice %16 {offsets = [104, 0], sizes = [8, 128], strides = [1, 1]} : vector<200x128xbf16> to vector<8x128xbf16>
    %c0_26 = arith.constant 0 : index
    %c1664 = arith.constant 1664 : index
    %44 = vector.load %arg11[%c0_26, %c1664] : memref<8x3200xbf16, #tpu.memory_space<vmem>>, vector<8x128xbf16>
    tpu.vector_store %arg11[%c0_26, %c1664], %43 {strides = array<i32>} : memref<8x3200xbf16, #tpu.memory_space<vmem>>, vector<8x128xbf16>,
    %45 = vector.extract_strided_slice %16 {offsets = [112, 0], sizes = [8, 128], strides = [1, 1]} : vector<200x128xbf16> to vector<8x128xbf16>
    %c0_27 = arith.constant 0 : index
    %c1792 = arith.constant 1792 : index
    %46 = vector.load %arg11[%c0_27, %c1792] : memref<8x3200xbf16, #tpu.memory_space<vmem>>, vector<8x128xbf16>
    tpu.vector_store %arg11[%c0_27, %c1792], %45 {strides = array<i32>} : memref<8x3200xbf16, #tpu.memory_space<vmem>>, vector<8x128xbf16>,
    %47 = vector.extract_strided_slice %16 {offsets = [120, 0], sizes = [8, 128], strides = [1, 1]} : vector<200x128xbf16> to vector<8x128xbf16>
    %c0_28 = arith.constant 0 : index
    %c1920 = arith.constant 1920 : index
    %48 = vector.load %arg11[%c0_28, %c1920] : memref<8x3200xbf16, #tpu.memory_space<vmem>>, vector<8x128xbf16>
    tpu.vector_store %arg11[%c0_28, %c1920], %47 {strides = array<i32>} : memref<8x3200xbf16, #tpu.memory_space<vmem>>, vector<8x128xbf16>,
    %49 = vector.extract_strided_slice %16 {offsets = [128, 0], sizes = [8, 128], strides = [1, 1]} : vector<200x128xbf16> to vector<8x128xbf16>
    %c0_29 = arith.constant 0 : index
    %c2048 = arith.constant 2048 : index
    %50 = vector.load %arg11[%c0_29, %c2048] : memref<8x3200xbf16, #tpu.memory_space<vmem>>, vector<8x128xbf16>
    tpu.vector_store %arg11[%c0_29, %c2048], %49 {strides = array<i32>} : memref<8x3200xbf16, #tpu.memory_space<vmem>>, vector<8x128xbf16>,
    %51 = vector.extract_strided_slice %16 {offsets = [136, 0], sizes = [8, 128], strides = [1, 1]} : vector<200x128xbf16> to vector<8x128xbf16>
    %c0_30 = arith.constant 0 : index
    %c2176 = arith.constant 2176 : index
    %52 = vector.load %arg11[%c0_30, %c2176] : memref<8x3200xbf16, #tpu.memory_space<vmem>>, vector<8x128xbf16>
    tpu.vector_store %arg11[%c0_30, %c2176], %51 {strides = array<i32>} : memref<8x3200xbf16, #tpu.memory_space<vmem>>, vector<8x128xbf16>,
    %53 = vector.extract_strided_slice %16 {offsets = [144, 0], sizes = [8, 128], strides = [1, 1]} : vector<200x128xbf16> to vector<8x128xbf16>
    %c0_31 = arith.constant 0 : index
    %c2304 = arith.constant 2304 : index
    %54 = vector.load %arg11[%c0_31, %c2304] : memref<8x3200xbf16, #tpu.memory_space<vmem>>, vector<8x128xbf16>
    tpu.vector_store %arg11[%c0_31, %c2304], %53 {strides = array<i32>} : memref<8x3200xbf16, #tpu.memory_space<vmem>>, vector<8x128xbf16>,
    %55 = vector.extract_strided_slice %16 {offsets = [152, 0], sizes = [8, 128], strides = [1, 1]} : vector<200x128xbf16> to vector<8x128xbf16>
    %c0_32 = arith.constant 0 : index
    %c2432 = arith.constant 2432 : index
    %56 = vector.load %arg11[%c0_32, %c2432] : memref<8x3200xbf16, #tpu.memory_space<vmem>>, vector<8x128xbf16>
    tpu.vector_store %arg11[%c0_32, %c2432], %55 {strides = array<i32>} : memref<8x3200xbf16, #tpu.memory_space<vmem>>, vector<8x128xbf16>,
    %57 = vector.extract_strided_slice %16 {offsets = [160, 0], sizes = [8, 128], strides = [1, 1]} : vector<200x128xbf16> to vector<8x128xbf16>
    %c0_33 = arith.constant 0 : index
    %c2560 = arith.constant 2560 : index
    %58 = vector.load %arg11[%c0_33, %c2560] : memref<8x3200xbf16, #tpu.memory_space<vmem>>, vector<8x128xbf16>
    tpu.vector_store %arg11[%c0_33, %c2560], %57 {strides = array<i32>} : memref<8x3200xbf16, #tpu.memory_space<vmem>>, vector<8x128xbf16>,
    %59 = vector.extract_strided_slice %16 {offsets = [168, 0], sizes = [8, 128], strides = [1, 1]} : vector<200x128xbf16> to vector<8x128xbf16>
    %c0_34 = arith.constant 0 : index
    %c2688 = arith.constant 2688 : index
    %60 = vector.load %arg11[%c0_34, %c2688] : memref<8x3200xbf16, #tpu.memory_space<vmem>>, vector<8x128xbf16>
    tpu.vector_store %arg11[%c0_34, %c2688], %59 {strides = array<i32>} : memref<8x3200xbf16, #tpu.memory_space<vmem>>, vector<8x128xbf16>,
    %61 = vector.extract_strided_slice %16 {offsets = [176, 0], sizes = [8, 128], strides = [1, 1]} : vector<200x128xbf16> to vector<8x128xbf16>
    %c0_35 = arith.constant 0 : index
    %c2816 = arith.constant 2816 : index
    %62 = vector.load %arg11[%c0_35, %c2816] : memref<8x3200xbf16, #tpu.memory_space<vmem>>, vector<8x128xbf16>
    tpu.vector_store %arg11[%c0_35, %c2816], %61 {strides = array<i32>} : memref<8x3200xbf16, #tpu.memory_space<vmem>>, vector<8x128xbf16>,
    %63 = vector.extract_strided_slice %16 {offsets = [184, 0], sizes = [8, 128], strides = [1, 1]} : vector<200x128xbf16> to vector<8x128xbf16>
    %c0_36 = arith.constant 0 : index
    %c2944 = arith.constant 2944 : index
    %64 = vector.load %arg11[%c0_36, %c2944] : memref<8x3200xbf16, #tpu.memory_space<vmem>>, vector<8x128xbf16>
    tpu.vector_store %arg11[%c0_36, %c2944], %63 {strides = array<i32>} : memref<8x3200xbf16, #tpu.memory_space<vmem>>, vector<8x128xbf16>,
    %65 = vector.extract_strided_slice %16 {offsets = [192, 0], sizes = [8, 128], strides = [1, 1]} : vector<200x128xbf16> to vector<8x128xbf16>
    %c0_37 = arith.constant 0 : index
    %c3072 = arith.constant 3072 : index
    %66 = vector.load %arg11[%c0_37, %c3072] : memref<8x3200xbf16, #tpu.memory_space<vmem>>, vector<8x128xbf16>
    tpu.vector_store %arg11[%c0_37, %c3072], %65 {strides = array<i32>} : memref<8x3200xbf16, #tpu.memory_space<vmem>>, vector<8x128xbf16>,
    %c0_38 = arith.constant 0 : index
    %c0_39 = arith.constant 0 : index
    %67 = vector.load %arg11[%c0_38, %c0_39] : memref<8x3200xbf16, #tpu.memory_space<vmem>>, vector<8x3200xbf16>
    %c0_40 = arith.constant 0 : index
    %c0_41 = arith.constant 0 : index
    %68 = vector.load %arg6[%c0_40, %c0_41] : memref<3200x128xbf16, #tpu.memory_space<vmem>>, vector<3200x128xbf16>
    %cst_42 = arith.constant dense<0.000000e+00> : vector<8x128xf32>
    %69 = tpu.matmul %67, %68, %cst_42 {dimension_numbers = #tpu.dot_dimension_numbers<[1], [0], [0], [1], [0, 0, 1, 1], [], []>} : vector<8x3200xbf16>, vector<3200x128xbf16>, vector<8x128xf32> -> vector<8x128xf32>
    %c0_43 = arith.constant 0 : index
    %c0_44 = arith.constant 0 : index
    %70 = vector.load %arg7[%c0_43, %c0_44] : memref<1x128xf32, #tpu.memory_space<vmem>>, vector<1x128xf32>
    %71 = vector.broadcast %70 : vector<1x128xf32> to vector<8x128xf32>
    %72 = arith.addf %69, %71 : vector<8x128xf32>
    %cst_45 = arith.constant 0.000000e+00 : f32
    %73 = vector.broadcast %cst_45 : f32 to vector<8x128xf32>
    %74 = arith.maximumf %72, %73 : vector<8x128xf32>
    %75 = arith.truncf %74 : vector<8x128xf32> to vector<8x128xbf16>
    %c0_46 = arith.constant 0 : index
    %c0_47 = arith.constant 0 : index
    %76 = vector.load %arg8[%c0_46, %c0_47] : memref<128x128xbf16, #tpu.memory_space<vmem>>, vector<128x128xbf16>
    %cst_48 = arith.constant dense<0.000000e+00> : vector<8x128xf32>
    %77 = tpu.matmul %75, %76, %cst_48 {dimension_numbers = #tpu.dot_dimension_numbers<[1], [0], [0], [1], [0, 0, 1, 1], [], []>} : vector<8x128xbf16>, vector<128x128xbf16>, vector<8x128xf32> -> vector<8x128xf32>
    %c0_49 = arith.constant 0 : index
    %c0_50 = arith.constant 0 : index
    %78 = vector.load %arg9[%c0_49, %c0_50] : memref<1x128xf32, #tpu.memory_space<vmem>>, vector<1x128xf32>
    %79 = vector.broadcast %78 : vector<1x128xf32> to vector<8x128xf32>
    %80 = arith.addf %77, %79 : vector<8x128xf32>
    %c0_51 = arith.constant 0 : index
    %c0_52 = arith.constant 0 : index
    %81 = vector.load %arg10[%c0_51, %c0_52] : memref<8x128xf32, #tpu.memory_space<vmem>>, vector<8x128xf32>
    tpu.vector_store %arg10[%c0_51, %c0_52], %80 {strides = array<i32>} : memref<8x128xf32, #tpu.memory_space<vmem>>, vector<8x128xf32>,
    return
  }
  func.func @transform_0(%arg0: i32) -> (i32, i32) {
    %c0_i32 = arith.constant 0 : i32
    %c0_i32_0 = arith.constant 0 : i32
    return %arg0, %c0_i32 : i32, i32
  }
  func.func @transform_1(%arg0: i32) -> (i32, i32) {
    %c0_i32 = arith.constant 0 : i32
    %c0_i32_0 = arith.constant 0 : i32
    %c0_i32_1 = arith.constant 0 : i32
    return %c0_i32, %c0_i32_0 : i32, i32
  }
  func.func @transform_2(%arg0: i32) -> (i32, i32) {
    %c0_i32 = arith.constant 0 : i32
    %c0_i32_0 = arith.constant 0 : i32
    %c0_i32_1 = arith.constant 0 : i32
    return %c0_i32, %c0_i32_0 : i32, i32
  }
  func.func @transform_3(%arg0: i32) -> (i32, i32) {
    %c0_i32 = arith.constant 0 : i32
    %c0_i32_0 = arith.constant 0 : i32
    %c0_i32_1 = arith.constant 0 : i32
    return %c0_i32, %c0_i32_0 : i32, i32
  }
  func.func @transform_4(%arg0: i32) -> (i32, i32) {
    %c0_i32 = arith.constant 0 : i32
    %c0_i32_0 = arith.constant 0 : i32
    %c0_i32_1 = arith.constant 0 : i32
    return %c0_i32, %c0_i32_0 : i32, i32
  }
  func.func @transform_5(%arg0: i32) -> (i32, i32) {
    %c0_i32 = arith.constant 0 : i32
    %c0_i32_0 = arith.constant 0 : i32
    %c0_i32_1 = arith.constant 0 : i32
    return %c0_i32, %c0_i32_0 : i32, i32
  }
  func.func @transform_6(%arg0: i32) -> (i32, i32) {
    %c0_i32 = arith.constant 0 : i32
    %c0_i32_0 = arith.constant 0 : i32
    %c0_i32_1 = arith.constant 0 : i32
    return %c0_i32, %c0_i32_0 : i32, i32
  }
  func.func @transform_7(%arg0: i32) -> (i32, i32) {
    %c0_i32 = arith.constant 0 : i32
    %c0_i32_0 = arith.constant 0 : i32
    %c0_i32_1 = arith.constant 0 : i32
    return %c0_i32, %c0_i32_0 : i32, i32
  }
  func.func @transform_8(%arg0: i32) -> (i32, i32) {
    %c0_i32 = arith.constant 0 : i32
    %c0_i32_0 = arith.constant 0 : i32
    %c0_i32_1 = arith.constant 0 : i32
    return %c0_i32, %c0_i32_0 : i32, i32
  }
  func.func @transform_9(%arg0: i32) -> (i32, i32) {
    %c0_i32 = arith.constant 0 : i32
    %c0_i32_0 = arith.constant 0 : i32
    return %arg0, %c0_i32 : i32, i32
  }
}

</mosaic_0001>

<llo_original>
// kernel: small_network_forward.1
$region0: #{small_network_forward.1}
  #allocation0 [shape = 'u32[]', space=smem, size = 0x4, offset = 0x4, fixed_abs, tag = 'smem constant byte address 0x4 - core index']
  #allocation1 [shape = 'u32[72,128]{1,0:T(1,128)}', space=vmem, size = 0x9000, scoped, tag = 'internal scratch']
  #allocation2 [shape = 'bf16[8,3200]{1,0:T(8,128)(2,1)}', space=vmem, size = 0xc800, scoped, tag = 'scratch operand']
  %s0 = inlined_call_operand.vmem [shape: bf16[200,640], index: 0, kind: input, shape index: {}]
  %s1 = inlined_call_operand.vmem [shape: bf16[640,128], index: 1, kind: input, shape index: {}]
  %s2 = inlined_call_operand.vmem [shape: f32[1,128], index: 2, kind: input, shape index: {}]
  %s3 = inlined_call_operand.vmem [shape: bf16[128,128], index: 3, kind: input, shape index: {}]
  %s4 = inlined_call_operand.vmem [shape: f32[1,128], index: 4, kind: input, shape index: {}]
  %s5 = inlined_call_operand.vmem [shape: bf16[3200,128], index: 5, kind: input, shape index: {}]
  %s6 = inlined_call_operand.vmem [shape: f32[1,128], index: 6, kind: input, shape index: {}]
  %s7 = inlined_call_operand.vmem [shape: bf16[128,128], index: 7, kind: input, shape index: {}]
  %s8 = inlined_call_operand.vmem [shape: f32[1,128], index: 8, kind: input, shape index: {}]
  %s9 = inlined_call_operand.vmem [shape: f32[8,128], index: 9, kind: output, shape index: {}]
  %s10 = sld [smem:[#allocation0]]
  $region46: #{small_network_forward.1} parent=0
    _
  %s12 = ssub.s32 1, %s10
  %s13 = scalar_select 0, %s12, %s10
  // Predicated region
  $region2: #{small_network_forward.1} parent=0 // pred_check
    _
  $region3: #{small_network_forward.1} parent=0 // pred_check_branch
    %15 = sbr.rel (0) target = $region5
  $region4: #{small_network_forward.1} parent=0 // pred_region
    _
  $region5: #{small_network_forward.1} parent=0 // pred_fallthru
    _
  // Predicated region
  $region6: #{small_network_forward.1} parent=0 // pred_check
    _
  $region7: #{small_network_forward.1} parent=0 // pred_check_branch
    %17 = sbr.rel (0) target = $region9
  $region8: #{small_network_forward.1} parent=0 // pred_region
    _
  $region9: #{small_network_forward.1} parent=0 // pred_fallthru
    _
  // Predicated region
  $region10: #{small_network_forward.1} parent=0 // pred_check
    _
  $region11: #{small_network_forward.1} parent=0 // pred_check_branch
    %19 = sbr.rel (0) target = $region13
  $region12: #{small_network_forward.1} parent=0 // pred_region
    _
  $region13: #{small_network_forward.1} parent=0 // pred_fallthru
    _
  // Predicated region
  $region14: #{small_network_forward.1} parent=0 // pred_check
    _
  $region15: #{small_network_forward.1} parent=0 // pred_check_branch
    %21 = sbr.rel (0) target = $region17
  $region16: #{small_network_forward.1} parent=0 // pred_region
    _
  $region17: #{small_network_forward.1} parent=0 // pred_fallthru
    _
  // Predicated region
  $region18: #{small_network_forward.1} parent=0 // pred_check
    _
  $region19: #{small_network_forward.1} parent=0 // pred_check_branch
    %23 = sbr.rel (0) target = $region21
  $region20: #{small_network_forward.1} parent=0 // pred_region
    _
  $region21: #{small_network_forward.1} parent=0 // pred_fallthru
    _
  // Predicated region
  $region22: #{small_network_forward.1} parent=0 // pred_check
    _
  $region23: #{small_network_forward.1} parent=0 // pred_check_branch
    %25 = sbr.rel (0) target = $region25
  $region24: #{small_network_forward.1} parent=0 // pred_region
    _
  $region25: #{small_network_forward.1} parent=0 // pred_fallthru
    _
  // Predicated region
  $region26: #{small_network_forward.1} parent=0 // pred_check
    _
  $region27: #{small_network_forward.1} parent=0 // pred_check_branch
    %27 = sbr.rel (0) target = $region29
  $region28: #{small_network_forward.1} parent=0 // pred_region
    _
  $region29: #{small_network_forward.1} parent=0 // pred_fallthru
    _
  // Predicated region
  $region30: #{small_network_forward.1} parent=0 // pred_check
    _
  $region31: #{small_network_forward.1} parent=0 // pred_check_branch
    %29 = sbr.rel (0) target = $region33
  $region32: #{small_network_forward.1} parent=0 // pred_region
    _
  $region33: #{small_network_forward.1} parent=0 // pred_fallthru
    _
  // Predicated region
  $region34: #{small_network_forward.1} parent=0 // pred_check
    _
  $region35: #{small_network_forward.1} parent=0 // pred_check_branch
    %31 = sbr.rel (0) target = $region37
  $region36: #{small_network_forward.1} parent=0 // pred_region
    _
  $region37: #{small_network_forward.1} parent=0 // pred_fallthru
    _
  %v32 = vld [vmem:[%s0] sm:$0xff]
  %v33 = vld [vmem:[%s0 + $0x8] sm:$0xff]
  %v34 = vld [vmem:[%s0 + $0x10] sm:$0xf]
  %v35 = vld [vmem:[%s0 + $0x14] sm:$0xff]
  %v36 = vld [vmem:[%s0 + $0x1c] sm:$0xff]
  %v37 = vld [vmem:[%s0 + $0x24] sm:$0xf]
  %v38 = vld [vmem:[%s0 + $0x28] sm:$0xff]
  %v39 = vld [vmem:[%s0 + $0x30] sm:$0xff]
  %v40 = vld [vmem:[%s0 + $0x38] sm:$0xf]
  %v41 = vld [vmem:[%s0 + $0x3c] sm:$0xff]
  %v42 = vld [vmem:[%s0 + $0x44] sm:$0xff]
  %v43 = vld [vmem:[%s0 + $0x4c] sm:$0xf]
  %v44 = vld [vmem:[%s0 + $0x50] sm:$0xff]
  %v45 = vld [vmem:[%s0 + $0x58] sm:$0xff]
  %v46 = vld [vmem:[%s0 + $0x60] sm:$0xf]
  %v47 = vld [vmem:[%s0 + $0x64] sm:$0xff]
  %v48 = vld [vmem:[%s0 + $0x6c] sm:$0xff]
  %v49 = vld [vmem:[%s0 + $0x74] sm:$0xf]
  %v50 = vld [vmem:[%s0 + $0x78] sm:$0xff]
  %v51 = vld [vmem:[%s0 + $0x80] sm:$0xff]
  %v52 = vld [vmem:[%s0 + $0x88] sm:$0xf]
  %v53 = vld [vmem:[%s0 + $0x8c] sm:$0xff]
  %v54 = vld [vmem:[%s0 + $0x94] sm:$0xff]
  %v55 = vld [vmem:[%s0 + $0x9c] sm:$0xf]
  %v56 = vld [vmem:[%s0 + $0xa0] sm:$0xff]
  %v57 = vld [vmem:[%s0 + $0xa8] sm:$0xff]
  %v58 = vld [vmem:[%s0 + $0xb0] sm:$0xf]
  %v59 = vld [vmem:[%s0 + $0xb4] sm:$0xff]
  %v60 = vld [vmem:[%s0 + $0xbc] sm:$0xff]
  %v61 = vld [vmem:[%s0 + $0xc4] sm:$0xf]
  %v62 = vld [vmem:[%s0 + $0xc8] sm:$0xff]
  %v63 = vld [vmem:[%s0 + $0xd0] sm:$0xff]
  %v64 = vld [vmem:[%s0 + $0xd8] sm:$0xf]
  %v65 = vld [vmem:[%s0 + $0xdc] sm:$0xff]
  %v66 = vld [vmem:[%s0 + $0xe4] sm:$0xff]
  %v67 = vld [vmem:[%s0 + $0xec] sm:$0xf]
  %v68 = vld [vmem:[%s0 + $0xf0] sm:$0xff]
  %v69 = vld [vmem:[%s0 + $0xf8] sm:$0xff]
  %v70 = vld [vmem:[%s0 + $0x100] sm:$0xf]
  %v71 = vld [vmem:[%s0 + $0x104] sm:$0xff]
  %v72 = vld [vmem:[%s0 + $0x10c] sm:$0xff]
  %v73 = vld [vmem:[%s0 + $0x114] sm:$0xf]
  %v74 = vld [vmem:[%s0 + $0x118] sm:$0xff]
  %v75 = vld [vmem:[%s0 + $0x120] sm:$0xff]
  %v76 = vld [vmem:[%s0 + $0x128] sm:$0xf]
  %v77 = vld [vmem:[%s0 + $0x12c] sm:$0xff]
  %v78 = vld [vmem:[%s0 + $0x134] sm:$0xff]
  %v79 = vld [vmem:[%s0 + $0x13c] sm:$0xf]
  %v80 = vld [vmem:[%s0 + $0x140] sm:$0xff]
  %v81 = vld [vmem:[%s0 + $0x148] sm:$0xff]
  %v82 = vld [vmem:[%s0 + $0x150] sm:$0xf]
  %v83 = vld [vmem:[%s0 + $0x154] sm:$0xff]
  %v84 = vld [vmem:[%s0 + $0x15c] sm:$0xff]
  %v85 = vld [vmem:[%s0 + $0x164] sm:$0xf]
  %v86 = vld [vmem:[%s0 + $0x168] sm:$0xff]
  %v87 = vld [vmem:[%s0 + $0x170] sm:$0xff]
  %v88 = vld [vmem:[%s0 + $0x178] sm:$0xf]
  %v89 = vld [vmem:[%s0 + $0x17c] sm:$0xff]
  %v90 = vld [vmem:[%s0 + $0x184] sm:$0xff]
  %v91 = vld [vmem:[%s0 + $0x18c] sm:$0xf]
  %v92 = vld [vmem:[%s0 + $0x190] sm:$0xff]
  %v93 = vld [vmem:[%s0 + $0x198] sm:$0xff]
  %v94 = vld [vmem:[%s0 + $0x1a0] sm:$0xf]
  %v95 = vld [vmem:[%s0 + $0x1a4] sm:$0xff]
  %v96 = vld [vmem:[%s0 + $0x1ac] sm:$0xff]
  %v97 = vld [vmem:[%s0 + $0x1b4] sm:$0xf]
  %v98 = vld [vmem:[%s0 + $0x1b8] sm:$0xff]
  %v99 = vld [vmem:[%s0 + $0x1c0] sm:$0xff]
  %v100 = vld [vmem:[%s0 + $0x1c8] sm:$0xf]
  %v101 = vld [vmem:[%s0 + $0x1cc] sm:$0xff]
  %v102 = vld [vmem:[%s0 + $0x1d4] sm:$0xff]
  %v103 = vld [vmem:[%s0 + $0x1dc] sm:$0xf]
  %v104 = vld [vmem:[%s0 + $0x1e0] sm:$0xff]
  %v105 = vld [vmem:[%s0 + $0x1e8] sm:$0xff]
  %v106 = vld [vmem:[%s0 + $0x1f0] sm:$0xf]
  %v107 = vld [vmem:[%s1] sm:$0xf]
  %v108 = vld [vmem:[%s1 + $0x4] sm:$0xf]
  %v109 = vld [vmem:[%s1 + $0x8] sm:$0xf]
  %v110 = vld [vmem:[%s1 + $0xc] sm:$0xf]
  %v111 = vld [vmem:[%s1 + $0x10] sm:$0xf]
  %v112 = vld [vmem:[%s1 + $0x14] sm:$0xf]
  %v113 = vld [vmem:[%s1 + $0x18] sm:$0xf]
  %v114 = vld [vmem:[%s1 + $0x1c] sm:$0xf]
  %v115 = vld [vmem:[%s1 + $0x20] sm:$0xf]
  %v116 = vld [vmem:[%s1 + $0x24] sm:$0xf]
  %v117 = vld [vmem:[%s1 + $0x28] sm:$0xf]
  %v118 = vld [vmem:[%s1 + $0x2c] sm:$0xf]
  %v119 = vld [vmem:[%s1 + $0x30] sm:$0xf]
  %v120 = vld [vmem:[%s1 + $0x34] sm:$0xf]
  %v121 = vld [vmem:[%s1 + $0x38] sm:$0xf]
  %v122 = vld [vmem:[%s1 + $0x3c] sm:$0xf]
  %v123 = vld [vmem:[%s1 + $0x40] sm:$0xf]
  %v124 = vld [vmem:[%s1 + $0x44] sm:$0xf]
  %v125 = vld [vmem:[%s1 + $0x48] sm:$0xf]
  %v126 = vld [vmem:[%s1 + $0x4c] sm:$0xf]
  %v127 = vld [vmem:[%s1 + $0x50] sm:$0xf]
  %v128 = vld [vmem:[%s1 + $0x54] sm:$0xf]
  %v129 = vld [vmem:[%s1 + $0x58] sm:$0xf]
  %v130 = vld [vmem:[%s1 + $0x5c] sm:$0xf]
  %v131 = vld [vmem:[%s1 + $0x60] sm:$0xf]
  %v132 = vld [vmem:[%s1 + $0x64] sm:$0xf]
  %v133 = vld [vmem:[%s1 + $0x68] sm:$0xf]
  %v134 = vld [vmem:[%s1 + $0x6c] sm:$0xf]
  %v135 = vld [vmem:[%s1 + $0x70] sm:$0xf]
  %v136 = vld [vmem:[%s1 + $0x74] sm:$0xf]
  %v137 = vld [vmem:[%s1 + $0x78] sm:$0xf]
  %v138 = vld [vmem:[%s1 + $0x7c] sm:$0xf]
  %v139 = vld [vmem:[%s1 + $0x80] sm:$0xf]
  %v140 = vld [vmem:[%s1 + $0x84] sm:$0xf]
  %v141 = vld [vmem:[%s1 + $0x88] sm:$0xf]
  %v142 = vld [vmem:[%s1 + $0x8c] sm:$0xf]
  %v143 = vld [vmem:[%s1 + $0x90] sm:$0xf]
  %v144 = vld [vmem:[%s1 + $0x94] sm:$0xf]
  %v145 = vld [vmem:[%s1 + $0x98] sm:$0xf]
  %v146 = vld [vmem:[%s1 + $0x9c] sm:$0xf]
  %v147 = vld [vmem:[%s1 + $0xa0] sm:$0xf]
  %v148 = vld [vmem:[%s1 + $0xa4] sm:$0xf]
  %v149 = vld [vmem:[%s1 + $0xa8] sm:$0xf]
  %v150 = vld [vmem:[%s1 + $0xac] sm:$0xf]
  %v151 = vld [vmem:[%s1 + $0xb0] sm:$0xf]
  %v152 = vld [vmem:[%s1 + $0xb4] sm:$0xf]
  %v153 = vld [vmem:[%s1 + $0xb8] sm:$0xf]
  %v154 = vld [vmem:[%s1 + $0xbc] sm:$0xf]
  %v155 = vld [vmem:[%s1 + $0xc0] sm:$0xf]
  %v156 = vld [vmem:[%s1 + $0xc4] sm:$0xf]
  %v157 = vld [vmem:[%s1 + $0xc8] sm:$0xf]
  %v158 = vld [vmem:[%s1 + $0xcc] sm:$0xf]
  %v159 = vld [vmem:[%s1 + $0xd0] sm:$0xf]
  %v160 = vld [vmem:[%s1 + $0xd4] sm:$0xf]
  %v161 = vld [vmem:[%s1 + $0xd8] sm:$0xf]
  %v162 = vld [vmem:[%s1 + $0xdc] sm:$0xf]
  %v163 = vld [vmem:[%s1 + $0xe0] sm:$0xf]
  %v164 = vld [vmem:[%s1 + $0xe4] sm:$0xf]
  %v165 = vld [vmem:[%s1 + $0xe8] sm:$0xf]
  %v166 = vld [vmem:[%s1 + $0xec] sm:$0xf]
  %v167 = vld [vmem:[%s1 + $0xf0] sm:$0xf]
  %v168 = vld [vmem:[%s1 + $0xf4] sm:$0xf]
  %v169 = vld [vmem:[%s1 + $0xf8] sm:$0xf]
  %v170 = vld [vmem:[%s1 + $0xfc] sm:$0xf]
  %v171 = vld [vmem:[%s1 + $0x100] sm:$0xf]
  %v172 = vld [vmem:[%s1 + $0x104] sm:$0xf]
  %v173 = vld [vmem:[%s1 + $0x108] sm:$0xf]
  %v174 = vld [vmem:[%s1 + $0x10c] sm:$0xf]
  %v175 = vld [vmem:[%s1 + $0x110] sm:$0xf]
  %v176 = vld [vmem:[%s1 + $0x114] sm:$0xf]
  %v177 = vld [vmem:[%s1 + $0x118] sm:$0xf]
  %v178 = vld [vmem:[%s1 + $0x11c] sm:$0xf]
  %v179 = vld [vmem:[%s1 + $0x120] sm:$0xf]
  %v180 = vld [vmem:[%s1 + $0x124] sm:$0xf]
  %v181 = vld [vmem:[%s1 + $0x128] sm:$0xf]
  %v182 = vld [vmem:[%s1 + $0x12c] sm:$0xf]
  %v183 = vld [vmem:[%s1 + $0x130] sm:$0xf]
  %v184 = vld [vmem:[%s1 + $0x134] sm:$0xf]
  %v185 = vld [vmem:[%s1 + $0x138] sm:$0xf]
  %v186 = vld [vmem:[%s1 + $0x13c] sm:$0xf]
  %v187 = vld [vmem:[%s2] sm:$0x1]
  %v189 = vperm.slane %v187, 0
  %v266 = vunpack.c.l.b16 %v32
  %v267 = vunpack.c.h.b16 %v32
  %v268 = vunpack.c.l.b16 %v33
  %v269 = vunpack.c.h.b16 %v33
  %v270 = vunpack.c.l.b16 %v34
  %v271 = vunpack.c.l.b16 %v35
  %v272 = vunpack.c.h.b16 %v35
  %v273 = vunpack.c.l.b16 %v36
  %v274 = vunpack.c.h.b16 %v36
  %v275 = vunpack.c.l.b16 %v37
  %v276 = vunpack.c.l.b16 %v38
  %v277 = vunpack.c.h.b16 %v38
  %v278 = vunpack.c.l.b16 %v39
  %v279 = vunpack.c.h.b16 %v39
  %v280 = vunpack.c.l.b16 %v40
  %v281 = vunpack.c.l.b16 %v41
  %v282 = vunpack.c.h.b16 %v41
  %v283 = vunpack.c.l.b16 %v42
  %v284 = vunpack.c.h.b16 %v42
  %v285 = vunpack.c.l.b16 %v43
  %v286 = vunpack.c.l.b16 %v44
  %v287 = vunpack.c.h.b16 %v44
  %v288 = vunpack.c.l.b16 %v45
  %v289 = vunpack.c.h.b16 %v45
  %v290 = vunpack.c.l.b16 %v46
  %v291 = vunpack.c.l.b16 %v47
  %v292 = vunpack.c.h.b16 %v47
  %v293 = vunpack.c.l.b16 %v48
  %v294 = vunpack.c.h.b16 %v48
  %v295 = vunpack.c.l.b16 %v49
  %v296 = vunpack.c.l.b16 %v50
  %v297 = vunpack.c.h.b16 %v50
  %v298 = vunpack.c.l.b16 %v51
  %v299 = vunpack.c.h.b16 %v51
  %v300 = vunpack.c.l.b16 %v52
  %v301 = vunpack.c.l.b16 %v53
  %v302 = vunpack.c.h.b16 %v53
  %v303 = vunpack.c.l.b16 %v54
  %v304 = vunpack.c.h.b16 %v54
  %v305 = vunpack.c.l.b16 %v55
  %v306 = vunpack.c.l.b16 %v56
  %v307 = vunpack.c.h.b16 %v56
  %v308 = vunpack.c.l.b16 %v57
  %v309 = vunpack.c.h.b16 %v57
  %v310 = vunpack.c.l.b16 %v58
  %v311 = vunpack.c.l.b16 %v59
  %v312 = vunpack.c.h.b16 %v59
  %v313 = vunpack.c.l.b16 %v60
  %v314 = vunpack.c.h.b16 %v60
  %v315 = vunpack.c.l.b16 %v61
  %v316 = vunpack.c.l.b16 %v62
  %v317 = vunpack.c.h.b16 %v62
  %v318 = vunpack.c.l.b16 %v63
  %v319 = vunpack.c.h.b16 %v63
  %v320 = vunpack.c.l.b16 %v64
  %v321 = vunpack.c.l.b16 %v65
  %v322 = vunpack.c.h.b16 %v65
  %v323 = vunpack.c.l.b16 %v66
  %v324 = vunpack.c.h.b16 %v66
  %v325 = vunpack.c.l.b16 %v67
  %v326 = vunpack.c.l.b16 %v68
  %v327 = vunpack.c.h.b16 %v68
  %v328 = vunpack.c.l.b16 %v69
  %v329 = vunpack.c.h.b16 %v69
  %v330 = vunpack.c.l.b16 %v70
  %v331 = vunpack.c.l.b16 %v71
  %v332 = vunpack.c.h.b16 %v71
  %v333 = vunpack.c.l.b16 %v72
  %v334 = vunpack.c.h.b16 %v72
  %v335 = vunpack.c.l.b16 %v73
  %v336 = vunpack.c.l.b16 %v74
  %v337 = vunpack.c.h.b16 %v74
  %v338 = vunpack.c.l.b16 %v75
  %v339 = vunpack.c.h.b16 %v75
  %v340 = vunpack.c.l.b16 %v76
  %v341 = vunpack.c.l.b16 %v77
  %v342 = vunpack.c.h.b16 %v77
  %v343 = vunpack.c.l.b16 %v78
  %v344 = vunpack.c.h.b16 %v78
  %v345 = vunpack.c.l.b16 %v79
  %v346 = vunpack.c.l.b16 %v80
  %v347 = vunpack.c.h.b16 %v80
  %v348 = vunpack.c.l.b16 %v81
  %v349 = vunpack.c.h.b16 %v81
  %v350 = vunpack.c.l.b16 %v82
  %v351 = vunpack.c.l.b16 %v83
  %v352 = vunpack.c.h.b16 %v83
  %v353 = vunpack.c.l.b16 %v84
  %v354 = vunpack.c.h.b16 %v84
  %v355 = vunpack.c.l.b16 %v85
  %v356 = vunpack.c.l.b16 %v86
  %v357 = vunpack.c.h.b16 %v86
  %v358 = vunpack.c.l.b16 %v87
  %v359 = vunpack.c.h.b16 %v87
  %v360 = vunpack.c.l.b16 %v88
  %v361 = vunpack.c.l.b16 %v89
  %v362 = vunpack.c.h.b16 %v89
  %v363 = vunpack.c.l.b16 %v90
  %v364 = vunpack.c.h.b16 %v90
  %v365 = vunpack.c.l.b16 %v91
  %v366 = vunpack.c.l.b16 %v92
  %v367 = vunpack.c.h.b16 %v92
  %v368 = vunpack.c.l.b16 %v93
  %v369 = vunpack.c.h.b16 %v93
  %v370 = vunpack.c.l.b16 %v94
  %v371 = vunpack.c.l.b16 %v95
  %v372 = vunpack.c.h.b16 %v95
  %v373 = vunpack.c.l.b16 %v96
  %v374 = vunpack.c.h.b16 %v96
  %v375 = vunpack.c.l.b16 %v97
  %v376 = vunpack.c.l.b16 %v98
  %v377 = vunpack.c.h.b16 %v98
  %v378 = vunpack.c.l.b16 %v99
  %v379 = vunpack.c.h.b16 %v99
  %v380 = vunpack.c.l.b16 %v100
  %v381 = vunpack.c.l.b16 %v101
  %v382 = vunpack.c.h.b16 %v101
  %v383 = vunpack.c.l.b16 %v102
  %v384 = vunpack.c.h.b16 %v102
  %v385 = vunpack.c.l.b16 %v103
  %v386 = vunpack.c.l.b16 %v104
  %v387 = vunpack.c.h.b16 %v104
  %v388 = vunpack.c.l.b16 %v105
  %v389 = vunpack.c.h.b16 %v105
  %v390 = vunpack.c.l.b16 %v106
  %v391 = vpack.c.b16 %v271, %v266
  %v392 = vpack.c.b16 %v272, %v267
  %v393 = vpack.c.b16 %v273, %v268
  %v394 = vpack.c.b16 %v274, %v269
  %v395 = vpack.c.b16 %v275, %v270
  %v396 = vpack.c.b16 %v281, %v276
  %v397 = vpack.c.b16 %v282, %v277
  %v398 = vpack.c.b16 %v283, %v278
  %v399 = vpack.c.b16 %v284, %v279
  %v400 = vpack.c.b16 %v285, %v280
  %v401 = vpack.c.b16 %v291, %v286
  %v402 = vpack.c.b16 %v292, %v287
  %v403 = vpack.c.b16 %v293, %v288
  %v404 = vpack.c.b16 %v294, %v289
  %v405 = vpack.c.b16 %v295, %v290
  %v406 = vpack.c.b16 %v301, %v296
  %v407 = vpack.c.b16 %v302, %v297
  %v408 = vpack.c.b16 %v303, %v298
  %v409 = vpack.c.b16 %v304, %v299
  %v410 = vpack.c.b16 %v305, %v300
  %v411 = vpack.c.b16 %v311, %v306
  %v412 = vpack.c.b16 %v312, %v307
  %v413 = vpack.c.b16 %v313, %v308
  %v414 = vpack.c.b16 %v314, %v309
  %v415 = vpack.c.b16 %v315, %v310
  %v416 = vpack.c.b16 %v321, %v316
  %v417 = vpack.c.b16 %v322, %v317
  %v418 = vpack.c.b16 %v323, %v318
  %v419 = vpack.c.b16 %v324, %v319
  %v420 = vpack.c.b16 %v325, %v320
  %v421 = vpack.c.b16 %v331, %v326
  %v422 = vpack.c.b16 %v332, %v327
  %v423 = vpack.c.b16 %v333, %v328
  %v424 = vpack.c.b16 %v334, %v329
  %v425 = vpack.c.b16 %v335, %v330
  %v426 = vpack.c.b16 %v341, %v336
  %v427 = vpack.c.b16 %v342, %v337
  %v428 = vpack.c.b16 %v343, %v338
  %v429 = vpack.c.b16 %v344, %v339
  %v430 = vpack.c.b16 %v345, %v340
  %v431 = vpack.c.b16 %v351, %v346
  %v432 = vpack.c.b16 %v352, %v347
  %v433 = vpack.c.b16 %v353, %v348
  %v434 = vpack.c.b16 %v354, %v349
  %v435 = vpack.c.b16 %v355, %v350
  %v436 = vpack.c.b16 %v361, %v356
  %v437 = vpack.c.b16 %v362, %v357
  %v438 = vpack.c.b16 %v363, %v358
  %v439 = vpack.c.b16 %v364, %v359
  %v440 = vpack.c.b16 %v365, %v360
  %v441 = vpack.c.b16 %v371, %v366
  %v442 = vpack.c.b16 %v372, %v367
  %v443 = vpack.c.b16 %v373, %v368
  %v444 = vpack.c.b16 %v374, %v369
  %v445 = vpack.c.b16 %v375, %v370
  %v446 = vpack.c.b16 %v381, %v376
  %v447 = vpack.c.b16 %v382, %v377
  %v448 = vpack.c.b16 %v383, %v378
  %v449 = vpack.c.b16 %v384, %v379
  %v450 = vpack.c.b16 %v385, %v380
  %v451 = vpack.c.b16 %v386, %v386
  %v452 = vpack.c.b16 %v387, %v387
  %v453 = vpack.c.b16 %v388, %v388
  %v454 = vpack.c.b16 %v389, %v389
  %v455 = vpack.c.b16 %v390, %v390
  %v601 = vunpack.c.l.b16 %v107
  %v602 = vunpack.c.l.b16 %v108
  %v603 = vunpack.c.l.b16 %v109
  %v604 = vunpack.c.l.b16 %v110
  %v605 = vunpack.c.l.b16 %v111
  %v606 = vunpack.c.l.b16 %v112
  %v607 = vunpack.c.l.b16 %v113
  %v608 = vunpack.c.l.b16 %v114
  %v609 = vunpack.c.l.b16 %v115
  %v610 = vunpack.c.l.b16 %v116
  %v611 = vunpack.c.l.b16 %v117
  %v612 = vunpack.c.l.b16 %v118
  %v613 = vunpack.c.l.b16 %v119
  %v614 = vunpack.c.l.b16 %v120
  %v615 = vunpack.c.l.b16 %v121
  %v616 = vunpack.c.l.b16 %v122
  %v617 = vunpack.c.l.b16 %v123
  %v618 = vunpack.c.l.b16 %v124
  %v619 = vunpack.c.l.b16 %v125
  %v620 = vunpack.c.l.b16 %v126
  %v621 = vunpack.c.l.b16 %v127
  %v622 = vunpack.c.l.b16 %v128
  %v623 = vunpack.c.l.b16 %v129
  %v624 = vunpack.c.l.b16 %v130
  %v625 = vunpack.c.l.b16 %v131
  %v626 = vunpack.c.l.b16 %v132
  %v627 = vunpack.c.l.b16 %v133
  %v628 = vunpack.c.l.b16 %v134
  %v629 = vunpack.c.l.b16 %v135
  %v630 = vunpack.c.l.b16 %v136
  %v631 = vunpack.c.l.b16 %v137
  %v632 = vunpack.c.l.b16 %v138
  %v633 = vunpack.c.l.b16 %v139
  %v634 = vunpack.c.l.b16 %v140
  %v635 = vunpack.c.l.b16 %v141
  %v636 = vunpack.c.l.b16 %v142
  %v637 = vunpack.c.l.b16 %v143
  %v638 = vunpack.c.l.b16 %v144
  %v639 = vunpack.c.l.b16 %v145
  %v640 = vunpack.c.l.b16 %v146
  %v641 = vunpack.c.l.b16 %v147
  %v642 = vunpack.c.l.b16 %v148
  %v643 = vunpack.c.l.b16 %v149
  %v644 = vunpack.c.l.b16 %v150
  %v645 = vunpack.c.l.b16 %v151
  %v646 = vunpack.c.l.b16 %v152
  %v647 = vunpack.c.l.b16 %v153
  %v648 = vunpack.c.l.b16 %v154
  %v649 = vunpack.c.l.b16 %v155
  %v650 = vunpack.c.l.b16 %v156
  %v651 = vunpack.c.l.b16 %v157
  %v652 = vunpack.c.l.b16 %v158
  %v653 = vunpack.c.l.b16 %v159
  %v654 = vunpack.c.l.b16 %v160
  %v655 = vunpack.c.l.b16 %v161
  %v656 = vunpack.c.l.b16 %v162
  %v657 = vunpack.c.l.b16 %v163
  %v658 = vunpack.c.l.b16 %v164
  %v659 = vunpack.c.l.b16 %v165
  %v660 = vunpack.c.l.b16 %v166
  %v661 = vunpack.c.l.b16 %v167
  %v662 = vunpack.c.l.b16 %v168
  %v663 = vunpack.c.l.b16 %v169
  %v664 = vunpack.c.l.b16 %v170
  %v665 = vunpack.c.l.b16 %v171
  %v666 = vunpack.c.l.b16 %v172
  %v667 = vunpack.c.l.b16 %v173
  %v668 = vunpack.c.l.b16 %v174
  %v669 = vunpack.c.l.b16 %v175
  %v670 = vunpack.c.l.b16 %v176
  %v671 = vunpack.c.l.b16 %v177
  %v672 = vunpack.c.l.b16 %v178
  %v673 = vunpack.c.l.b16 %v179
  %v674 = vunpack.c.l.b16 %v180
  %v675 = vunpack.c.l.b16 %v181
  %v676 = vunpack.c.l.b16 %v182
  %v677 = vunpack.c.l.b16 %v183
  %v678 = vunpack.c.l.b16 %v184
  %v679 = vunpack.c.l.b16 %v185
  %v680 = vunpack.c.l.b16 %v186
  %v681 = vpack.c.b16 %v602, %v601
  %v682 = vpack.c.b16 %v604, %v603
  %v683 = vpack.c.b16 %v606, %v605
  %v684 = vpack.c.b16 %v608, %v607
  %v685 = vpack.c.b16 %v610, %v609
  %v686 = vpack.c.b16 %v612, %v611
  %v687 = vpack.c.b16 %v614, %v613
  %v688 = vpack.c.b16 %v616, %v615
  %v689 = vpack.c.b16 %v618, %v617
  %v690 = vpack.c.b16 %v620, %v619
  %v691 = vpack.c.b16 %v622, %v621
  %v692 = vpack.c.b16 %v624, %v623
  %v693 = vpack.c.b16 %v626, %v625
  %v694 = vpack.c.b16 %v628, %v627
  %v695 = vpack.c.b16 %v630, %v629
  %v696 = vpack.c.b16 %v632, %v631
  %v697 = vpack.c.b16 %v634, %v633
  %v698 = vpack.c.b16 %v636, %v635
  %v699 = vpack.c.b16 %v638, %v637
  %v700 = vpack.c.b16 %v640, %v639
  %v701 = vpack.c.b16 %v642, %v641
  %v702 = vpack.c.b16 %v644, %v643
  %v703 = vpack.c.b16 %v646, %v645
  %v704 = vpack.c.b16 %v648, %v647
  %v705 = vpack.c.b16 %v650, %v649
  %v706 = vpack.c.b16 %v652, %v651
  %v707 = vpack.c.b16 %v654, %v653
  %v708 = vpack.c.b16 %v656, %v655
  %v709 = vpack.c.b16 %v658, %v657
  %v710 = vpack.c.b16 %v660, %v659
  %v711 = vpack.c.b16 %v662, %v661
  %v712 = vpack.c.b16 %v664, %v663
  %v713 = vpack.c.b16 %v666, %v665
  %v714 = vpack.c.b16 %v668, %v667
  %v715 = vpack.c.b16 %v670, %v669
  %v716 = vpack.c.b16 %v672, %v671
  %v717 = vpack.c.b16 %v674, %v673
  %v718 = vpack.c.b16 %v676, %v675
  %v719 = vpack.c.b16 %v678, %v677
  %v720 = vpack.c.b16 %v680, %v679
  %761 = vmatpush.bf16.msra.mxu0 %v688
  %762 = vmatpush.bf16.msra.mxu0 %v687
  %763 = vmatpush.bf16.msra.mxu0 %v686
  %764 = vmatpush.bf16.msra.mxu0 %v685
  %765 = vmatpush.bf16.msra.mxu0 %v684
  %766 = vmatpush.bf16.msra.mxu0 %v683
  %767 = vmatpush.bf16.msra.mxu0 %v682
  %768 = vmatpush.bf16.msra.mxu0 %v681
  %769 = vmatmul.bf16.gmra.mxu0 %v391
  %v770 = vpop.f32.mrf.mxu0
  %v771 = vadd.f32 %v189, %v770
  %v772 = vpop.f32.mrf.mxu0
  %v773 = vadd.f32 %v189, %v772
  %774 = vmatmul.bf16.gmra.mxu0 %v396
  %v775 = vpop.f32.mrf.mxu0
  %v776 = vadd.f32 %v189, %v775
  %v777 = vpop.f32.mrf.mxu0
  %v778 = vadd.f32 %v189, %v777
  %779 = vmatmul.bf16.gmra.mxu0 %v401
  %v780 = vpop.f32.mrf.mxu0
  %v781 = vadd.f32 %v189, %v780
  %v782 = vpop.f32.mrf.mxu0
  %v783 = vadd.f32 %v189, %v782
  %784 = vmatmul.bf16.gmra.mxu0 %v406
  %v785 = vpop.f32.mrf.mxu0
  %v786 = vadd.f32 %v189, %v785
  %v787 = vpop.f32.mrf.mxu0
  %v788 = vadd.f32 %v189, %v787
  %789 = vmatmul.bf16.gmra.mxu0 %v411
  %v790 = vpop.f32.mrf.mxu0
  %v791 = vadd.f32 %v189, %v790
  %v792 = vpop.f32.mrf.mxu0
  %v793 = vadd.f32 %v189, %v792
  %794 = vmatmul.bf16.gmra.mxu0 %v416
  %v795 = vpop.f32.mrf.mxu0
  %v796 = vadd.f32 %v189, %v795
  %v797 = vpop.f32.mrf.mxu0
  %v798 = vadd.f32 %v189, %v797
  %799 = vmatmul.bf16.gmra.mxu0 %v421
  %v800 = vpop.f32.mrf.mxu0
  %v801 = vadd.f32 %v189, %v800
  %v802 = vpop.f32.mrf.mxu0
  %v803 = vadd.f32 %v189, %v802
  %804 = vmatmul.bf16.gmra.mxu0 %v426
  %v805 = vpop.f32.mrf.mxu0
  %v806 = vadd.f32 %v189, %v805
  %v807 = vpop.f32.mrf.mxu0
  %v808 = vadd.f32 %v189, %v807
  %809 = vmatmul.bf16.gmra.mxu0 %v431
  %v810 = vpop.f32.mrf.mxu0
  %v811 = vadd.f32 %v189, %v810
  %v812 = vpop.f32.mrf.mxu0
  %v813 = vadd.f32 %v189, %v812
  %814 = vmatmul.bf16.gmra.mxu0 %v436
  %v815 = vpop.f32.mrf.mxu0
  %v816 = vadd.f32 %v189, %v815
  %v817 = vpop.f32.mrf.mxu0
  %v818 = vadd.f32 %v189, %v817
  %819 = vmatmul.bf16.gmra.mxu0 %v441
  %v820 = vpop.f32.mrf.mxu0
  %v821 = vadd.f32 %v189, %v820
  %v822 = vpop.f32.mrf.mxu0
  %v823 = vadd.f32 %v189, %v822
  %824 = vmatmul.bf16.gmra.mxu0 %v446
  %v825 = vpop.f32.mrf.mxu0
  %v826 = vadd.f32 %v189, %v825
  %v827 = vpop.f32.mrf.mxu0
  %v828 = vadd.f32 %v189, %v827
  %829 = vmatmul.bf16.gmra.mxu0 %v451
  %v830 = vpop.f32.mrf.mxu0
  %v831 = vadd.f32 %v189, %v830
  %v832 = vpop.f32.mrf.mxu0
  %833 = vdwg.mxu0
  %834 = vmatpush.bf16.msra.mxu0 %v696
  %835 = vmatpush.bf16.msra.mxu0 %v695
  %836 = vmatpush.bf16.msra.mxu0 %v694
  %837 = vmatpush.bf16.msra.mxu0 %v693
  %838 = vmatpush.bf16.msra.mxu0 %v692
  %839 = vmatpush.bf16.msra.mxu0 %v691
  %840 = vmatpush.bf16.msra.mxu0 %v690
  %841 = vmatpush.bf16.msra.mxu0 %v689
  %842 = vmatmul.bf16.gmra.mxu0 %v392
  %v843 = vpop.f32.mrf.mxu0
  %v844 = vadd.f32 %v771, %v843
  %v845 = vpop.f32.mrf.mxu0
  %v846 = vadd.f32 %v773, %v845
  %847 = vmatmul.bf16.gmra.mxu0 %v397
  %v848 = vpop.f32.mrf.mxu0
  %v849 = vadd.f32 %v776, %v848
  %v850 = vpop.f32.mrf.mxu0
  %v851 = vadd.f32 %v778, %v850
  %852 = vmatmul.bf16.gmra.mxu0 %v402
  %v853 = vpop.f32.mrf.mxu0
  %v854 = vadd.f32 %v781, %v853
  %v855 = vpop.f32.mrf.mxu0
  %v856 = vadd.f32 %v783, %v855
  %857 = vmatmul.bf16.gmra.mxu0 %v407
  %v858 = vpop.f32.mrf.mxu0
  %v859 = vadd.f32 %v786, %v858
  %v860 = vpop.f32.mrf.mxu0
  %v861 = vadd.f32 %v788, %v860
  %862 = vmatmul.bf16.gmra.mxu0 %v412
  %v863 = vpop.f32.mrf.mxu0
  %v864 = vadd.f32 %v791, %v863
  %v865 = vpop.f32.mrf.mxu0
  %v866 = vadd.f32 %v793, %v865
  %867 = vmatmul.bf16.gmra.mxu0 %v417
  %v868 = vpop.f32.mrf.mxu0
  %v869 = vadd.f32 %v796, %v868
  %v870 = vpop.f32.mrf.mxu0
  %v871 = vadd.f32 %v798, %v870
  %872 = vmatmul.bf16.gmra.mxu0 %v422
  %v873 = vpop.f32.mrf.mxu0
  %v874 = vadd.f32 %v801, %v873
  %v875 = vpop.f32.mrf.mxu0
  %v876 = vadd.f32 %v803, %v875
  %877 = vmatmul.bf16.gmra.mxu0 %v427
  %v878 = vpop.f32.mrf.mxu0
  %v879 = vadd.f32 %v806, %v878
  %v880 = vpop.f32.mrf.mxu0
  %v881 = vadd.f32 %v808, %v880
  %882 = vmatmul.bf16.gmra.mxu0 %v432
  %v883 = vpop.f32.mrf.mxu0
  %v884 = vadd.f32 %v811, %v883
  %v885 = vpop.f32.mrf.mxu0
  %v886 = vadd.f32 %v813, %v885
  %887 = vmatmul.bf16.gmra.mxu0 %v437
  %v888 = vpop.f32.mrf.mxu0
  %v889 = vadd.f32 %v816, %v888
  %v890 = vpop.f32.mrf.mxu0
  %v891 = vadd.f32 %v818, %v890
  %892 = vmatmul.bf16.gmra.mxu0 %v442
  %v893 = vpop.f32.mrf.mxu0
  %v894 = vadd.f32 %v821, %v893
  %v895 = vpop.f32.mrf.mxu0
  %v896 = vadd.f32 %v823, %v895
  %897 = vmatmul.bf16.gmra.mxu0 %v447
  %v898 = vpop.f32.mrf.mxu0
  %v899 = vadd.f32 %v826, %v898
  %v900 = vpop.f32.mrf.mxu0
  %v901 = vadd.f32 %v828, %v900
  %902 = vmatmul.bf16.gmra.mxu0 %v452
  %v903 = vpop.f32.mrf.mxu0
  %v904 = vadd.f32 %v831, %v903
  %v905 = vpop.f32.mrf.mxu0
  %906 = vdwg.mxu0
  %907 = vmatpush.bf16.msra.mxu0 %v704
  %908 = vmatpush.bf16.msra.mxu0 %v703
  %909 = vmatpush.bf16.msra.mxu0 %v702
  %910 = vmatpush.bf16.msra.mxu0 %v701
  %911 = vmatpush.bf16.msra.mxu0 %v700
  %912 = vmatpush.bf16.msra.mxu0 %v699
  %913 = vmatpush.bf16.msra.mxu0 %v698
  %914 = vmatpush.bf16.msra.mxu0 %v697
  %915 = vmatmul.bf16.gmra.mxu0 %v393
  %v916 = vpop.f32.mrf.mxu0
  %v917 = vadd.f32 %v844, %v916
  %v918 = vpop.f32.mrf.mxu0
  %v919 = vadd.f32 %v846, %v918
  %920 = vmatmul.bf16.gmra.mxu0 %v398
  %v921 = vpop.f32.mrf.mxu0
  %v922 = vadd.f32 %v849, %v921
  %v923 = vpop.f32.mrf.mxu0
  %v924 = vadd.f32 %v851, %v923
  %925 = vmatmul.bf16.gmra.mxu0 %v403
  %v926 = vpop.f32.mrf.mxu0
  %v927 = vadd.f32 %v854, %v926
  %v928 = vpop.f32.mrf.mxu0
  %v929 = vadd.f32 %v856, %v928
  %930 = vmatmul.bf16.gmra.mxu0 %v408
  %v931 = vpop.f32.mrf.mxu0
  %v932 = vadd.f32 %v859, %v931
  %v933 = vpop.f32.mrf.mxu0
  %v934 = vadd.f32 %v861, %v933
  %935 = vmatmul.bf16.gmra.mxu0 %v413
  %v936 = vpop.f32.mrf.mxu0
  %v937 = vadd.f32 %v864, %v936
  %v938 = vpop.f32.mrf.mxu0
  %v939 = vadd.f32 %v866, %v938
  %940 = vmatmul.bf16.gmra.mxu0 %v418
  %v941 = vpop.f32.mrf.mxu0
  %v942 = vadd.f32 %v869, %v941
  %v943 = vpop.f32.mrf.mxu0
  %v944 = vadd.f32 %v871, %v943
  %945 = vmatmul.bf16.gmra.mxu0 %v423
  %v946 = vpop.f32.mrf.mxu0
  %v947 = vadd.f32 %v874, %v946
  %v948 = vpop.f32.mrf.mxu0
  %v949 = vadd.f32 %v876, %v948
  %950 = vmatmul.bf16.gmra.mxu0 %v428
  %v951 = vpop.f32.mrf.mxu0
  %v952 = vadd.f32 %v879, %v951
  %v953 = vpop.f32.mrf.mxu0
  %v954 = vadd.f32 %v881, %v953
  %955 = vmatmul.bf16.gmra.mxu0 %v433
  %v956 = vpop.f32.mrf.mxu0
  %v957 = vadd.f32 %v884, %v956
  %v958 = vpop.f32.mrf.mxu0
  %v959 = vadd.f32 %v886, %v958
  %960 = vmatmul.bf16.gmra.mxu0 %v438
  %v961 = vpop.f32.mrf.mxu0
  %v962 = vadd.f32 %v889, %v961
  %v963 = vpop.f32.mrf.mxu0
  %v964 = vadd.f32 %v891, %v963
  %965 = vmatmul.bf16.gmra.mxu0 %v443
  %v966 = vpop.f32.mrf.mxu0
  %v967 = vadd.f32 %v894, %v966
  %v968 = vpop.f32.mrf.mxu0
  %v969 = vadd.f32 %v896, %v968
  %970 = vmatmul.bf16.gmra.mxu0 %v448
  %v971 = vpop.f32.mrf.mxu0
  %v972 = vadd.f32 %v899, %v971
  %v973 = vpop.f32.mrf.mxu0
  %v974 = vadd.f32 %v901, %v973
  %975 = vmatmul.bf16.gmra.mxu0 %v453
  %v976 = vpop.f32.mrf.mxu0
  %v977 = vadd.f32 %v904, %v976
  %v978 = vpop.f32.mrf.mxu0
  %979 = vdwg.mxu0
  %980 = vmatpush.bf16.msra.mxu0 %v712
  %981 = vmatpush.bf16.msra.mxu0 %v711
  %982 = vmatpush.bf16.msra.mxu0 %v710
  %983 = vmatpush.bf16.msra.mxu0 %v709
  %984 = vmatpush.bf16.msra.mxu0 %v708
  %985 = vmatpush.bf16.msra.mxu0 %v707
  %986 = vmatpush.bf16.msra.mxu0 %v706
  %987 = vmatpush.bf16.msra.mxu0 %v705
  %988 = vmatmul.bf16.gmra.mxu0 %v394
  %v989 = vpop.f32.mrf.mxu0
  %v990 = vadd.f32 %v917, %v989
  %v991 = vpop.f32.mrf.mxu0
  %v992 = vadd.f32 %v919, %v991
  %993 = vmatmul.bf16.gmra.mxu0 %v399
  %v994 = vpop.f32.mrf.mxu0
  %v995 = vadd.f32 %v922, %v994
  %v996 = vpop.f32.mrf.mxu0
  %v997 = vadd.f32 %v924, %v996
  %998 = vmatmul.bf16.gmra.mxu0 %v404
  %v999 = vpop.f32.mrf.mxu0
  %v1000 = vadd.f32 %v927, %v999
  %v1001 = vpop.f32.mrf.mxu0
  %v1002 = vadd.f32 %v929, %v1001
  %1003 = vmatmul.bf16.gmra.mxu0 %v409
  %v1004 = vpop.f32.mrf.mxu0
  %v1005 = vadd.f32 %v932, %v1004
  %v1006 = vpop.f32.mrf.mxu0
  %v1007 = vadd.f32 %v934, %v1006
  %1008 = vmatmul.bf16.gmra.mxu0 %v414
  %v1009 = vpop.f32.mrf.mxu0
  %v1010 = vadd.f32 %v937, %v1009
  %v1011 = vpop.f32.mrf.mxu0
  %v1012 = vadd.f32 %v939, %v1011
  %1013 = vmatmul.bf16.gmra.mxu0 %v419
  %v1014 = vpop.f32.mrf.mxu0
  %v1015 = vadd.f32 %v942, %v1014
  %v1016 = vpop.f32.mrf.mxu0
  %v1017 = vadd.f32 %v944, %v1016
  %1018 = vmatmul.bf16.gmra.mxu0 %v424
  %v1019 = vpop.f32.mrf.mxu0
  %v1020 = vadd.f32 %v947, %v1019
  %v1021 = vpop.f32.mrf.mxu0
  %v1022 = vadd.f32 %v949, %v1021
  %1023 = vmatmul.bf16.gmra.mxu0 %v429
  %v1024 = vpop.f32.mrf.mxu0
  %v1025 = vadd.f32 %v952, %v1024
  %v1026 = vpop.f32.mrf.mxu0
  %v1027 = vadd.f32 %v954, %v1026
  %1028 = vmatmul.bf16.gmra.mxu0 %v434
  %v1029 = vpop.f32.mrf.mxu0
  %v1030 = vadd.f32 %v957, %v1029
  %v1031 = vpop.f32.mrf.mxu0
  %v1032 = vadd.f32 %v959, %v1031
  %1033 = vmatmul.bf16.gmra.mxu0 %v439
  %v1034 = vpop.f32.mrf.mxu0
  %v1035 = vadd.f32 %v962, %v1034
  %v1036 = vpop.f32.mrf.mxu0
  %v1037 = vadd.f32 %v964, %v1036
  %1038 = vmatmul.bf16.gmra.mxu0 %v444
  %v1039 = vpop.f32.mrf.mxu0
  %v1040 = vadd.f32 %v967, %v1039
  %v1041 = vpop.f32.mrf.mxu0
  %v1042 = vadd.f32 %v969, %v1041
  %1043 = vmatmul.bf16.gmra.mxu0 %v449
  %v1044 = vpop.f32.mrf.mxu0
  %v1045 = vadd.f32 %v972, %v1044
  %v1046 = vpop.f32.mrf.mxu0
  %v1047 = vadd.f32 %v974, %v1046
  %1048 = vmatmul.bf16.gmra.mxu0 %v454
  %v1049 = vpop.f32.mrf.mxu0
  %v1050 = vadd.f32 %v977, %v1049
  %v1051 = vpop.f32.mrf.mxu0
  %1052 = vdwg.mxu0
  %1053 = vmatpush.bf16.msra.mxu0 %v720
  %1054 = vmatpush.bf16.msra.mxu0 %v719
  %1055 = vmatpush.bf16.msra.mxu0 %v718
  %1056 = vmatpush.bf16.msra.mxu0 %v717
  %1057 = vmatpush.bf16.msra.mxu0 %v716
  %1058 = vmatpush.bf16.msra.mxu0 %v715
  %1059 = vmatpush.bf16.msra.mxu0 %v714
  %1060 = vmatpush.bf16.msra.mxu0 %v713
  %1061 = vmatmul.bf16.gmra.mxu0 %v395
  %v1062 = vpop.f32.mrf.mxu0
  %v1063 = vadd.f32 %v990, %v1062
  %v1064 = vpop.f32.mrf.mxu0
  %v1065 = vadd.f32 %v992, %v1064
  %1066 = vmatmul.bf16.gmra.mxu0 %v400
  %v1067 = vpop.f32.mrf.mxu0
  %v1068 = vadd.f32 %v995, %v1067
  %v1069 = vpop.f32.mrf.mxu0
  %v1070 = vadd.f32 %v997, %v1069
  %1071 = vmatmul.bf16.gmra.mxu0 %v405
  %v1072 = vpop.f32.mrf.mxu0
  %v1073 = vadd.f32 %v1000, %v1072
  %v1074 = vpop.f32.mrf.mxu0
  %v1075 = vadd.f32 %v1002, %v1074
  %1076 = vmatmul.bf16.gmra.mxu0 %v410
  %v1077 = vpop.f32.mrf.mxu0
  %v1078 = vadd.f32 %v1005, %v1077
  %v1079 = vpop.f32.mrf.mxu0
  %v1080 = vadd.f32 %v1007, %v1079
  %1081 = vmatmul.bf16.gmra.mxu0 %v415
  %v1082 = vpop.f32.mrf.mxu0
  %v1083 = vadd.f32 %v1010, %v1082
  %v1084 = vpop.f32.mrf.mxu0
  %v1085 = vadd.f32 %v1012, %v1084
  %1086 = vmatmul.bf16.gmra.mxu0 %v420
  %v1087 = vpop.f32.mrf.mxu0
  %v1088 = vadd.f32 %v1015, %v1087
  %v1089 = vpop.f32.mrf.mxu0
  %v1090 = vadd.f32 %v1017, %v1089
  %1091 = vmatmul.bf16.gmra.mxu0 %v425
  %v1092 = vpop.f32.mrf.mxu0
  %v1093 = vadd.f32 %v1020, %v1092
  %v1094 = vpop.f32.mrf.mxu0
  %v1095 = vadd.f32 %v1022, %v1094
  %1096 = vmatmul.bf16.gmra.mxu0 %v430
  %v1097 = vpop.f32.mrf.mxu0
  %v1098 = vadd.f32 %v1025, %v1097
  %v1099 = vpop.f32.mrf.mxu0
  %v1100 = vadd.f32 %v1027, %v1099
  %1101 = vmatmul.bf16.gmra.mxu0 %v435
  %v1102 = vpop.f32.mrf.mxu0
  %v1103 = vadd.f32 %v1030, %v1102
  %v1104 = vpop.f32.mrf.mxu0
  %v1105 = vadd.f32 %v1032, %v1104
  %1106 = vmatmul.bf16.gmra.mxu0 %v440
  %v1107 = vpop.f32.mrf.mxu0
  %v1108 = vadd.f32 %v1035, %v1107
  %v1109 = vpop.f32.mrf.mxu0
  %v1110 = vadd.f32 %v1037, %v1109
  %1111 = vmatmul.bf16.gmra.mxu0 %v445
  %v1112 = vpop.f32.mrf.mxu0
  %v1113 = vadd.f32 %v1040, %v1112
  %v1114 = vpop.f32.mrf.mxu0
  %v1115 = vadd.f32 %v1042, %v1114
  %1116 = vmatmul.bf16.gmra.mxu0 %v450
  %v1117 = vpop.f32.mrf.mxu0
  %v1118 = vadd.f32 %v1045, %v1117
  %v1119 = vpop.f32.mrf.mxu0
  %v1120 = vadd.f32 %v1047, %v1119
  %1121 = vmatmul.bf16.gmra.mxu0 %v455
  %v1122 = vpop.f32.mrf.mxu0
  %v1123 = vadd.f32 %v1050, %v1122
  %v1124 = vpop.f32.mrf.mxu0
  %1125 = vdwg.mxu0
  %v1126 = vmax.f32 %v1063, 0.0
  %v1127 = vmax.f32 %v1065, 0.0
  %v1128 = vmax.f32 %v1068, 0.0
  %v1129 = vmax.f32 %v1070, 0.0
  %v1130 = vmax.f32 %v1073, 0.0
  %v1131 = vmax.f32 %v1075, 0.0
  %v1132 = vmax.f32 %v1078, 0.0
  %v1133 = vmax.f32 %v1080, 0.0
  %v1134 = vmax.f32 %v1083, 0.0
  %v1135 = vmax.f32 %v1085, 0.0
  %v1136 = vmax.f32 %v1088, 0.0
  %v1137 = vmax.f32 %v1090, 0.0
  %v1138 = vmax.f32 %v1093, 0.0
  %v1139 = vmax.f32 %v1095, 0.0
  %v1140 = vmax.f32 %v1098, 0.0
  %v1141 = vmax.f32 %v1100, 0.0
  %v1142 = vmax.f32 %v1103, 0.0
  %v1143 = vmax.f32 %v1105, 0.0
  %v1144 = vmax.f32 %v1108, 0.0
  %v1145 = vmax.f32 %v1110, 0.0
  %v1146 = vmax.f32 %v1113, 0.0
  %v1147 = vmax.f32 %v1115, 0.0
  %v1148 = vmax.f32 %v1118, 0.0
  %v1149 = vmax.f32 %v1120, 0.0
  %v1150 = vmax.f32 %v1123, 0.0
  %v1151 = vpack.c.bf16 %v1127, %v1126
  %v1152 = vpack.c.bf16 %v1129, %v1128
  %v1153 = vpack.c.bf16 %v1131, %v1130
  %v1154 = vpack.c.bf16 %v1133, %v1132
  %v1155 = vpack.c.bf16 %v1135, %v1134
  %v1156 = vpack.c.bf16 %v1137, %v1136
  %v1157 = vpack.c.bf16 %v1139, %v1138
  %v1158 = vpack.c.bf16 %v1141, %v1140
  %v1159 = vpack.c.bf16 %v1143, %v1142
  %v1160 = vpack.c.bf16 %v1145, %v1144
  %v1161 = vpack.c.bf16 %v1147, %v1146
  %v1162 = vpack.c.bf16 %v1149, %v1148
  %v1163 = vpack.c.bf16 %v1150, %v1150
  %v1164 = vld [vmem:[%s3] sm:$0xf]
  %v1165 = vld [vmem:[%s3 + $0x4] sm:$0xf]
  %v1166 = vld [vmem:[%s3 + $0x8] sm:$0xf]
  %v1167 = vld [vmem:[%s3 + $0xc] sm:$0xf]
  %v1168 = vld [vmem:[%s3 + $0x10] sm:$0xf]
  %v1169 = vld [vmem:[%s3 + $0x14] sm:$0xf]
  %v1170 = vld [vmem:[%s3 + $0x18] sm:$0xf]
  %v1171 = vld [vmem:[%s3 + $0x1c] sm:$0xf]
  %v1172 = vld [vmem:[%s3 + $0x20] sm:$0xf]
  %v1173 = vld [vmem:[%s3 + $0x24] sm:$0xf]
  %v1174 = vld [vmem:[%s3 + $0x28] sm:$0xf]
  %v1175 = vld [vmem:[%s3 + $0x2c] sm:$0xf]
  %v1176 = vld [vmem:[%s3 + $0x30] sm:$0xf]
  %v1177 = vld [vmem:[%s3 + $0x34] sm:$0xf]
  %v1178 = vld [vmem:[%s3 + $0x38] sm:$0xf]
  %v1179 = vld [vmem:[%s3 + $0x3c] sm:$0xf]
  %v1180 = vld [vmem:[%s4] sm:$0x1]
  %v1182 = vperm.slane %v1180, 0
  %v1200 = vunpack.c.l.b16 %v1164
  %v1201 = vunpack.c.l.b16 %v1165
  %v1202 = vunpack.c.l.b16 %v1166
  %v1203 = vunpack.c.l.b16 %v1167
  %v1204 = vunpack.c.l.b16 %v1168
  %v1205 = vunpack.c.l.b16 %v1169
  %v1206 = vunpack.c.l.b16 %v1170
  %v1207 = vunpack.c.l.b16 %v1171
  %v1208 = vunpack.c.l.b16 %v1172
  %v1209 = vunpack.c.l.b16 %v1173
  %v1210 = vunpack.c.l.b16 %v1174
  %v1211 = vunpack.c.l.b16 %v1175
  %v1212 = vunpack.c.l.b16 %v1176
  %v1213 = vunpack.c.l.b16 %v1177
  %v1214 = vunpack.c.l.b16 %v1178
  %v1215 = vunpack.c.l.b16 %v1179
  %v1216 = vpack.c.b16 %v1201, %v1200
  %v1217 = vpack.c.b16 %v1203, %v1202
  %v1218 = vpack.c.b16 %v1205, %v1204
  %v1219 = vpack.c.b16 %v1207, %v1206
  %v1220 = vpack.c.b16 %v1209, %v1208
  %v1221 = vpack.c.b16 %v1211, %v1210
  %v1222 = vpack.c.b16 %v1213, %v1212
  %v1223 = vpack.c.b16 %v1215, %v1214
  %1232 = vmatpush.bf16.msra.mxu0 %v1223
  %1233 = vmatpush.bf16.msra.mxu0 %v1222
  %1234 = vmatpush.bf16.msra.mxu0 %v1221
  %1235 = vmatpush.bf16.msra.mxu0 %v1220
  %1236 = vmatpush.bf16.msra.mxu0 %v1219
  %1237 = vmatpush.bf16.msra.mxu0 %v1218
  %1238 = vmatpush.bf16.msra.mxu0 %v1217
  %1239 = vmatpush.bf16.msra.mxu0 %v1216
  %1240 = vmatmul.bf16.gmra.mxu0 %v1151
  %v1241 = vpop.f32.mrf.mxu0
  %v1242 = vadd.f32 %v1182, %v1241
  %v1243 = vpop.f32.mrf.mxu0
  %v1244 = vadd.f32 %v1182, %v1243
  %1245 = vmatmul.bf16.gmra.mxu0 %v1152
  %v1246 = vpop.f32.mrf.mxu0
  %v1247 = vadd.f32 %v1182, %v1246
  %v1248 = vpop.f32.mrf.mxu0
  %v1249 = vadd.f32 %v1182, %v1248
  %1250 = vmatmul.bf16.gmra.mxu0 %v1153
  %v1251 = vpop.f32.mrf.mxu0
  %v1252 = vadd.f32 %v1182, %v1251
  %v1253 = vpop.f32.mrf.mxu0
  %v1254 = vadd.f32 %v1182, %v1253
  %1255 = vmatmul.bf16.gmra.mxu0 %v1154
  %v1256 = vpop.f32.mrf.mxu0
  %v1257 = vadd.f32 %v1182, %v1256
  %v1258 = vpop.f32.mrf.mxu0
  %v1259 = vadd.f32 %v1182, %v1258
  %1260 = vmatmul.bf16.gmra.mxu0 %v1155
  %v1261 = vpop.f32.mrf.mxu0
  %v1262 = vadd.f32 %v1182, %v1261
  %v1263 = vpop.f32.mrf.mxu0
  %v1264 = vadd.f32 %v1182, %v1263
  %1265 = vmatmul.bf16.gmra.mxu0 %v1156
  %v1266 = vpop.f32.mrf.mxu0
  %v1267 = vadd.f32 %v1182, %v1266
  %v1268 = vpop.f32.mrf.mxu0
  %v1269 = vadd.f32 %v1182, %v1268
  %1270 = vmatmul.bf16.gmra.mxu0 %v1157
  %v1271 = vpop.f32.mrf.mxu0
  %v1272 = vadd.f32 %v1182, %v1271
  %v1273 = vpop.f32.mrf.mxu0
  %v1274 = vadd.f32 %v1182, %v1273
  %1275 = vmatmul.bf16.gmra.mxu0 %v1158
  %v1276 = vpop.f32.mrf.mxu0
  %v1277 = vadd.f32 %v1182, %v1276
  %v1278 = vpop.f32.mrf.mxu0
  %v1279 = vadd.f32 %v1182, %v1278
  %1280 = vmatmul.bf16.gmra.mxu0 %v1159
  %v1281 = vpop.f32.mrf.mxu0
  %v1282 = vadd.f32 %v1182, %v1281
  %v1283 = vpop.f32.mrf.mxu0
  %v1284 = vadd.f32 %v1182, %v1283
  %1285 = vmatmul.bf16.gmra.mxu0 %v1160
  %v1286 = vpop.f32.mrf.mxu0
  %v1287 = vadd.f32 %v1182, %v1286
  %v1288 = vpop.f32.mrf.mxu0
  %v1289 = vadd.f32 %v1182, %v1288
  %1290 = vmatmul.bf16.gmra.mxu0 %v1161
  %v1291 = vpop.f32.mrf.mxu0
  %v1292 = vadd.f32 %v1182, %v1291
  %v1293 = vpop.f32.mrf.mxu0
  %v1294 = vadd.f32 %v1182, %v1293
  %1295 = vmatmul.bf16.gmra.mxu0 %v1162
  %v1296 = vpop.f32.mrf.mxu0
  %v1297 = vadd.f32 %v1182, %v1296
  %v1298 = vpop.f32.mrf.mxu0
  %v1299 = vadd.f32 %v1182, %v1298
  %1300 = vmatmul.bf16.gmra.mxu0 %v1163
  %v1301 = vpop.f32.mrf.mxu0
  %v1302 = vadd.f32 %v1182, %v1301
  %v1303 = vpop.f32.mrf.mxu0
  %1304 = vdwg.mxu0
  %v1305 = vmax.f32 %v1242, 0.0
  %v1306 = vmax.f32 %v1244, 0.0
  %v1307 = vmax.f32 %v1247, 0.0
  %v1308 = vmax.f32 %v1249, 0.0
  %v1309 = vmax.f32 %v1252, 0.0
  %v1310 = vmax.f32 %v1254, 0.0
  %v1311 = vmax.f32 %v1257, 0.0
  %v1312 = vmax.f32 %v1259, 0.0
  %v1313 = vmax.f32 %v1262, 0.0
  %v1314 = vmax.f32 %v1264, 0.0
  %v1315 = vmax.f32 %v1267, 0.0
  %v1316 = vmax.f32 %v1269, 0.0
  %v1317 = vmax.f32 %v1272, 0.0
  %v1318 = vmax.f32 %v1274, 0.0
  %v1319 = vmax.f32 %v1277, 0.0
  %v1320 = vmax.f32 %v1279, 0.0
  %v1321 = vmax.f32 %v1282, 0.0
  %v1322 = vmax.f32 %v1284, 0.0
  %v1323 = vmax.f32 %v1287, 0.0
  %v1324 = vmax.f32 %v1289, 0.0
  %v1325 = vmax.f32 %v1292, 0.0
  %v1326 = vmax.f32 %v1294, 0.0
  %v1327 = vmax.f32 %v1297, 0.0
  %v1328 = vmax.f32 %v1299, 0.0
  %v1329 = vmax.f32 %v1302, 0.0
  %v1330 = vpack.c.bf16 %v1305, %v1305
  %v1331 = vpack.c.bf16 %v1306, %v1306
  %v1332 = vpack.c.bf16 %v1307, %v1307
  %v1333 = vpack.c.bf16 %v1308, %v1308
  %v1334 = vpack.c.bf16 %v1309, %v1309
  %v1335 = vpack.c.bf16 %v1310, %v1310
  %v1336 = vpack.c.bf16 %v1311, %v1311
  %v1337 = vpack.c.bf16 %v1312, %v1312
  %v1338 = vpack.c.bf16 %v1313, %v1313
  %v1339 = vpack.c.bf16 %v1314, %v1314
  %v1340 = vpack.c.bf16 %v1315, %v1315
  %v1341 = vpack.c.bf16 %v1316, %v1316
  %v1342 = vpack.c.bf16 %v1317, %v1317
  %v1343 = vpack.c.bf16 %v1318, %v1318
  %v1344 = vpack.c.bf16 %v1319, %v1319
  %v1345 = vpack.c.bf16 %v1320, %v1320
  %v1346 = vpack.c.bf16 %v1321, %v1321
  %v1347 = vpack.c.bf16 %v1322, %v1322
  %v1348 = vpack.c.bf16 %v1323, %v1323
  %v1349 = vpack.c.bf16 %v1324, %v1324
  %v1350 = vpack.c.bf16 %v1325, %v1325
  %v1351 = vpack.c.bf16 %v1326, %v1326
  %v1352 = vpack.c.bf16 %v1327, %v1327
  %v1353 = vpack.c.bf16 %v1328, %v1328
  %v1354 = vpack.c.bf16 %v1329, %v1329
  %1355 = vst [vmem:[#allocation2] sm:$0xf] %v1330
  %1356 = vst [vmem:[#allocation2 + $0x4] sm:$0xf] %v1331
  %1357 = vst [vmem:[#allocation2 + $0x8] sm:$0xf] %v1332
  %1358 = vst [vmem:[#allocation2 + $0xc] sm:$0xf] %v1333
  %1359 = vst [vmem:[#allocation2 + $0x10] sm:$0xf] %v1334
  %1360 = vst [vmem:[#allocation2 + $0x14] sm:$0xf] %v1335
  %1361 = vst [vmem:[#allocation2 + $0x18] sm:$0xf] %v1336
  %1362 = vst [vmem:[#allocation2 + $0x1c] sm:$0xf] %v1337
  %1363 = vst [vmem:[#allocation2 + $0x20] sm:$0xf] %v1338
  %1364 = vst [vmem:[#allocation2 + $0x24] sm:$0xf] %v1339
  %1365 = vst [vmem:[#allocation2 + $0x28] sm:$0xf] %v1340
  %1366 = vst [vmem:[#allocation2 + $0x2c] sm:$0xf] %v1341
  %1367 = vst [vmem:[#allocation2 + $0x30] sm:$0xf] %v1342
  %1368 = vst [vmem:[#allocation2 + $0x34] sm:$0xf] %v1343
  %1369 = vst [vmem:[#allocation2 + $0x38] sm:$0xf] %v1344
  %1370 = vst [vmem:[#allocation2 + $0x3c] sm:$0xf] %v1345
  %1371 = vst [vmem:[#allocation2 + $0x40] sm:$0xf] %v1346
  %1372 = vst [vmem:[#allocation2 + $0x44] sm:$0xf] %v1347
  %1373 = vst [vmem:[#allocation2 + $0x48] sm:$0xf] %v1348
  %1374 = vst [vmem:[#allocation2 + $0x4c] sm:$0xf] %v1349
  %1375 = vst [vmem:[#allocation2 + $0x50] sm:$0xf] %v1350
  %1376 = vst [vmem:[#allocation2 + $0x54] sm:$0xf] %v1351
  %1377 = vst [vmem:[#allocation2 + $0x58] sm:$0xf] %v1352
  %1378 = vst [vmem:[#allocation2 + $0x5c] sm:$0xf] %v1353
  %1379 = vst [vmem:[#allocation2 + $0x60] sm:$0xf] %v1354
  %v1380 = vld [vmem:[#allocation2] sm:$0xff]
  %v1381 = vld [vmem:[#allocation2 + $0x8] sm:$0xff]
  %v1382 = vld [vmem:[#allocation2 + $0x10] sm:$0xff]
  %v1383 = vld [vmem:[#allocation2 + $0x18] sm:$0xff]
  %v1384 = vld [vmem:[#allocation2 + $0x20] sm:$0xff]
  %v1385 = vld [vmem:[#allocation2 + $0x28] sm:$0xff]
  %v1386 = vld [vmem:[#allocation2 + $0x30] sm:$0xff]
  %v1387 = vld [vmem:[#allocation2 + $0x38] sm:$0xff]
  %v1388 = vld [vmem:[#allocation2 + $0x40] sm:$0xff]
  %v1389 = vld [vmem:[#allocation2 + $0x48] sm:$0xff]
  %v1390 = vld [vmem:[#allocation2 + $0x50] sm:$0xff]
  %v1391 = vld [vmem:[#allocation2 + $0x58] sm:$0xff]
  %v1392 = vld [vmem:[#allocation2 + $0x60] sm:$0xf]
  %v1393 = vld [vmem:[%s5] sm:$0xf]
  %v1394 = vld [vmem:[%s5 + $0x4] sm:$0xf]
  %v1395 = vld [vmem:[%s5 + $0x8] sm:$0xf]
  %v1396 = vld [vmem:[%s5 + $0xc] sm:$0xf]
  %v1397 = vld [vmem:[%s5 + $0x10] sm:$0xf]
  %v1398 = vld [vmem:[%s5 + $0x14] sm:$0xf]
  %v1399 = vld [vmem:[%s5 + $0x18] sm:$0xf]
  %v1400 = vld [vmem:[%s5 + $0x1c] sm:$0xf]
  %v1401 = vld [vmem:[%s5 + $0x20] sm:$0xf]
  %v1402 = vld [vmem:[%s5 + $0x24] sm:$0xf]
  %v1403 = vld [vmem:[%s5 + $0x28] sm:$0xf]
  %v1404 = vld [vmem:[%s5 + $0x2c] sm:$0xf]
  %v1405 = vld [vmem:[%s5 + $0x30] sm:$0xf]
  %v1406 = vld [vmem:[%s5 + $0x34] sm:$0xf]
  %v1407 = vld [vmem:[%s5 + $0x38] sm:$0xf]
  %v1408 = vld [vmem:[%s5 + $0x3c] sm:$0xf]
  %v1409 = vld [vmem:[%s5 + $0x40] sm:$0xf]
  %v1410 = vld [vmem:[%s5 + $0x44] sm:$0xf]
  %v1411 = vld [vmem:[%s5 + $0x48] sm:$0xf]
  %v1412 = vld [vmem:[%s5 + $0x4c] sm:$0xf]
  %v1413 = vld [vmem:[%s5 + $0x50] sm:$0xf]
  %v1414 = vld [vmem:[%s5 + $0x54] sm:$0xf]
  %v1415 = vld [vmem:[%s5 + $0x58] sm:$0xf]
  %v1416 = vld [vmem:[%s5 + $0x5c] sm:$0xf]
  %v1417 = vld [vmem:[%s5 + $0x60] sm:$0xf]
  %v1418 = vld [vmem:[%s5 + $0x64] sm:$0xf]
  %v1419 = vld [vmem:[%s5 + $0x68] sm:$0xf]
  %v1420 = vld [vmem:[%s5 + $0x6c] sm:$0xf]
  %v1421 = vld [vmem:[%s5 + $0x70] sm:$0xf]
  %v1422 = vld [vmem:[%s5 + $0x74] sm:$0xf]
  %v1423 = vld [vmem:[%s5 + $0x78] sm:$0xf]
  %v1424 = vld [vmem:[%s5 + $0x7c] sm:$0xf]
  %v1425 = vld [vmem:[%s5 + $0x80] sm:$0xf]
  %v1426 = vld [vmem:[%s5 + $0x84] sm:$0xf]
  %v1427 = vld [vmem:[%s5 + $0x88] sm:$0xf]
  %v1428 = vld [vmem:[%s5 + $0x8c] sm:$0xf]
  %v1429 = vld [vmem:[%s5 + $0x90] sm:$0xf]
  %v1430 = vld [vmem:[%s5 + $0x94] sm:$0xf]
  %v1431 = vld [vmem:[%s5 + $0x98] sm:$0xf]
  %v1432 = vld [vmem:[%s5 + $0x9c] sm:$0xf]
  %v1433 = vld [vmem:[%s5 + $0xa0] sm:$0xf]
  %v1434 = vld [vmem:[%s5 + $0xa4] sm:$0xf]
  %v1435 = vld [vmem:[%s5 + $0xa8] sm:$0xf]
  %v1436 = vld [vmem:[%s5 + $0xac] sm:$0xf]
  %v1437 = vld [vmem:[%s5 + $0xb0] sm:$0xf]
  %v1438 = vld [vmem:[%s5 + $0xb4] sm:$0xf]
  %v1439 = vld [vmem:[%s5 + $0xb8] sm:$0xf]
  %v1440 = vld [vmem:[%s5 + $0xbc] sm:$0xf]
  %v1441 = vld [vmem:[%s5 + $0xc0] sm:$0xf]
  %v1442 = vld [vmem:[%s5 + $0xc4] sm:$0xf]
  %v1443 = vld [vmem:[%s5 + $0xc8] sm:$0xf]
  %v1444 = vld [vmem:[%s5 + $0xcc] sm:$0xf]
  %v1445 = vld [vmem:[%s5 + $0xd0] sm:$0xf]
  %v1446 = vld [vmem:[%s5 + $0xd4] sm:$0xf]
  %v1447 = vld [vmem:[%s5 + $0xd8] sm:$0xf]
  %v1448 = vld [vmem:[%s5 + $0xdc] sm:$0xf]
  %v1449 = vld [vmem:[%s5 + $0xe0] sm:$0xf]
  %v1450 = vld [vmem:[%s5 + $0xe4] sm:$0xf]
  %v1451 = vld [vmem:[%s5 + $0xe8] sm:$0xf]
  %v1452 = vld [vmem:[%s5 + $0xec] sm:$0xf]
  %v1453 = vld [vmem:[%s5 + $0xf0] sm:$0xf]
  %v1454 = vld [vmem:[%s5 + $0xf4] sm:$0xf]
  %v1455 = vld [vmem:[%s5 + $0xf8] sm:$0xf]
  %v1456 = vld [vmem:[%s5 + $0xfc] sm:$0xf]
  %v1457 = vld [vmem:[%s5 + $0x100] sm:$0xf]
  %v1458 = vld [vmem:[%s5 + $0x104] sm:$0xf]
  %v1459 = vld [vmem:[%s5 + $0x108] sm:$0xf]
  %v1460 = vld [vmem:[%s5 + $0x10c] sm:$0xf]
  %v1461 = vld [vmem:[%s5 + $0x110] sm:$0xf]
  %v1462 = vld [vmem:[%s5 + $0x114] sm:$0xf]
  %v1463 = vld [vmem:[%s5 + $0x118] sm:$0xf]
  %v1464 = vld [vmem:[%s5 + $0x11c] sm:$0xf]
  %v1465 = vld [vmem:[%s5 + $0x120] sm:$0xf]
  %v1466 = vld [vmem:[%s5 + $0x124] sm:$0xf]
  %v1467 = vld [vmem:[%s5 + $0x128] sm:$0xf]
  %v1468 = vld [vmem:[%s5 + $0x12c] sm:$0xf]
  %v1469 = vld [vmem:[%s5 + $0x130] sm:$0xf]
  %v1470 = vld [vmem:[%s5 + $0x134] sm:$0xf]
  %v1471 = vld [vmem:[%s5 + $0x138] sm:$0xf]
  %v1472 = vld [vmem:[%s5 + $0x13c] sm:$0xf]
  %v1473 = vld [vmem:[%s5 + $0x140] sm:$0xf]
  %v1474 = vld [vmem:[%s5 + $0x144] sm:$0xf]
  %v1475 = vld [vmem:[%s5 + $0x148] sm:$0xf]
  %v1476 = vld [vmem:[%s5 + $0x14c] sm:$0xf]
  %v1477 = vld [vmem:[%s5 + $0x150] sm:$0xf]
  %v1478 = vld [vmem:[%s5 + $0x154] sm:$0xf]
  %v1479 = vld [vmem:[%s5 + $0x158] sm:$0xf]
  %v1480 = vld [vmem:[%s5 + $0x15c] sm:$0xf]
  %v1481 = vld [vmem:[%s5 + $0x160] sm:$0xf]
  %v1482 = vld [vmem:[%s5 + $0x164] sm:$0xf]
  %v1483 = vld [vmem:[%s5 + $0x168] sm:$0xf]
  %v1484 = vld [vmem:[%s5 + $0x16c] sm:$0xf]
  %v1485 = vld [vmem:[%s5 + $0x170] sm:$0xf]
  %v1486 = vld [vmem:[%s5 + $0x174] sm:$0xf]
  %v1487 = vld [vmem:[%s5 + $0x178] sm:$0xf]
  %v1488 = vld [vmem:[%s5 + $0x17c] sm:$0xf]
  %v1489 = vld [vmem:[%s5 + $0x180] sm:$0xf]
  %v1490 = vld [vmem:[%s5 + $0x184] sm:$0xf]
  %v1491 = vld [vmem:[%s5 + $0x188] sm:$0xf]
  %v1492 = vld [vmem:[%s5 + $0x18c] sm:$0xf]
  %v1493 = vld [vmem:[%s5 + $0x190] sm:$0xf]
  %v1494 = vld [vmem:[%s5 + $0x194] sm:$0xf]
  %v1495 = vld [vmem:[%s5 + $0x198] sm:$0xf]
  %v1496 = vld [vmem:[%s5 + $0x19c] sm:$0xf]
  %v1497 = vld [vmem:[%s5 + $0x1a0] sm:$0xf]
  %v1498 = vld [vmem:[%s5 + $0x1a4] sm:$0xf]
  %v1499 = vld [vmem:[%s5 + $0x1a8] sm:$0xf]
  %v1500 = vld [vmem:[%s5 + $0x1ac] sm:$0xf]
  %v1501 = vld [vmem:[%s5 + $0x1b0] sm:$0xf]
  %v1502 = vld [vmem:[%s5 + $0x1b4] sm:$0xf]
  %v1503 = vld [vmem:[%s5 + $0x1b8] sm:$0xf]
  %v1504 = vld [vmem:[%s5 + $0x1bc] sm:$0xf]
  %v1505 = vld [vmem:[%s5 + $0x1c0] sm:$0xf]
  %v1506 = vld [vmem:[%s5 + $0x1c4] sm:$0xf]
  %v1507 = vld [vmem:[%s5 + $0x1c8] sm:$0xf]
  %v1508 = vld [vmem:[%s5 + $0x1cc] sm:$0xf]
  %v1509 = vld [vmem:[%s5 + $0x1d0] sm:$0xf]
  %v1510 = vld [vmem:[%s5 + $0x1d4] sm:$0xf]
  %v1511 = vld [vmem:[%s5 + $0x1d8] sm:$0xf]
  %v1512 = vld [vmem:[%s5 + $0x1dc] sm:$0xf]
  %v1513 = vld [vmem:[%s5 + $0x1e0] sm:$0xf]
  %v1514 = vld [vmem:[%s5 + $0x1e4] sm:$0xf]
  %v1515 = vld [vmem:[%s5 + $0x1e8] sm:$0xf]
  %v1516 = vld [vmem:[%s5 + $0x1ec] sm:$0xf]
  %v1517 = vld [vmem:[%s5 + $0x1f0] sm:$0xf]
  %v1518 = vld [vmem:[%s5 + $0x1f4] sm:$0xf]
  %v1519 = vld [vmem:[%s5 + $0x1f8] sm:$0xf]
  %v1520 = vld [vmem:[%s5 + $0x1fc] sm:$0xf]
  %v1521 = vld [vmem:[%s5 + $0x200] sm:$0xf]
  %v1522 = vld [vmem:[%s5 + $0x204] sm:$0xf]
  %v1523 = vld [vmem:[%s5 + $0x208] sm:$0xf]
  %v1524 = vld [vmem:[%s5 + $0x20c] sm:$0xf]
  %v1525 = vld [vmem:[%s5 + $0x210] sm:$0xf]
  %v1526 = vld [vmem:[%s5 + $0x214] sm:$0xf]
  %v1527 = vld [vmem:[%s5 + $0x218] sm:$0xf]
  %v1528 = vld [vmem:[%s5 + $0x21c] sm:$0xf]
  %v1529 = vld [vmem:[%s5 + $0x220] sm:$0xf]
  %v1530 = vld [vmem:[%s5 + $0x224] sm:$0xf]
  %v1531 = vld [vmem:[%s5 + $0x228] sm:$0xf]
  %v1532 = vld [vmem:[%s5 + $0x22c] sm:$0xf]
  %v1533 = vld [vmem:[%s5 + $0x230] sm:$0xf]
  %v1534 = vld [vmem:[%s5 + $0x234] sm:$0xf]
  %v1535 = vld [vmem:[%s5 + $0x238] sm:$0xf]
  %v1536 = vld [vmem:[%s5 + $0x23c] sm:$0xf]
  %v1537 = vld [vmem:[%s5 + $0x240] sm:$0xf]
  %v1538 = vld [vmem:[%s5 + $0x244] sm:$0xf]
  %v1539 = vld [vmem:[%s5 + $0x248] sm:$0xf]
  %v1540 = vld [vmem:[%s5 + $0x24c] sm:$0xf]
  %v1541 = vld [vmem:[%s5 + $0x250] sm:$0xf]
  %v1542 = vld [vmem:[%s5 + $0x254] sm:$0xf]
  %v1543 = vld [vmem:[%s5 + $0x258] sm:$0xf]
  %v1544 = vld [vmem:[%s5 + $0x25c] sm:$0xf]
  %v1545 = vld [vmem:[%s5 + $0x260] sm:$0xf]
  %v1546 = vld [vmem:[%s5 + $0x264] sm:$0xf]
  %v1547 = vld [vmem:[%s5 + $0x268] sm:$0xf]
  %v1548 = vld [vmem:[%s5 + $0x26c] sm:$0xf]
  %v1549 = vld [vmem:[%s5 + $0x270] sm:$0xf]
  %v1550 = vld [vmem:[%s5 + $0x274] sm:$0xf]
  %v1551 = vld [vmem:[%s5 + $0x278] sm:$0xf]
  %v1552 = vld [vmem:[%s5 + $0x27c] sm:$0xf]
  %v1553 = vld [vmem:[%s5 + $0x280] sm:$0xf]
  %v1554 = vld [vmem:[%s5 + $0x284] sm:$0xf]
  %v1555 = vld [vmem:[%s5 + $0x288] sm:$0xf]
  %v1556 = vld [vmem:[%s5 + $0x28c] sm:$0xf]
  %v1557 = vld [vmem:[%s5 + $0x290] sm:$0xf]
  %v1558 = vld [vmem:[%s5 + $0x294] sm:$0xf]
  %v1559 = vld [vmem:[%s5 + $0x298] sm:$0xf]
  %v1560 = vld [vmem:[%s5 + $0x29c] sm:$0xf]
  %v1561 = vld [vmem:[%s5 + $0x2a0] sm:$0xf]
  %v1562 = vld [vmem:[%s5 + $0x2a4] sm:$0xf]
  %v1563 = vld [vmem:[%s5 + $0x2a8] sm:$0xf]
  %v1564 = vld [vmem:[%s5 + $0x2ac] sm:$0xf]
  %v1565 = vld [vmem:[%s5 + $0x2b0] sm:$0xf]
  %v1566 = vld [vmem:[%s5 + $0x2b4] sm:$0xf]
  %v1567 = vld [vmem:[%s5 + $0x2b8] sm:$0xf]
  %v1568 = vld [vmem:[%s5 + $0x2bc] sm:$0xf]
  %v1569 = vld [vmem:[%s5 + $0x2c0] sm:$0xf]
  %v1570 = vld [vmem:[%s5 + $0x2c4] sm:$0xf]
  %v1571 = vld [vmem:[%s5 + $0x2c8] sm:$0xf]
  %v1572 = vld [vmem:[%s5 + $0x2cc] sm:$0xf]
  %v1573 = vld [vmem:[%s5 + $0x2d0] sm:$0xf]
  %v1574 = vld [vmem:[%s5 + $0x2d4] sm:$0xf]
  %v1575 = vld [vmem:[%s5 + $0x2d8] sm:$0xf]
  %v1576 = vld [vmem:[%s5 + $0x2dc] sm:$0xf]
  %v1577 = vld [vmem:[%s5 + $0x2e0] sm:$0xf]
  %v1578 = vld [vmem:[%s5 + $0x2e4] sm:$0xf]
  %v1579 = vld [vmem:[%s5 + $0x2e8] sm:$0xf]
  %v1580 = vld [vmem:[%s5 + $0x2ec] sm:$0xf]
  %v1581 = vld [vmem:[%s5 + $0x2f0] sm:$0xf]
  %v1582 = vld [vmem:[%s5 + $0x2f4] sm:$0xf]
  %v1583 = vld [vmem:[%s5 + $0x2f8] sm:$0xf]
  %v1584 = vld [vmem:[%s5 + $0x2fc] sm:$0xf]
  %v1585 = vld [vmem:[%s5 + $0x300] sm:$0xf]
  %v1586 = vld [vmem:[%s5 + $0x304] sm:$0xf]
  %v1587 = vld [vmem:[%s5 + $0x308] sm:$0xf]
  %v1588 = vld [vmem:[%s5 + $0x30c] sm:$0xf]
  %v1589 = vld [vmem:[%s5 + $0x310] sm:$0xf]
  %v1590 = vld [vmem:[%s5 + $0x314] sm:$0xf]
  %v1591 = vld [vmem:[%s5 + $0x318] sm:$0xf]
  %v1592 = vld [vmem:[%s5 + $0x31c] sm:$0xf]
  %v1593 = vld [vmem:[%s5 + $0x320] sm:$0xf]
  %v1594 = vld [vmem:[%s5 + $0x324] sm:$0xf]
  %v1595 = vld [vmem:[%s5 + $0x328] sm:$0xf]
  %v1596 = vld [vmem:[%s5 + $0x32c] sm:$0xf]
  %v1597 = vld [vmem:[%s5 + $0x330] sm:$0xf]
  %v1598 = vld [vmem:[%s5 + $0x334] sm:$0xf]
  %v1599 = vld [vmem:[%s5 + $0x338] sm:$0xf]
  %v1600 = vld [vmem:[%s5 + $0x33c] sm:$0xf]
  %v1601 = vld [vmem:[%s5 + $0x340] sm:$0xf]
  %v1602 = vld [vmem:[%s5 + $0x344] sm:$0xf]
  %v1603 = vld [vmem:[%s5 + $0x348] sm:$0xf]
  %v1604 = vld [vmem:[%s5 + $0x34c] sm:$0xf]
  %v1605 = vld [vmem:[%s5 + $0x350] sm:$0xf]
  %v1606 = vld [vmem:[%s5 + $0x354] sm:$0xf]
  %v1607 = vld [vmem:[%s5 + $0x358] sm:$0xf]
  %v1608 = vld [vmem:[%s5 + $0x35c] sm:$0xf]
  %v1609 = vld [vmem:[%s5 + $0x360] sm:$0xf]
  %v1610 = vld [vmem:[%s5 + $0x364] sm:$0xf]
  %v1611 = vld [vmem:[%s5 + $0x368] sm:$0xf]
  %v1612 = vld [vmem:[%s5 + $0x36c] sm:$0xf]
  %v1613 = vld [vmem:[%s5 + $0x370] sm:$0xf]
  %v1614 = vld [vmem:[%s5 + $0x374] sm:$0xf]
  %v1615 = vld [vmem:[%s5 + $0x378] sm:$0xf]
  %v1616 = vld [vmem:[%s5 + $0x37c] sm:$0xf]
  %v1617 = vld [vmem:[%s5 + $0x380] sm:$0xf]
  %v1618 = vld [vmem:[%s5 + $0x384] sm:$0xf]
  %v1619 = vld [vmem:[%s5 + $0x388] sm:$0xf]
  %v1620 = vld [vmem:[%s5 + $0x38c] sm:$0xf]
  %v1621 = vld [vmem:[%s5 + $0x390] sm:$0xf]
  %v1622 = vld [vmem:[%s5 + $0x394] sm:$0xf]
  %v1623 = vld [vmem:[%s5 + $0x398] sm:$0xf]
  %v1624 = vld [vmem:[%s5 + $0x39c] sm:$0xf]
  %v1625 = vld [vmem:[%s5 + $0x3a0] sm:$0xf]
  %v1626 = vld [vmem:[%s5 + $0x3a4] sm:$0xf]
  %v1627 = vld [vmem:[%s5 + $0x3a8] sm:$0xf]
  %v1628 = vld [vmem:[%s5 + $0x3ac] sm:$0xf]
  %v1629 = vld [vmem:[%s5 + $0x3b0] sm:$0xf]
  %v1630 = vld [vmem:[%s5 + $0x3b4] sm:$0xf]
  %v1631 = vld [vmem:[%s5 + $0x3b8] sm:$0xf]
  %v1632 = vld [vmem:[%s5 + $0x3bc] sm:$0xf]
  %v1633 = vld [vmem:[%s5 + $0x3c0] sm:$0xf]
  %v1634 = vld [vmem:[%s5 + $0x3c4] sm:$0xf]
  %v1635 = vld [vmem:[%s5 + $0x3c8] sm:$0xf]
  %v1636 = vld [vmem:[%s5 + $0x3cc] sm:$0xf]
  %v1637 = vld [vmem:[%s5 + $0x3d0] sm:$0xf]
  %v1638 = vld [vmem:[%s5 + $0x3d4] sm:$0xf]
  %v1639 = vld [vmem:[%s5 + $0x3d8] sm:$0xf]
  %v1640 = vld [vmem:[%s5 + $0x3dc] sm:$0xf]
  %v1641 = vld [vmem:[%s5 + $0x3e0] sm:$0xf]
  %v1642 = vld [vmem:[%s5 + $0x3e4] sm:$0xf]
  %v1643 = vld [vmem:[%s5 + $0x3e8] sm:$0xf]
  %v1644 = vld [vmem:[%s5 + $0x3ec] sm:$0xf]
  %v1645 = vld [vmem:[%s5 + $0x3f0] sm:$0xf]
  %v1646 = vld [vmem:[%s5 + $0x3f4] sm:$0xf]
  %v1647 = vld [vmem:[%s5 + $0x3f8] sm:$0xf]
  %v1648 = vld [vmem:[%s5 + $0x3fc] sm:$0xf]
  %v1649 = vld [vmem:[%s5 + $0x400] sm:$0xf]
  %v1650 = vld [vmem:[%s5 + $0x404] sm:$0xf]
  %v1651 = vld [vmem:[%s5 + $0x408] sm:$0xf]
  %v1652 = vld [vmem:[%s5 + $0x40c] sm:$0xf]
  %v1653 = vld [vmem:[%s5 + $0x410] sm:$0xf]
  %v1654 = vld [vmem:[%s5 + $0x414] sm:$0xf]
  %v1655 = vld [vmem:[%s5 + $0x418] sm:$0xf]
  %v1656 = vld [vmem:[%s5 + $0x41c] sm:$0xf]
  %v1657 = vld [vmem:[%s5 + $0x420] sm:$0xf]
  %v1658 = vld [vmem:[%s5 + $0x424] sm:$0xf]
  %v1659 = vld [vmem:[%s5 + $0x428] sm:$0xf]
  %v1660 = vld [vmem:[%s5 + $0x42c] sm:$0xf]
  %v1661 = vld [vmem:[%s5 + $0x430] sm:$0xf]
  %v1662 = vld [vmem:[%s5 + $0x434] sm:$0xf]
  %v1663 = vld [vmem:[%s5 + $0x438] sm:$0xf]
  %v1664 = vld [vmem:[%s5 + $0x43c] sm:$0xf]
  %v1665 = vld [vmem:[%s5 + $0x440] sm:$0xf]
  %v1666 = vld [vmem:[%s5 + $0x444] sm:$0xf]
  %v1667 = vld [vmem:[%s5 + $0x448] sm:$0xf]
  %v1668 = vld [vmem:[%s5 + $0x44c] sm:$0xf]
  %v1669 = vld [vmem:[%s5 + $0x450] sm:$0xf]
  %v1670 = vld [vmem:[%s5 + $0x454] sm:$0xf]
  %v1671 = vld [vmem:[%s5 + $0x458] sm:$0xf]
  %v1672 = vld [vmem:[%s5 + $0x45c] sm:$0xf]
  %v1673 = vld [vmem:[%s5 + $0x460] sm:$0xf]
  %v1674 = vld [vmem:[%s5 + $0x464] sm:$0xf]
  %v1675 = vld [vmem:[%s5 + $0x468] sm:$0xf]
  %v1676 = vld [vmem:[%s5 + $0x46c] sm:$0xf]
  %v1677 = vld [vmem:[%s5 + $0x470] sm:$0xf]
  %v1678 = vld [vmem:[%s5 + $0x474] sm:$0xf]
  %v1679 = vld [vmem:[%s5 + $0x478] sm:$0xf]
  %v1680 = vld [vmem:[%s5 + $0x47c] sm:$0xf]
  %v1681 = vld [vmem:[%s5 + $0x480] sm:$0xf]
  %v1682 = vld [vmem:[%s5 + $0x484] sm:$0xf]
  %v1683 = vld [vmem:[%s5 + $0x488] sm:$0xf]
  %v1684 = vld [vmem:[%s5 + $0x48c] sm:$0xf]
  %v1685 = vld [vmem:[%s5 + $0x490] sm:$0xf]
  %v1686 = vld [vmem:[%s5 + $0x494] sm:$0xf]
  %v1687 = vld [vmem:[%s5 + $0x498] sm:$0xf]
  %v1688 = vld [vmem:[%s5 + $0x49c] sm:$0xf]
  %v1689 = vld [vmem:[%s5 + $0x4a0] sm:$0xf]
  %v1690 = vld [vmem:[%s5 + $0x4a4] sm:$0xf]
  %v1691 = vld [vmem:[%s5 + $0x4a8] sm:$0xf]
  %v1692 = vld [vmem:[%s5 + $0x4ac] sm:$0xf]
  %v1693 = vld [vmem:[%s5 + $0x4b0] sm:$0xf]
  %v1694 = vld [vmem:[%s5 + $0x4b4] sm:$0xf]
  %v1695 = vld [vmem:[%s5 + $0x4b8] sm:$0xf]
  %v1696 = vld [vmem:[%s5 + $0x4bc] sm:$0xf]
  %v1697 = vld [vmem:[%s5 + $0x4c0] sm:$0xf]
  %v1698 = vld [vmem:[%s5 + $0x4c4] sm:$0xf]
  %v1699 = vld [vmem:[%s5 + $0x4c8] sm:$0xf]
  %v1700 = vld [vmem:[%s5 + $0x4cc] sm:$0xf]
  %v1701 = vld [vmem:[%s5 + $0x4d0] sm:$0xf]
  %v1702 = vld [vmem:[%s5 + $0x4d4] sm:$0xf]
  %v1703 = vld [vmem:[%s5 + $0x4d8] sm:$0xf]
  %v1704 = vld [vmem:[%s5 + $0x4dc] sm:$0xf]
  %v1705 = vld [vmem:[%s5 + $0x4e0] sm:$0xf]
  %v1706 = vld [vmem:[%s5 + $0x4e4] sm:$0xf]
  %v1707 = vld [vmem:[%s5 + $0x4e8] sm:$0xf]
  %v1708 = vld [vmem:[%s5 + $0x4ec] sm:$0xf]
  %v1709 = vld [vmem:[%s5 + $0x4f0] sm:$0xf]
  %v1710 = vld [vmem:[%s5 + $0x4f4] sm:$0xf]
  %v1711 = vld [vmem:[%s5 + $0x4f8] sm:$0xf]
  %v1712 = vld [vmem:[%s5 + $0x4fc] sm:$0xf]
  %v1713 = vld [vmem:[%s5 + $0x500] sm:$0xf]
  %v1714 = vld [vmem:[%s5 + $0x504] sm:$0xf]
  %v1715 = vld [vmem:[%s5 + $0x508] sm:$0xf]
  %v1716 = vld [vmem:[%s5 + $0x50c] sm:$0xf]
  %v1717 = vld [vmem:[%s5 + $0x510] sm:$0xf]
  %v1718 = vld [vmem:[%s5 + $0x514] sm:$0xf]
  %v1719 = vld [vmem:[%s5 + $0x518] sm:$0xf]
  %v1720 = vld [vmem:[%s5 + $0x51c] sm:$0xf]
  %v1721 = vld [vmem:[%s5 + $0x520] sm:$0xf]
  %v1722 = vld [vmem:[%s5 + $0x524] sm:$0xf]
  %v1723 = vld [vmem:[%s5 + $0x528] sm:$0xf]
  %v1724 = vld [vmem:[%s5 + $0x52c] sm:$0xf]
  %v1725 = vld [vmem:[%s5 + $0x530] sm:$0xf]
  %v1726 = vld [vmem:[%s5 + $0x534] sm:$0xf]
  %v1727 = vld [vmem:[%s5 + $0x538] sm:$0xf]
  %v1728 = vld [vmem:[%s5 + $0x53c] sm:$0xf]
  %v1729 = vld [vmem:[%s5 + $0x540] sm:$0xf]
  %v1730 = vld [vmem:[%s5 + $0x544] sm:$0xf]
  %v1731 = vld [vmem:[%s5 + $0x548] sm:$0xf]
  %v1732 = vld [vmem:[%s5 + $0x54c] sm:$0xf]
  %v1733 = vld [vmem:[%s5 + $0x550] sm:$0xf]
  %v1734 = vld [vmem:[%s5 + $0x554] sm:$0xf]
  %v1735 = vld [vmem:[%s5 + $0x558] sm:$0xf]
  %v1736 = vld [vmem:[%s5 + $0x55c] sm:$0xf]
  %v1737 = vld [vmem:[%s5 + $0x560] sm:$0xf]
  %v1738 = vld [vmem:[%s5 + $0x564] sm:$0xf]
  %v1739 = vld [vmem:[%s5 + $0x568] sm:$0xf]
  %v1740 = vld [vmem:[%s5 + $0x56c] sm:$0xf]
  %v1741 = vld [vmem:[%s5 + $0x570] sm:$0xf]
  %v1742 = vld [vmem:[%s5 + $0x574] sm:$0xf]
  %v1743 = vld [vmem:[%s5 + $0x578] sm:$0xf]
  %v1744 = vld [vmem:[%s5 + $0x57c] sm:$0xf]
  %v1745 = vld [vmem:[%s5 + $0x580] sm:$0xf]
  %v1746 = vld [vmem:[%s5 + $0x584] sm:$0xf]
  %v1747 = vld [vmem:[%s5 + $0x588] sm:$0xf]
  %v1748 = vld [vmem:[%s5 + $0x58c] sm:$0xf]
  %v1749 = vld [vmem:[%s5 + $0x590] sm:$0xf]
  %v1750 = vld [vmem:[%s5 + $0x594] sm:$0xf]
  %v1751 = vld [vmem:[%s5 + $0x598] sm:$0xf]
  %v1752 = vld [vmem:[%s5 + $0x59c] sm:$0xf]
  %v1753 = vld [vmem:[%s5 + $0x5a0] sm:$0xf]
  %v1754 = vld [vmem:[%s5 + $0x5a4] sm:$0xf]
  %v1755 = vld [vmem:[%s5 + $0x5a8] sm:$0xf]
  %v1756 = vld [vmem:[%s5 + $0x5ac] sm:$0xf]
  %v1757 = vld [vmem:[%s5 + $0x5b0] sm:$0xf]
  %v1758 = vld [vmem:[%s5 + $0x5b4] sm:$0xf]
  %v1759 = vld [vmem:[%s5 + $0x5b8] sm:$0xf]
  %v1760 = vld [vmem:[%s5 + $0x5bc] sm:$0xf]
  %v1761 = vld [vmem:[%s5 + $0x5c0] sm:$0xf]
  %v1762 = vld [vmem:[%s5 + $0x5c4] sm:$0xf]
  %v1763 = vld [vmem:[%s5 + $0x5c8] sm:$0xf]
  %v1764 = vld [vmem:[%s5 + $0x5cc] sm:$0xf]
  %v1765 = vld [vmem:[%s5 + $0x5d0] sm:$0xf]
  %v1766 = vld [vmem:[%s5 + $0x5d4] sm:$0xf]
  %v1767 = vld [vmem:[%s5 + $0x5d8] sm:$0xf]
  %v1768 = vld [vmem:[%s5 + $0x5dc] sm:$0xf]
  %v1769 = vld [vmem:[%s5 + $0x5e0] sm:$0xf]
  %v1770 = vld [vmem:[%s5 + $0x5e4] sm:$0xf]
  %v1771 = vld [vmem:[%s5 + $0x5e8] sm:$0xf]
  %v1772 = vld [vmem:[%s5 + $0x5ec] sm:$0xf]
  %v1773 = vld [vmem:[%s5 + $0x5f0] sm:$0xf]
  %v1774 = vld [vmem:[%s5 + $0x5f4] sm:$0xf]
  %v1775 = vld [vmem:[%s5 + $0x5f8] sm:$0xf]
  %v1776 = vld [vmem:[%s5 + $0x5fc] sm:$0xf]
  %v1777 = vld [vmem:[%s5 + $0x600] sm:$0xf]
  %v1778 = vld [vmem:[%s5 + $0x604] sm:$0xf]
  %v1779 = vld [vmem:[%s5 + $0x608] sm:$0xf]
  %v1780 = vld [vmem:[%s5 + $0x60c] sm:$0xf]
  %v1781 = vld [vmem:[%s5 + $0x610] sm:$0xf]
  %v1782 = vld [vmem:[%s5 + $0x614] sm:$0xf]
  %v1783 = vld [vmem:[%s5 + $0x618] sm:$0xf]
  %v1784 = vld [vmem:[%s5 + $0x61c] sm:$0xf]
  %v1785 = vld [vmem:[%s5 + $0x620] sm:$0xf]
  %v1786 = vld [vmem:[%s5 + $0x624] sm:$0xf]
  %v1787 = vld [vmem:[%s5 + $0x628] sm:$0xf]
  %v1788 = vld [vmem:[%s5 + $0x62c] sm:$0xf]
  %v1789 = vld [vmem:[%s5 + $0x630] sm:$0xf]
  %v1790 = vld [vmem:[%s5 + $0x634] sm:$0xf]
  %v1791 = vld [vmem:[%s5 + $0x638] sm:$0xf]
  %v1792 = vld [vmem:[%s5 + $0x63c] sm:$0xf]
  %v1793 = vld [vmem:[%s6] sm:$0x1]
  %v1795 = vperm.slane %v1793, 0
  %v1810 = vunpack.c.l.b16 %v1380
  %v1811 = vunpack.c.h.b16 %v1380
  %v1812 = vunpack.c.l.b16 %v1381
  %v1813 = vunpack.c.h.b16 %v1381
  %v1814 = vunpack.c.l.b16 %v1382
  %v1815 = vunpack.c.h.b16 %v1382
  %v1816 = vunpack.c.l.b16 %v1383
  %v1817 = vunpack.c.h.b16 %v1383
  %v1818 = vunpack.c.l.b16 %v1384
  %v1819 = vunpack.c.h.b16 %v1384
  %v1820 = vunpack.c.l.b16 %v1385
  %v1821 = vunpack.c.h.b16 %v1385
  %v1822 = vunpack.c.l.b16 %v1386
  %v1823 = vunpack.c.h.b16 %v1386
  %v1824 = vunpack.c.l.b16 %v1387
  %v1825 = vunpack.c.h.b16 %v1387
  %v1826 = vunpack.c.l.b16 %v1388
  %v1827 = vunpack.c.h.b16 %v1388
  %v1828 = vunpack.c.l.b16 %v1389
  %v1829 = vunpack.c.h.b16 %v1389
  %v1830 = vunpack.c.l.b16 %v1390
  %v1831 = vunpack.c.h.b16 %v1390
  %v1832 = vunpack.c.l.b16 %v1391
  %v1833 = vunpack.c.h.b16 %v1391
  %v1834 = vunpack.c.l.b16 %v1392
  %v1835 = vpack.c.b16 %v1810, %v1810
  %v1836 = vpack.c.b16 %v1811, %v1811
  %v1837 = vpack.c.b16 %v1812, %v1812
  %v1838 = vpack.c.b16 %v1813, %v1813
  %v1839 = vpack.c.b16 %v1814, %v1814
  %v1840 = vpack.c.b16 %v1815, %v1815
  %v1841 = vpack.c.b16 %v1816, %v1816
  %v1842 = vpack.c.b16 %v1817, %v1817
  %v1843 = vpack.c.b16 %v1818, %v1818
  %v1844 = vpack.c.b16 %v1819, %v1819
  %v1845 = vpack.c.b16 %v1820, %v1820
  %v1846 = vpack.c.b16 %v1821, %v1821
  %v1847 = vpack.c.b16 %v1822, %v1822
  %v1848 = vpack.c.b16 %v1823, %v1823
  %v1849 = vpack.c.b16 %v1824, %v1824
  %v1850 = vpack.c.b16 %v1825, %v1825
  %v1851 = vpack.c.b16 %v1826, %v1826
  %v1852 = vpack.c.b16 %v1827, %v1827
  %v1853 = vpack.c.b16 %v1828, %v1828
  %v1854 = vpack.c.b16 %v1829, %v1829
  %v1855 = vpack.c.b16 %v1830, %v1830
  %v1856 = vpack.c.b16 %v1831, %v1831
  %v1857 = vpack.c.b16 %v1832, %v1832
  %v1858 = vpack.c.b16 %v1833, %v1833
  %v1859 = vpack.c.b16 %v1834, %v1834
  %v2285 = vunpack.c.l.b16 %v1393
  %v2286 = vunpack.c.l.b16 %v1394
  %v2287 = vunpack.c.l.b16 %v1395
  %v2288 = vunpack.c.l.b16 %v1396
  %v2289 = vunpack.c.l.b16 %v1397
  %v2290 = vunpack.c.l.b16 %v1398
  %v2291 = vunpack.c.l.b16 %v1399
  %v2292 = vunpack.c.l.b16 %v1400
  %v2293 = vunpack.c.l.b16 %v1401
  %v2294 = vunpack.c.l.b16 %v1402
  %v2295 = vunpack.c.l.b16 %v1403
  %v2296 = vunpack.c.l.b16 %v1404
  %v2297 = vunpack.c.l.b16 %v1405
  %v2298 = vunpack.c.l.b16 %v1406
  %v2299 = vunpack.c.l.b16 %v1407
  %v2300 = vunpack.c.l.b16 %v1408
  %v2301 = vunpack.c.l.b16 %v1409
  %v2302 = vunpack.c.l.b16 %v1410
  %v2303 = vunpack.c.l.b16 %v1411
  %v2304 = vunpack.c.l.b16 %v1412
  %v2305 = vunpack.c.l.b16 %v1413
  %v2306 = vunpack.c.l.b16 %v1414
  %v2307 = vunpack.c.l.b16 %v1415
  %v2308 = vunpack.c.l.b16 %v1416
  %v2309 = vunpack.c.l.b16 %v1417
  %v2310 = vunpack.c.l.b16 %v1418
  %v2311 = vunpack.c.l.b16 %v1419
  %v2312 = vunpack.c.l.b16 %v1420
  %v2313 = vunpack.c.l.b16 %v1421
  %v2314 = vunpack.c.l.b16 %v1422
  %v2315 = vunpack.c.l.b16 %v1423
  %v2316 = vunpack.c.l.b16 %v1424
  %v2317 = vunpack.c.l.b16 %v1425
  %v2318 = vunpack.c.l.b16 %v1426
  %v2319 = vunpack.c.l.b16 %v1427
  %v2320 = vunpack.c.l.b16 %v1428
  %v2321 = vunpack.c.l.b16 %v1429
  %v2322 = vunpack.c.l.b16 %v1430
  %v2323 = vunpack.c.l.b16 %v1431
  %v2324 = vunpack.c.l.b16 %v1432
  %v2325 = vunpack.c.l.b16 %v1433
  %v2326 = vunpack.c.l.b16 %v1434
  %v2327 = vunpack.c.l.b16 %v1435
  %v2328 = vunpack.c.l.b16 %v1436
  %v2329 = vunpack.c.l.b16 %v1437
  %v2330 = vunpack.c.l.b16 %v1438
  %v2331 = vunpack.c.l.b16 %v1439
  %v2332 = vunpack.c.l.b16 %v1440
  %v2333 = vunpack.c.l.b16 %v1441
  %v2334 = vunpack.c.l.b16 %v1442
  %v2335 = vunpack.c.l.b16 %v1443
  %v2336 = vunpack.c.l.b16 %v1444
  %v2337 = vunpack.c.l.b16 %v1445
  %v2338 = vunpack.c.l.b16 %v1446
  %v2339 = vunpack.c.l.b16 %v1447
  %v2340 = vunpack.c.l.b16 %v1448
  %v2341 = vunpack.c.l.b16 %v1449
  %v2342 = vunpack.c.l.b16 %v1450
  %v2343 = vunpack.c.l.b16 %v1451
  %v2344 = vunpack.c.l.b16 %v1452
  %v2345 = vunpack.c.l.b16 %v1453
  %v2346 = vunpack.c.l.b16 %v1454
  %v2347 = vunpack.c.l.b16 %v1455
  %v2348 = vunpack.c.l.b16 %v1456
  %v2349 = vunpack.c.l.b16 %v1457
  %v2350 = vunpack.c.l.b16 %v1458
  %v2351 = vunpack.c.l.b16 %v1459
  %v2352 = vunpack.c.l.b16 %v1460
  %v2353 = vunpack.c.l.b16 %v1461
  %v2354 = vunpack.c.l.b16 %v1462
  %v2355 = vunpack.c.l.b16 %v1463
  %v2356 = vunpack.c.l.b16 %v1464
  %v2357 = vunpack.c.l.b16 %v1465
  %v2358 = vunpack.c.l.b16 %v1466
  %v2359 = vunpack.c.l.b16 %v1467
  %v2360 = vunpack.c.l.b16 %v1468
  %v2361 = vunpack.c.l.b16 %v1469
  %v2362 = vunpack.c.l.b16 %v1470
  %v2363 = vunpack.c.l.b16 %v1471
  %v2364 = vunpack.c.l.b16 %v1472
  %v2365 = vunpack.c.l.b16 %v1473
  %v2366 = vunpack.c.l.b16 %v1474
  %v2367 = vunpack.c.l.b16 %v1475
  %v2368 = vunpack.c.l.b16 %v1476
  %v2369 = vunpack.c.l.b16 %v1477
  %v2370 = vunpack.c.l.b16 %v1478
  %v2371 = vunpack.c.l.b16 %v1479
  %v2372 = vunpack.c.l.b16 %v1480
  %v2373 = vunpack.c.l.b16 %v1481
  %v2374 = vunpack.c.l.b16 %v1482
  %v2375 = vunpack.c.l.b16 %v1483
  %v2376 = vunpack.c.l.b16 %v1484
  %v2377 = vunpack.c.l.b16 %v1485
  %v2378 = vunpack.c.l.b16 %v1486
  %v2379 = vunpack.c.l.b16 %v1487
  %v2380 = vunpack.c.l.b16 %v1488
  %v2381 = vunpack.c.l.b16 %v1489
  %v2382 = vunpack.c.l.b16 %v1490
  %v2383 = vunpack.c.l.b16 %v1491
  %v2384 = vunpack.c.l.b16 %v1492
  %v2385 = vunpack.c.l.b16 %v1493
  %v2386 = vunpack.c.l.b16 %v1494
  %v2387 = vunpack.c.l.b16 %v1495
  %v2388 = vunpack.c.l.b16 %v1496
  %v2389 = vunpack.c.l.b16 %v1497
  %v2390 = vunpack.c.l.b16 %v1498
  %v2391 = vunpack.c.l.b16 %v1499
  %v2392 = vunpack.c.l.b16 %v1500
  %v2393 = vunpack.c.l.b16 %v1501
  %v2394 = vunpack.c.l.b16 %v1502
  %v2395 = vunpack.c.l.b16 %v1503
  %v2396 = vunpack.c.l.b16 %v1504
  %v2397 = vunpack.c.l.b16 %v1505
  %v2398 = vunpack.c.l.b16 %v1506
  %v2399 = vunpack.c.l.b16 %v1507
  %v2400 = vunpack.c.l.b16 %v1508
  %v2401 = vunpack.c.l.b16 %v1509
  %v2402 = vunpack.c.l.b16 %v1510
  %v2403 = vunpack.c.l.b16 %v1511
  %v2404 = vunpack.c.l.b16 %v1512
  %v2405 = vunpack.c.l.b16 %v1513
  %v2406 = vunpack.c.l.b16 %v1514
  %v2407 = vunpack.c.l.b16 %v1515
  %v2408 = vunpack.c.l.b16 %v1516
  %v2409 = vunpack.c.l.b16 %v1517
  %v2410 = vunpack.c.l.b16 %v1518
  %v2411 = vunpack.c.l.b16 %v1519
  %v2412 = vunpack.c.l.b16 %v1520
  %v2413 = vunpack.c.l.b16 %v1521
  %v2414 = vunpack.c.l.b16 %v1522
  %v2415 = vunpack.c.l.b16 %v1523
  %v2416 = vunpack.c.l.b16 %v1524
  %v2417 = vunpack.c.l.b16 %v1525
  %v2418 = vunpack.c.l.b16 %v1526
  %v2419 = vunpack.c.l.b16 %v1527
  %v2420 = vunpack.c.l.b16 %v1528
  %v2421 = vunpack.c.l.b16 %v1529
  %v2422 = vunpack.c.l.b16 %v1530
  %v2423 = vunpack.c.l.b16 %v1531
  %v2424 = vunpack.c.l.b16 %v1532
  %v2425 = vunpack.c.l.b16 %v1533
  %v2426 = vunpack.c.l.b16 %v1534
  %v2427 = vunpack.c.l.b16 %v1535
  %v2428 = vunpack.c.l.b16 %v1536
  %v2429 = vunpack.c.l.b16 %v1537
  %v2430 = vunpack.c.l.b16 %v1538
  %v2431 = vunpack.c.l.b16 %v1539
  %v2432 = vunpack.c.l.b16 %v1540
  %v2433 = vunpack.c.l.b16 %v1541
  %v2434 = vunpack.c.l.b16 %v1542
  %v2435 = vunpack.c.l.b16 %v1543
  %v2436 = vunpack.c.l.b16 %v1544
  %v2437 = vunpack.c.l.b16 %v1545
  %v2438 = vunpack.c.l.b16 %v1546
  %v2439 = vunpack.c.l.b16 %v1547
  %v2440 = vunpack.c.l.b16 %v1548
  %v2441 = vunpack.c.l.b16 %v1549
  %v2442 = vunpack.c.l.b16 %v1550
  %v2443 = vunpack.c.l.b16 %v1551
  %v2444 = vunpack.c.l.b16 %v1552
  %v2445 = vunpack.c.l.b16 %v1553
  %v2446 = vunpack.c.l.b16 %v1554
  %v2447 = vunpack.c.l.b16 %v1555
  %v2448 = vunpack.c.l.b16 %v1556
  %v2449 = vunpack.c.l.b16 %v1557
  %v2450 = vunpack.c.l.b16 %v1558
  %v2451 = vunpack.c.l.b16 %v1559
  %v2452 = vunpack.c.l.b16 %v1560
  %v2453 = vunpack.c.l.b16 %v1561
  %v2454 = vunpack.c.l.b16 %v1562
  %v2455 = vunpack.c.l.b16 %v1563
  %v2456 = vunpack.c.l.b16 %v1564
  %v2457 = vunpack.c.l.b16 %v1565
  %v2458 = vunpack.c.l.b16 %v1566
  %v2459 = vunpack.c.l.b16 %v1567
  %v2460 = vunpack.c.l.b16 %v1568
  %v2461 = vunpack.c.l.b16 %v1569
  %v2462 = vunpack.c.l.b16 %v1570
  %v2463 = vunpack.c.l.b16 %v1571
  %v2464 = vunpack.c.l.b16 %v1572
  %v2465 = vunpack.c.l.b16 %v1573
  %v2466 = vunpack.c.l.b16 %v1574
  %v2467 = vunpack.c.l.b16 %v1575
  %v2468 = vunpack.c.l.b16 %v1576
  %v2469 = vunpack.c.l.b16 %v1577
  %v2470 = vunpack.c.l.b16 %v1578
  %v2471 = vunpack.c.l.b16 %v1579
  %v2472 = vunpack.c.l.b16 %v1580
  %v2473 = vunpack.c.l.b16 %v1581
  %v2474 = vunpack.c.l.b16 %v1582
  %v2475 = vunpack.c.l.b16 %v1583
  %v2476 = vunpack.c.l.b16 %v1584
  %v2477 = vunpack.c.l.b16 %v1585
  %v2478 = vunpack.c.l.b16 %v1586
  %v2479 = vunpack.c.l.b16 %v1587
  %v2480 = vunpack.c.l.b16 %v1588
  %v2481 = vunpack.c.l.b16 %v1589
  %v2482 = vunpack.c.l.b16 %v1590
  %v2483 = vunpack.c.l.b16 %v1591
  %v2484 = vunpack.c.l.b16 %v1592
  %v2485 = vunpack.c.l.b16 %v1593
  %v2486 = vunpack.c.l.b16 %v1594
  %v2487 = vunpack.c.l.b16 %v1595
  %v2488 = vunpack.c.l.b16 %v1596
  %v2489 = vunpack.c.l.b16 %v1597
  %v2490 = vunpack.c.l.b16 %v1598
  %v2491 = vunpack.c.l.b16 %v1599
  %v2492 = vunpack.c.l.b16 %v1600
  %v2493 = vunpack.c.l.b16 %v1601
  %v2494 = vunpack.c.l.b16 %v1602
  %v2495 = vunpack.c.l.b16 %v1603
  %v2496 = vunpack.c.l.b16 %v1604
  %v2497 = vunpack.c.l.b16 %v1605
  %v2498 = vunpack.c.l.b16 %v1606
  %v2499 = vunpack.c.l.b16 %v1607
  %v2500 = vunpack.c.l.b16 %v1608
  %v2501 = vunpack.c.l.b16 %v1609
  %v2502 = vunpack.c.l.b16 %v1610
  %v2503 = vunpack.c.l.b16 %v1611
  %v2504 = vunpack.c.l.b16 %v1612
  %v2505 = vunpack.c.l.b16 %v1613
  %v2506 = vunpack.c.l.b16 %v1614
  %v2507 = vunpack.c.l.b16 %v1615
  %v2508 = vunpack.c.l.b16 %v1616
  %v2509 = vunpack.c.l.b16 %v1617
  %v2510 = vunpack.c.l.b16 %v1618
  %v2511 = vunpack.c.l.b16 %v1619
  %v2512 = vunpack.c.l.b16 %v1620
  %v2513 = vunpack.c.l.b16 %v1621
  %v2514 = vunpack.c.l.b16 %v1622
  %v2515 = vunpack.c.l.b16 %v1623
  %v2516 = vunpack.c.l.b16 %v1624
  %v2517 = vunpack.c.l.b16 %v1625
  %v2518 = vunpack.c.l.b16 %v1626
  %v2519 = vunpack.c.l.b16 %v1627
  %v2520 = vunpack.c.l.b16 %v1628
  %v2521 = vunpack.c.l.b16 %v1629
  %v2522 = vunpack.c.l.b16 %v1630
  %v2523 = vunpack.c.l.b16 %v1631
  %v2524 = vunpack.c.l.b16 %v1632
  %v2525 = vunpack.c.l.b16 %v1633
  %v2526 = vunpack.c.l.b16 %v1634
  %v2527 = vunpack.c.l.b16 %v1635
  %v2528 = vunpack.c.l.b16 %v1636
  %v2529 = vunpack.c.l.b16 %v1637
  %v2530 = vunpack.c.l.b16 %v1638
  %v2531 = vunpack.c.l.b16 %v1639
  %v2532 = vunpack.c.l.b16 %v1640
  %v2533 = vunpack.c.l.b16 %v1641
  %v2534 = vunpack.c.l.b16 %v1642
  %v2535 = vunpack.c.l.b16 %v1643
  %v2536 = vunpack.c.l.b16 %v1644
  %v2537 = vunpack.c.l.b16 %v1645
  %v2538 = vunpack.c.l.b16 %v1646
  %v2539 = vunpack.c.l.b16 %v1647
  %v2540 = vunpack.c.l.b16 %v1648
  %v2541 = vunpack.c.l.b16 %v1649
  %v2542 = vunpack.c.l.b16 %v1650
  %v2543 = vunpack.c.l.b16 %v1651
  %v2544 = vunpack.c.l.b16 %v1652
  %v2545 = vunpack.c.l.b16 %v1653
  %v2546 = vunpack.c.l.b16 %v1654
  %v2547 = vunpack.c.l.b16 %v1655
  %v2548 = vunpack.c.l.b16 %v1656
  %v2549 = vunpack.c.l.b16 %v1657
  %v2550 = vunpack.c.l.b16 %v1658
  %v2551 = vunpack.c.l.b16 %v1659
  %v2552 = vunpack.c.l.b16 %v1660
  %v2553 = vunpack.c.l.b16 %v1661
  %v2554 = vunpack.c.l.b16 %v1662
  %v2555 = vunpack.c.l.b16 %v1663
  %v2556 = vunpack.c.l.b16 %v1664
  %v2557 = vunpack.c.l.b16 %v1665
  %v2558 = vunpack.c.l.b16 %v1666
  %v2559 = vunpack.c.l.b16 %v1667
  %v2560 = vunpack.c.l.b16 %v1668
  %v2561 = vunpack.c.l.b16 %v1669
  %v2562 = vunpack.c.l.b16 %v1670
  %v2563 = vunpack.c.l.b16 %v1671
  %v2564 = vunpack.c.l.b16 %v1672
  %v2565 = vunpack.c.l.b16 %v1673
  %v2566 = vunpack.c.l.b16 %v1674
  %v2567 = vunpack.c.l.b16 %v1675
  %v2568 = vunpack.c.l.b16 %v1676
  %v2569 = vunpack.c.l.b16 %v1677
  %v2570 = vunpack.c.l.b16 %v1678
  %v2571 = vunpack.c.l.b16 %v1679
  %v2572 = vunpack.c.l.b16 %v1680
  %v2573 = vunpack.c.l.b16 %v1681
  %v2574 = vunpack.c.l.b16 %v1682
  %v2575 = vunpack.c.l.b16 %v1683
  %v2576 = vunpack.c.l.b16 %v1684
  %v2577 = vunpack.c.l.b16 %v1685
  %v2578 = vunpack.c.l.b16 %v1686
  %v2579 = vunpack.c.l.b16 %v1687
  %v2580 = vunpack.c.l.b16 %v1688
  %v2581 = vunpack.c.l.b16 %v1689
  %v2582 = vunpack.c.l.b16 %v1690
  %v2583 = vunpack.c.l.b16 %v1691
  %v2584 = vunpack.c.l.b16 %v1692
  %v2585 = vunpack.c.l.b16 %v1693
  %v2586 = vunpack.c.l.b16 %v1694
  %v2587 = vunpack.c.l.b16 %v1695
  %v2588 = vunpack.c.l.b16 %v1696
  %v2589 = vunpack.c.l.b16 %v1697
  %v2590 = vunpack.c.l.b16 %v1698
  %v2591 = vunpack.c.l.b16 %v1699
  %v2592 = vunpack.c.l.b16 %v1700
  %v2593 = vunpack.c.l.b16 %v1701
  %v2594 = vunpack.c.l.b16 %v1702
  %v2595 = vunpack.c.l.b16 %v1703
  %v2596 = vunpack.c.l.b16 %v1704
  %v2597 = vunpack.c.l.b16 %v1705
  %v2598 = vunpack.c.l.b16 %v1706
  %v2599 = vunpack.c.l.b16 %v1707
  %v2600 = vunpack.c.l.b16 %v1708
  %v2601 = vunpack.c.l.b16 %v1709
  %v2602 = vunpack.c.l.b16 %v1710
  %v2603 = vunpack.c.l.b16 %v1711
  %v2604 = vunpack.c.l.b16 %v1712
  %v2605 = vunpack.c.l.b16 %v1713
  %v2606 = vunpack.c.l.b16 %v1714
  %v2607 = vunpack.c.l.b16 %v1715
  %v2608 = vunpack.c.l.b16 %v1716
  %v2609 = vunpack.c.l.b16 %v1717
  %v2610 = vunpack.c.l.b16 %v1718
  %v2611 = vunpack.c.l.b16 %v1719
  %v2612 = vunpack.c.l.b16 %v1720
  %v2613 = vunpack.c.l.b16 %v1721
  %v2614 = vunpack.c.l.b16 %v1722
  %v2615 = vunpack.c.l.b16 %v1723
  %v2616 = vunpack.c.l.b16 %v1724
  %v2617 = vunpack.c.l.b16 %v1725
  %v2618 = vunpack.c.l.b16 %v1726
  %v2619 = vunpack.c.l.b16 %v1727
  %v2620 = vunpack.c.l.b16 %v1728
  %v2621 = vunpack.c.l.b16 %v1729
  %v2622 = vunpack.c.l.b16 %v1730
  %v2623 = vunpack.c.l.b16 %v1731
  %v2624 = vunpack.c.l.b16 %v1732
  %v2625 = vunpack.c.l.b16 %v1733
  %v2626 = vunpack.c.l.b16 %v1734
  %v2627 = vunpack.c.l.b16 %v1735
  %v2628 = vunpack.c.l.b16 %v1736
  %v2629 = vunpack.c.l.b16 %v1737
  %v2630 = vunpack.c.l.b16 %v1738
  %v2631 = vunpack.c.l.b16 %v1739
  %v2632 = vunpack.c.l.b16 %v1740
  %v2633 = vunpack.c.l.b16 %v1741
  %v2634 = vunpack.c.l.b16 %v1742
  %v2635 = vunpack.c.l.b16 %v1743
  %v2636 = vunpack.c.l.b16 %v1744
  %v2637 = vunpack.c.l.b16 %v1745
  %v2638 = vunpack.c.l.b16 %v1746
  %v2639 = vunpack.c.l.b16 %v1747
  %v2640 = vunpack.c.l.b16 %v1748
  %v2641 = vunpack.c.l.b16 %v1749
  %v2642 = vunpack.c.l.b16 %v1750
  %v2643 = vunpack.c.l.b16 %v1751
  %v2644 = vunpack.c.l.b16 %v1752
  %v2645 = vunpack.c.l.b16 %v1753
  %v2646 = vunpack.c.l.b16 %v1754
  %v2647 = vunpack.c.l.b16 %v1755
  %v2648 = vunpack.c.l.b16 %v1756
  %v2649 = vunpack.c.l.b16 %v1757
  %v2650 = vunpack.c.l.b16 %v1758
  %v2651 = vunpack.c.l.b16 %v1759
  %v2652 = vunpack.c.l.b16 %v1760
  %v2653 = vunpack.c.l.b16 %v1761
  %v2654 = vunpack.c.l.b16 %v1762
  %v2655 = vunpack.c.l.b16 %v1763
  %v2656 = vunpack.c.l.b16 %v1764
  %v2657 = vunpack.c.l.b16 %v1765
  %v2658 = vunpack.c.l.b16 %v1766
  %v2659 = vunpack.c.l.b16 %v1767
  %v2660 = vunpack.c.l.b16 %v1768
  %v2661 = vunpack.c.l.b16 %v1769
  %v2662 = vunpack.c.l.b16 %v1770
  %v2663 = vunpack.c.l.b16 %v1771
  %v2664 = vunpack.c.l.b16 %v1772
  %v2665 = vunpack.c.l.b16 %v1773
  %v2666 = vunpack.c.l.b16 %v1774
  %v2667 = vunpack.c.l.b16 %v1775
  %v2668 = vunpack.c.l.b16 %v1776
  %v2669 = vunpack.c.l.b16 %v1777
  %v2670 = vunpack.c.l.b16 %v1778
  %v2671 = vunpack.c.l.b16 %v1779
  %v2672 = vunpack.c.l.b16 %v1780
  %v2673 = vunpack.c.l.b16 %v1781
  %v2674 = vunpack.c.l.b16 %v1782
  %v2675 = vunpack.c.l.b16 %v1783
  %v2676 = vunpack.c.l.b16 %v1784
  %v2677 = vunpack.c.l.b16 %v1785
  %v2678 = vunpack.c.l.b16 %v1786
  %v2679 = vunpack.c.l.b16 %v1787
  %v2680 = vunpack.c.l.b16 %v1788
  %v2681 = vunpack.c.l.b16 %v1789
  %v2682 = vunpack.c.l.b16 %v1790
  %v2683 = vunpack.c.l.b16 %v1791
  %v2684 = vunpack.c.l.b16 %v1792
  %v2685 = vpack.c.b16 %v2286, %v2285
  %v2686 = vpack.c.b16 %v2288, %v2287
  %v2687 = vpack.c.b16 %v2290, %v2289
  %v2688 = vpack.c.b16 %v2292, %v2291
  %v2689 = vpack.c.b16 %v2294, %v2293
  %v2690 = vpack.c.b16 %v2296, %v2295
  %v2691 = vpack.c.b16 %v2298, %v2297
  %v2692 = vpack.c.b16 %v2300, %v2299
  %v2693 = vpack.c.b16 %v2302, %v2301
  %v2694 = vpack.c.b16 %v2304, %v2303
  %v2695 = vpack.c.b16 %v2306, %v2305
  %v2696 = vpack.c.b16 %v2308, %v2307
  %v2697 = vpack.c.b16 %v2310, %v2309
  %v2698 = vpack.c.b16 %v2312, %v2311
  %v2699 = vpack.c.b16 %v2314, %v2313
  %v2700 = vpack.c.b16 %v2316, %v2315
  %v2701 = vpack.c.b16 %v2318, %v2317
  %v2702 = vpack.c.b16 %v2320, %v2319
  %v2703 = vpack.c.b16 %v2322, %v2321
  %v2704 = vpack.c.b16 %v2324, %v2323
  %v2705 = vpack.c.b16 %v2326, %v2325
  %v2706 = vpack.c.b16 %v2328, %v2327
  %v2707 = vpack.c.b16 %v2330, %v2329
  %v2708 = vpack.c.b16 %v2332, %v2331
  %v2709 = vpack.c.b16 %v2334, %v2333
  %v2710 = vpack.c.b16 %v2336, %v2335
  %v2711 = vpack.c.b16 %v2338, %v2337
  %v2712 = vpack.c.b16 %v2340, %v2339
  %v2713 = vpack.c.b16 %v2342, %v2341
  %v2714 = vpack.c.b16 %v2344, %v2343
  %v2715 = vpack.c.b16 %v2346, %v2345
  %v2716 = vpack.c.b16 %v2348, %v2347
  %v2717 = vpack.c.b16 %v2350, %v2349
  %v2718 = vpack.c.b16 %v2352, %v2351
  %v2719 = vpack.c.b16 %v2354, %v2353
  %v2720 = vpack.c.b16 %v2356, %v2355
  %v2721 = vpack.c.b16 %v2358, %v2357
  %v2722 = vpack.c.b16 %v2360, %v2359
  %v2723 = vpack.c.b16 %v2362, %v2361
  %v2724 = vpack.c.b16 %v2364, %v2363
  %v2725 = vpack.c.b16 %v2366, %v2365
  %v2726 = vpack.c.b16 %v2368, %v2367
  %v2727 = vpack.c.b16 %v2370, %v2369
  %v2728 = vpack.c.b16 %v2372, %v2371
  %v2729 = vpack.c.b16 %v2374, %v2373
  %v2730 = vpack.c.b16 %v2376, %v2375
  %v2731 = vpack.c.b16 %v2378, %v2377
  %v2732 = vpack.c.b16 %v2380, %v2379
  %v2733 = vpack.c.b16 %v2382, %v2381
  %v2734 = vpack.c.b16 %v2384, %v2383
  %v2735 = vpack.c.b16 %v2386, %v2385
  %v2736 = vpack.c.b16 %v2388, %v2387
  %v2737 = vpack.c.b16 %v2390, %v2389
  %v2738 = vpack.c.b16 %v2392, %v2391
  %v2739 = vpack.c.b16 %v2394, %v2393
  %v2740 = vpack.c.b16 %v2396, %v2395
  %v2741 = vpack.c.b16 %v2398, %v2397
  %v2742 = vpack.c.b16 %v2400, %v2399
  %v2743 = vpack.c.b16 %v2402, %v2401
  %v2744 = vpack.c.b16 %v2404, %v2403
  %v2745 = vpack.c.b16 %v2406, %v2405
  %v2746 = vpack.c.b16 %v2408, %v2407
  %v2747 = vpack.c.b16 %v2410, %v2409
  %v2748 = vpack.c.b16 %v2412, %v2411
  %v2749 = vpack.c.b16 %v2414, %v2413
  %v2750 = vpack.c.b16 %v2416, %v2415
  %v2751 = vpack.c.b16 %v2418, %v2417
  %v2752 = vpack.c.b16 %v2420, %v2419
  %v2753 = vpack.c.b16 %v2422, %v2421
  %v2754 = vpack.c.b16 %v2424, %v2423
  %v2755 = vpack.c.b16 %v2426, %v2425
  %v2756 = vpack.c.b16 %v2428, %v2427
  %v2757 = vpack.c.b16 %v2430, %v2429
  %v2758 = vpack.c.b16 %v2432, %v2431
  %v2759 = vpack.c.b16 %v2434, %v2433
  %v2760 = vpack.c.b16 %v2436, %v2435
  %v2761 = vpack.c.b16 %v2438, %v2437
  %v2762 = vpack.c.b16 %v2440, %v2439
  %v2763 = vpack.c.b16 %v2442, %v2441
  %v2764 = vpack.c.b16 %v2444, %v2443
  %v2765 = vpack.c.b16 %v2446, %v2445
  %v2766 = vpack.c.b16 %v2448, %v2447
  %v2767 = vpack.c.b16 %v2450, %v2449
  %v2768 = vpack.c.b16 %v2452, %v2451
  %v2769 = vpack.c.b16 %v2454, %v2453
  %v2770 = vpack.c.b16 %v2456, %v2455
  %v2771 = vpack.c.b16 %v2458, %v2457
  %v2772 = vpack.c.b16 %v2460, %v2459
  %v2773 = vpack.c.b16 %v2462, %v2461
  %v2774 = vpack.c.b16 %v2464, %v2463
  %v2775 = vpack.c.b16 %v2466, %v2465
  %v2776 = vpack.c.b16 %v2468, %v2467
  %v2777 = vpack.c.b16 %v2470, %v2469
  %v2778 = vpack.c.b16 %v2472, %v2471
  %v2779 = vpack.c.b16 %v2474, %v2473
  %v2780 = vpack.c.b16 %v2476, %v2475
  %v2781 = vpack.c.b16 %v2478, %v2477
  %v2782 = vpack.c.b16 %v2480, %v2479
  %v2783 = vpack.c.b16 %v2482, %v2481
  %v2784 = vpack.c.b16 %v2484, %v2483
  %v2785 = vpack.c.b16 %v2486, %v2485
  %v2786 = vpack.c.b16 %v2488, %v2487
  %v2787 = vpack.c.b16 %v2490, %v2489
  %v2788 = vpack.c.b16 %v2492, %v2491
  %v2789 = vpack.c.b16 %v2494, %v2493
  %v2790 = vpack.c.b16 %v2496, %v2495
  %v2791 = vpack.c.b16 %v2498, %v2497
  %v2792 = vpack.c.b16 %v2500, %v2499
  %v2793 = vpack.c.b16 %v2502, %v2501
  %v2794 = vpack.c.b16 %v2504, %v2503
  %v2795 = vpack.c.b16 %v2506, %v2505
  %v2796 = vpack.c.b16 %v2508, %v2507
  %v2797 = vpack.c.b16 %v2510, %v2509
  %v2798 = vpack.c.b16 %v2512, %v2511
  %v2799 = vpack.c.b16 %v2514, %v2513
  %v2800 = vpack.c.b16 %v2516, %v2515
  %v2801 = vpack.c.b16 %v2518, %v2517
  %v2802 = vpack.c.b16 %v2520, %v2519
  %v2803 = vpack.c.b16 %v2522, %v2521
  %v2804 = vpack.c.b16 %v2524, %v2523
  %v2805 = vpack.c.b16 %v2526, %v2525
  %v2806 = vpack.c.b16 %v2528, %v2527
  %v2807 = vpack.c.b16 %v2530, %v2529
  %v2808 = vpack.c.b16 %v2532, %v2531
  %v2809 = vpack.c.b16 %v2534, %v2533
  %v2810 = vpack.c.b16 %v2536, %v2535
  %v2811 = vpack.c.b16 %v2538, %v2537
  %v2812 = vpack.c.b16 %v2540, %v2539
  %v2813 = vpack.c.b16 %v2542, %v2541
  %v2814 = vpack.c.b16 %v2544, %v2543
  %v2815 = vpack.c.b16 %v2546, %v2545
  %v2816 = vpack.c.b16 %v2548, %v2547
  %v2817 = vpack.c.b16 %v2550, %v2549
  %v2818 = vpack.c.b16 %v2552, %v2551
  %v2819 = vpack.c.b16 %v2554, %v2553
  %v2820 = vpack.c.b16 %v2556, %v2555
  %v2821 = vpack.c.b16 %v2558, %v2557
  %v2822 = vpack.c.b16 %v2560, %v2559
  %v2823 = vpack.c.b16 %v2562, %v2561
  %v2824 = vpack.c.b16 %v2564, %v2563
  %v2825 = vpack.c.b16 %v2566, %v2565
  %v2826 = vpack.c.b16 %v2568, %v2567
  %v2827 = vpack.c.b16 %v2570, %v2569
  %v2828 = vpack.c.b16 %v2572, %v2571
  %v2829 = vpack.c.b16 %v2574, %v2573
  %v2830 = vpack.c.b16 %v2576, %v2575
  %v2831 = vpack.c.b16 %v2578, %v2577
  %v2832 = vpack.c.b16 %v2580, %v2579
  %v2833 = vpack.c.b16 %v2582, %v2581
  %v2834 = vpack.c.b16 %v2584, %v2583
  %v2835 = vpack.c.b16 %v2586, %v2585
  %v2836 = vpack.c.b16 %v2588, %v2587
  %v2837 = vpack.c.b16 %v2590, %v2589
  %v2838 = vpack.c.b16 %v2592, %v2591
  %v2839 = vpack.c.b16 %v2594, %v2593
  %v2840 = vpack.c.b16 %v2596, %v2595
  %v2841 = vpack.c.b16 %v2598, %v2597
  %v2842 = vpack.c.b16 %v2600, %v2599
  %v2843 = vpack.c.b16 %v2602, %v2601
  %v2844 = vpack.c.b16 %v2604, %v2603
  %v2845 = vpack.c.b16 %v2606, %v2605
  %v2846 = vpack.c.b16 %v2608, %v2607
  %v2847 = vpack.c.b16 %v2610, %v2609
  %v2848 = vpack.c.b16 %v2612, %v2611
  %v2849 = vpack.c.b16 %v2614, %v2613
  %v2850 = vpack.c.b16 %v2616, %v2615
  %v2851 = vpack.c.b16 %v2618, %v2617
  %v2852 = vpack.c.b16 %v2620, %v2619
  %v2853 = vpack.c.b16 %v2622, %v2621
  %v2854 = vpack.c.b16 %v2624, %v2623
  %v2855 = vpack.c.b16 %v2626, %v2625
  %v2856 = vpack.c.b16 %v2628, %v2627
  %v2857 = vpack.c.b16 %v2630, %v2629
  %v2858 = vpack.c.b16 %v2632, %v2631
  %v2859 = vpack.c.b16 %v2634, %v2633
  %v2860 = vpack.c.b16 %v2636, %v2635
  %v2861 = vpack.c.b16 %v2638, %v2637
  %v2862 = vpack.c.b16 %v2640, %v2639
  %v2863 = vpack.c.b16 %v2642, %v2641
  %v2864 = vpack.c.b16 %v2644, %v2643
  %v2865 = vpack.c.b16 %v2646, %v2645
  %v2866 = vpack.c.b16 %v2648, %v2647
  %v2867 = vpack.c.b16 %v2650, %v2649
  %v2868 = vpack.c.b16 %v2652, %v2651
  %v2869 = vpack.c.b16 %v2654, %v2653
  %v2870 = vpack.c.b16 %v2656, %v2655
  %v2871 = vpack.c.b16 %v2658, %v2657
  %v2872 = vpack.c.b16 %v2660, %v2659
  %v2873 = vpack.c.b16 %v2662, %v2661
  %v2874 = vpack.c.b16 %v2664, %v2663
  %v2875 = vpack.c.b16 %v2666, %v2665
  %v2876 = vpack.c.b16 %v2668, %v2667
  %v2877 = vpack.c.b16 %v2670, %v2669
  %v2878 = vpack.c.b16 %v2672, %v2671
  %v2879 = vpack.c.b16 %v2674, %v2673
  %v2880 = vpack.c.b16 %v2676, %v2675
  %v2881 = vpack.c.b16 %v2678, %v2677
  %v2882 = vpack.c.b16 %v2680, %v2679
  %v2883 = vpack.c.b16 %v2682, %v2681
  %v2884 = vpack.c.b16 %v2684, %v2683
  %3085 = vmatpush.bf16.msra.mxu0 %v2692
  %3086 = vmatpush.bf16.msra.mxu0 %v2691
  %3087 = vmatpush.bf16.msra.mxu0 %v2690
  %3088 = vmatpush.bf16.msra.mxu0 %v2689
  %3089 = vmatpush.bf16.msra.mxu0 %v2688
  %3090 = vmatpush.bf16.msra.mxu0 %v2687
  %3091 = vmatpush.bf16.msra.mxu0 %v2686
  %3092 = vmatpush.bf16.msra.mxu0 %v2685
  %3093 = vmatmul.bf16.gmra.mxu0 %v1835
  %v3094 = vpop.f32.mrf.mxu0
  %v3095 = vadd.f32 %v1795, %v3094
  %v3096 = vpop.f32.mrf.mxu0
  %3097 = vdwg.mxu0
  %3098 = vmatpush.bf16.msra.mxu0 %v2700
  %3099 = vmatpush.bf16.msra.mxu0 %v2699
  %3100 = vmatpush.bf16.msra.mxu0 %v2698
  %3101 = vmatpush.bf16.msra.mxu0 %v2697
  %3102 = vmatpush.bf16.msra.mxu0 %v2696
  %3103 = vmatpush.bf16.msra.mxu0 %v2695
  %3104 = vmatpush.bf16.msra.mxu0 %v2694
  %3105 = vmatpush.bf16.msra.mxu0 %v2693
  %3106 = vmatmul.bf16.gmra.mxu0 %v1836
  %v3107 = vpop.f32.mrf.mxu0
  %v3108 = vadd.f32 %v3095, %v3107
  %v3109 = vpop.f32.mrf.mxu0
  %3110 = vdwg.mxu0
  %3111 = vmatpush.bf16.msra.mxu0 %v2708
  %3112 = vmatpush.bf16.msra.mxu0 %v2707
  %3113 = vmatpush.bf16.msra.mxu0 %v2706
  %3114 = vmatpush.bf16.msra.mxu0 %v2705
  %3115 = vmatpush.bf16.msra.mxu0 %v2704
  %3116 = vmatpush.bf16.msra.mxu0 %v2703
  %3117 = vmatpush.bf16.msra.mxu0 %v2702
  %3118 = vmatpush.bf16.msra.mxu0 %v2701
  %3119 = vmatmul.bf16.gmra.mxu0 %v1837
  %v3120 = vpop.f32.mrf.mxu0
  %v3121 = vadd.f32 %v3108, %v3120
  %v3122 = vpop.f32.mrf.mxu0
  %3123 = vdwg.mxu0
  %3124 = vmatpush.bf16.msra.mxu0 %v2716
  %3125 = vmatpush.bf16.msra.mxu0 %v2715
  %3126 = vmatpush.bf16.msra.mxu0 %v2714
  %3127 = vmatpush.bf16.msra.mxu0 %v2713
  %3128 = vmatpush.bf16.msra.mxu0 %v2712
  %3129 = vmatpush.bf16.msra.mxu0 %v2711
  %3130 = vmatpush.bf16.msra.mxu0 %v2710
  %3131 = vmatpush.bf16.msra.mxu0 %v2709
  %3132 = vmatmul.bf16.gmra.mxu0 %v1838
  %v3133 = vpop.f32.mrf.mxu0
  %v3134 = vadd.f32 %v3121, %v3133
  %v3135 = vpop.f32.mrf.mxu0
  %3136 = vdwg.mxu0
  %3137 = vmatpush.bf16.msra.mxu0 %v2724
  %3138 = vmatpush.bf16.msra.mxu0 %v2723
  %3139 = vmatpush.bf16.msra.mxu0 %v2722
  %3140 = vmatpush.bf16.msra.mxu0 %v2721
  %3141 = vmatpush.bf16.msra.mxu0 %v2720
  %3142 = vmatpush.bf16.msra.mxu0 %v2719
  %3143 = vmatpush.bf16.msra.mxu0 %v2718
  %3144 = vmatpush.bf16.msra.mxu0 %v2717
  %3145 = vmatmul.bf16.gmra.mxu0 %v1839
  %v3146 = vpop.f32.mrf.mxu0
  %v3147 = vadd.f32 %v3134, %v3146
  %v3148 = vpop.f32.mrf.mxu0
  %3149 = vdwg.mxu0
  %3150 = vmatpush.bf16.msra.mxu0 %v2732
  %3151 = vmatpush.bf16.msra.mxu0 %v2731
  %3152 = vmatpush.bf16.msra.mxu0 %v2730
  %3153 = vmatpush.bf16.msra.mxu0 %v2729
  %3154 = vmatpush.bf16.msra.mxu0 %v2728
  %3155 = vmatpush.bf16.msra.mxu0 %v2727
  %3156 = vmatpush.bf16.msra.mxu0 %v2726
  %3157 = vmatpush.bf16.msra.mxu0 %v2725
  %3158 = vmatmul.bf16.gmra.mxu0 %v1840
  %v3159 = vpop.f32.mrf.mxu0
  %v3160 = vadd.f32 %v3147, %v3159
  %v3161 = vpop.f32.mrf.mxu0
  %3162 = vdwg.mxu0
  %3163 = vmatpush.bf16.msra.mxu0 %v2740
  %3164 = vmatpush.bf16.msra.mxu0 %v2739
  %3165 = vmatpush.bf16.msra.mxu0 %v2738
  %3166 = vmatpush.bf16.msra.mxu0 %v2737
  %3167 = vmatpush.bf16.msra.mxu0 %v2736
  %3168 = vmatpush.bf16.msra.mxu0 %v2735
  %3169 = vmatpush.bf16.msra.mxu0 %v2734
  %3170 = vmatpush.bf16.msra.mxu0 %v2733
  %3171 = vmatmul.bf16.gmra.mxu0 %v1841
  %v3172 = vpop.f32.mrf.mxu0
  %v3173 = vadd.f32 %v3160, %v3172
  %v3174 = vpop.f32.mrf.mxu0
  %3175 = vdwg.mxu0
  %3176 = vmatpush.bf16.msra.mxu0 %v2748
  %3177 = vmatpush.bf16.msra.mxu0 %v2747
  %3178 = vmatpush.bf16.msra.mxu0 %v2746
  %3179 = vmatpush.bf16.msra.mxu0 %v2745
  %3180 = vmatpush.bf16.msra.mxu0 %v2744
  %3181 = vmatpush.bf16.msra.mxu0 %v2743
  %3182 = vmatpush.bf16.msra.mxu0 %v2742
  %3183 = vmatpush.bf16.msra.mxu0 %v2741
  %3184 = vmatmul.bf16.gmra.mxu0 %v1842
  %v3185 = vpop.f32.mrf.mxu0
  %v3186 = vadd.f32 %v3173, %v3185
  %v3187 = vpop.f32.mrf.mxu0
  %3188 = vdwg.mxu0
  %3189 = vmatpush.bf16.msra.mxu0 %v2756
  %3190 = vmatpush.bf16.msra.mxu0 %v2755
  %3191 = vmatpush.bf16.msra.mxu0 %v2754
  %3192 = vmatpush.bf16.msra.mxu0 %v2753
  %3193 = vmatpush.bf16.msra.mxu0 %v2752
  %3194 = vmatpush.bf16.msra.mxu0 %v2751
  %3195 = vmatpush.bf16.msra.mxu0 %v2750
  %3196 = vmatpush.bf16.msra.mxu0 %v2749
  %3197 = vmatmul.bf16.gmra.mxu0 %v1843
  %v3198 = vpop.f32.mrf.mxu0
  %v3199 = vadd.f32 %v3186, %v3198
  %v3200 = vpop.f32.mrf.mxu0
  %3201 = vdwg.mxu0
  %3202 = vmatpush.bf16.msra.mxu0 %v2764
  %3203 = vmatpush.bf16.msra.mxu0 %v2763
  %3204 = vmatpush.bf16.msra.mxu0 %v2762
  %3205 = vmatpush.bf16.msra.mxu0 %v2761
  %3206 = vmatpush.bf16.msra.mxu0 %v2760
  %3207 = vmatpush.bf16.msra.mxu0 %v2759
  %3208 = vmatpush.bf16.msra.mxu0 %v2758
  %3209 = vmatpush.bf16.msra.mxu0 %v2757
  %3210 = vmatmul.bf16.gmra.mxu0 %v1844
  %v3211 = vpop.f32.mrf.mxu0
  %v3212 = vadd.f32 %v3199, %v3211
  %v3213 = vpop.f32.mrf.mxu0
  %3214 = vdwg.mxu0
  %3215 = vmatpush.bf16.msra.mxu0 %v2772
  %3216 = vmatpush.bf16.msra.mxu0 %v2771
  %3217 = vmatpush.bf16.msra.mxu0 %v2770
  %3218 = vmatpush.bf16.msra.mxu0 %v2769
  %3219 = vmatpush.bf16.msra.mxu0 %v2768
  %3220 = vmatpush.bf16.msra.mxu0 %v2767
  %3221 = vmatpush.bf16.msra.mxu0 %v2766
  %3222 = vmatpush.bf16.msra.mxu0 %v2765
  %3223 = vmatmul.bf16.gmra.mxu0 %v1845
  %v3224 = vpop.f32.mrf.mxu0
  %v3225 = vadd.f32 %v3212, %v3224
  %v3226 = vpop.f32.mrf.mxu0
  %3227 = vdwg.mxu0
  %3228 = vmatpush.bf16.msra.mxu0 %v2780
  %3229 = vmatpush.bf16.msra.mxu0 %v2779
  %3230 = vmatpush.bf16.msra.mxu0 %v2778
  %3231 = vmatpush.bf16.msra.mxu0 %v2777
  %3232 = vmatpush.bf16.msra.mxu0 %v2776
  %3233 = vmatpush.bf16.msra.mxu0 %v2775
  %3234 = vmatpush.bf16.msra.mxu0 %v2774
  %3235 = vmatpush.bf16.msra.mxu0 %v2773
  %3236 = vmatmul.bf16.gmra.mxu0 %v1846
  %v3237 = vpop.f32.mrf.mxu0
  %v3238 = vadd.f32 %v3225, %v3237
  %v3239 = vpop.f32.mrf.mxu0
  %3240 = vdwg.mxu0
  %3241 = vmatpush.bf16.msra.mxu0 %v2788
  %3242 = vmatpush.bf16.msra.mxu0 %v2787
  %3243 = vmatpush.bf16.msra.mxu0 %v2786
  %3244 = vmatpush.bf16.msra.mxu0 %v2785
  %3245 = vmatpush.bf16.msra.mxu0 %v2784
  %3246 = vmatpush.bf16.msra.mxu0 %v2783
  %3247 = vmatpush.bf16.msra.mxu0 %v2782
  %3248 = vmatpush.bf16.msra.mxu0 %v2781
  %3249 = vmatmul.bf16.gmra.mxu0 %v1847
  %v3250 = vpop.f32.mrf.mxu0
  %v3251 = vadd.f32 %v3238, %v3250
  %v3252 = vpop.f32.mrf.mxu0
  %3253 = vdwg.mxu0
  %3254 = vmatpush.bf16.msra.mxu0 %v2796
  %3255 = vmatpush.bf16.msra.mxu0 %v2795
  %3256 = vmatpush.bf16.msra.mxu0 %v2794
  %3257 = vmatpush.bf16.msra.mxu0 %v2793
  %3258 = vmatpush.bf16.msra.mxu0 %v2792
  %3259 = vmatpush.bf16.msra.mxu0 %v2791
  %3260 = vmatpush.bf16.msra.mxu0 %v2790
  %3261 = vmatpush.bf16.msra.mxu0 %v2789
  %3262 = vmatmul.bf16.gmra.mxu0 %v1848
  %v3263 = vpop.f32.mrf.mxu0
  %v3264 = vadd.f32 %v3251, %v3263
  %v3265 = vpop.f32.mrf.mxu0
  %3266 = vdwg.mxu0
  %3267 = vmatpush.bf16.msra.mxu0 %v2804
  %3268 = vmatpush.bf16.msra.mxu0 %v2803
  %3269 = vmatpush.bf16.msra.mxu0 %v2802
  %3270 = vmatpush.bf16.msra.mxu0 %v2801
  %3271 = vmatpush.bf16.msra.mxu0 %v2800
  %3272 = vmatpush.bf16.msra.mxu0 %v2799
  %3273 = vmatpush.bf16.msra.mxu0 %v2798
  %3274 = vmatpush.bf16.msra.mxu0 %v2797
  %3275 = vmatmul.bf16.gmra.mxu0 %v1849
  %v3276 = vpop.f32.mrf.mxu0
  %v3277 = vadd.f32 %v3264, %v3276
  %v3278 = vpop.f32.mrf.mxu0
  %3279 = vdwg.mxu0
  %3280 = vmatpush.bf16.msra.mxu0 %v2812
  %3281 = vmatpush.bf16.msra.mxu0 %v2811
  %3282 = vmatpush.bf16.msra.mxu0 %v2810
  %3283 = vmatpush.bf16.msra.mxu0 %v2809
  %3284 = vmatpush.bf16.msra.mxu0 %v2808
  %3285 = vmatpush.bf16.msra.mxu0 %v2807
  %3286 = vmatpush.bf16.msra.mxu0 %v2806
  %3287 = vmatpush.bf16.msra.mxu0 %v2805
  %3288 = vmatmul.bf16.gmra.mxu0 %v1850
  %v3289 = vpop.f32.mrf.mxu0
  %v3290 = vadd.f32 %v3277, %v3289
  %v3291 = vpop.f32.mrf.mxu0
  %3292 = vdwg.mxu0
  %3293 = vmatpush.bf16.msra.mxu0 %v2820
  %3294 = vmatpush.bf16.msra.mxu0 %v2819
  %3295 = vmatpush.bf16.msra.mxu0 %v2818
  %3296 = vmatpush.bf16.msra.mxu0 %v2817
  %3297 = vmatpush.bf16.msra.mxu0 %v2816
  %3298 = vmatpush.bf16.msra.mxu0 %v2815
  %3299 = vmatpush.bf16.msra.mxu0 %v2814
  %3300 = vmatpush.bf16.msra.mxu0 %v2813
  %3301 = vmatmul.bf16.gmra.mxu0 %v1851
  %v3302 = vpop.f32.mrf.mxu0
  %v3303 = vadd.f32 %v3290, %v3302
  %v3304 = vpop.f32.mrf.mxu0
  %3305 = vdwg.mxu0
  %3306 = vmatpush.bf16.msra.mxu0 %v2828
  %3307 = vmatpush.bf16.msra.mxu0 %v2827
  %3308 = vmatpush.bf16.msra.mxu0 %v2826
  %3309 = vmatpush.bf16.msra.mxu0 %v2825
  %3310 = vmatpush.bf16.msra.mxu0 %v2824
  %3311 = vmatpush.bf16.msra.mxu0 %v2823
  %3312 = vmatpush.bf16.msra.mxu0 %v2822
  %3313 = vmatpush.bf16.msra.mxu0 %v2821
  %3314 = vmatmul.bf16.gmra.mxu0 %v1852
  %v3315 = vpop.f32.mrf.mxu0
  %v3316 = vadd.f32 %v3303, %v3315
  %v3317 = vpop.f32.mrf.mxu0
  %3318 = vdwg.mxu0
  %3319 = vmatpush.bf16.msra.mxu0 %v2836
  %3320 = vmatpush.bf16.msra.mxu0 %v2835
  %3321 = vmatpush.bf16.msra.mxu0 %v2834
  %3322 = vmatpush.bf16.msra.mxu0 %v2833
  %3323 = vmatpush.bf16.msra.mxu0 %v2832
  %3324 = vmatpush.bf16.msra.mxu0 %v2831
  %3325 = vmatpush.bf16.msra.mxu0 %v2830
  %3326 = vmatpush.bf16.msra.mxu0 %v2829
  %3327 = vmatmul.bf16.gmra.mxu0 %v1853
  %v3328 = vpop.f32.mrf.mxu0
  %v3329 = vadd.f32 %v3316, %v3328
  %v3330 = vpop.f32.mrf.mxu0
  %3331 = vdwg.mxu0
  %3332 = vmatpush.bf16.msra.mxu0 %v2844
  %3333 = vmatpush.bf16.msra.mxu0 %v2843
  %3334 = vmatpush.bf16.msra.mxu0 %v2842
  %3335 = vmatpush.bf16.msra.mxu0 %v2841
  %3336 = vmatpush.bf16.msra.mxu0 %v2840
  %3337 = vmatpush.bf16.msra.mxu0 %v2839
  %3338 = vmatpush.bf16.msra.mxu0 %v2838
  %3339 = vmatpush.bf16.msra.mxu0 %v2837
  %3340 = vmatmul.bf16.gmra.mxu0 %v1854
  %v3341 = vpop.f32.mrf.mxu0
  %v3342 = vadd.f32 %v3329, %v3341
  %v3343 = vpop.f32.mrf.mxu0
  %3344 = vdwg.mxu0
  %3345 = vmatpush.bf16.msra.mxu0 %v2852
  %3346 = vmatpush.bf16.msra.mxu0 %v2851
  %3347 = vmatpush.bf16.msra.mxu0 %v2850
  %3348 = vmatpush.bf16.msra.mxu0 %v2849
  %3349 = vmatpush.bf16.msra.mxu0 %v2848
  %3350 = vmatpush.bf16.msra.mxu0 %v2847
  %3351 = vmatpush.bf16.msra.mxu0 %v2846
  %3352 = vmatpush.bf16.msra.mxu0 %v2845
  %3353 = vmatmul.bf16.gmra.mxu0 %v1855
  %v3354 = vpop.f32.mrf.mxu0
  %v3355 = vadd.f32 %v3342, %v3354
  %v3356 = vpop.f32.mrf.mxu0
  %3357 = vdwg.mxu0
  %3358 = vmatpush.bf16.msra.mxu0 %v2860
  %3359 = vmatpush.bf16.msra.mxu0 %v2859
  %3360 = vmatpush.bf16.msra.mxu0 %v2858
  %3361 = vmatpush.bf16.msra.mxu0 %v2857
  %3362 = vmatpush.bf16.msra.mxu0 %v2856
  %3363 = vmatpush.bf16.msra.mxu0 %v2855
  %3364 = vmatpush.bf16.msra.mxu0 %v2854
  %3365 = vmatpush.bf16.msra.mxu0 %v2853
  %3366 = vmatmul.bf16.gmra.mxu0 %v1856
  %v3367 = vpop.f32.mrf.mxu0
  %v3368 = vadd.f32 %v3355, %v3367
  %v3369 = vpop.f32.mrf.mxu0
  %3370 = vdwg.mxu0
  %3371 = vmatpush.bf16.msra.mxu0 %v2868
  %3372 = vmatpush.bf16.msra.mxu0 %v2867
  %3373 = vmatpush.bf16.msra.mxu0 %v2866
  %3374 = vmatpush.bf16.msra.mxu0 %v2865
  %3375 = vmatpush.bf16.msra.mxu0 %v2864
  %3376 = vmatpush.bf16.msra.mxu0 %v2863
  %3377 = vmatpush.bf16.msra.mxu0 %v2862
  %3378 = vmatpush.bf16.msra.mxu0 %v2861
  %3379 = vmatmul.bf16.gmra.mxu0 %v1857
  %v3380 = vpop.f32.mrf.mxu0
  %v3381 = vadd.f32 %v3368, %v3380
  %v3382 = vpop.f32.mrf.mxu0
  %3383 = vdwg.mxu0
  %3384 = vmatpush.bf16.msra.mxu0 %v2876
  %3385 = vmatpush.bf16.msra.mxu0 %v2875
  %3386 = vmatpush.bf16.msra.mxu0 %v2874
  %3387 = vmatpush.bf16.msra.mxu0 %v2873
  %3388 = vmatpush.bf16.msra.mxu0 %v2872
  %3389 = vmatpush.bf16.msra.mxu0 %v2871
  %3390 = vmatpush.bf16.msra.mxu0 %v2870
  %3391 = vmatpush.bf16.msra.mxu0 %v2869
  %3392 = vmatmul.bf16.gmra.mxu0 %v1858
  %v3393 = vpop.f32.mrf.mxu0
  %v3394 = vadd.f32 %v3381, %v3393
  %v3395 = vpop.f32.mrf.mxu0
  %3396 = vdwg.mxu0
  %3397 = vmatpush.bf16.msra.mxu0 %v2884
  %3398 = vmatpush.bf16.msra.mxu0 %v2883
  %3399 = vmatpush.bf16.msra.mxu0 %v2882
  %3400 = vmatpush.bf16.msra.mxu0 %v2881
  %3401 = vmatpush.bf16.msra.mxu0 %v2880
  %3402 = vmatpush.bf16.msra.mxu0 %v2879
  %3403 = vmatpush.bf16.msra.mxu0 %v2878
  %3404 = vmatpush.bf16.msra.mxu0 %v2877
  %3405 = vmatmul.bf16.gmra.mxu0 %v1859
  %v3406 = vpop.f32.mrf.mxu0
  %v3407 = vadd.f32 %v3394, %v3406
  %v3408 = vpop.f32.mrf.mxu0
  %3409 = vdwg.mxu0
  %v3410 = vmax.f32 %v3407, 0.0
  %v3411 = vpack.c.bf16 %v3410, %v3410
  %v3412 = vld [vmem:[%s7] sm:$0xf]
  %v3413 = vld [vmem:[%s7 + $0x4] sm:$0xf]
  %v3414 = vld [vmem:[%s7 + $0x8] sm:$0xf]
  %v3415 = vld [vmem:[%s7 + $0xc] sm:$0xf]
  %v3416 = vld [vmem:[%s7 + $0x10] sm:$0xf]
  %v3417 = vld [vmem:[%s7 + $0x14] sm:$0xf]
  %v3418 = vld [vmem:[%s7 + $0x18] sm:$0xf]
  %v3419 = vld [vmem:[%s7 + $0x1c] sm:$0xf]
  %v3420 = vld [vmem:[%s7 + $0x20] sm:$0xf]
  %v3421 = vld [vmem:[%s7 + $0x24] sm:$0xf]
  %v3422 = vld [vmem:[%s7 + $0x28] sm:$0xf]
  %v3423 = vld [vmem:[%s7 + $0x2c] sm:$0xf]
  %v3424 = vld [vmem:[%s7 + $0x30] sm:$0xf]
  %v3425 = vld [vmem:[%s7 + $0x34] sm:$0xf]
  %v3426 = vld [vmem:[%s7 + $0x38] sm:$0xf]
  %v3427 = vld [vmem:[%s7 + $0x3c] sm:$0xf]
  %v3428 = vld [vmem:[%s8] sm:$0x1]
  %v3430 = vperm.slane %v3428, 0
  %v3448 = vunpack.c.l.b16 %v3412
  %v3449 = vunpack.c.l.b16 %v3413
  %v3450 = vunpack.c.l.b16 %v3414
  %v3451 = vunpack.c.l.b16 %v3415
  %v3452 = vunpack.c.l.b16 %v3416
  %v3453 = vunpack.c.l.b16 %v3417
  %v3454 = vunpack.c.l.b16 %v3418
  %v3455 = vunpack.c.l.b16 %v3419
  %v3456 = vunpack.c.l.b16 %v3420
  %v3457 = vunpack.c.l.b16 %v3421
  %v3458 = vunpack.c.l.b16 %v3422
  %v3459 = vunpack.c.l.b16 %v3423
  %v3460 = vunpack.c.l.b16 %v3424
  %v3461 = vunpack.c.l.b16 %v3425
  %v3462 = vunpack.c.l.b16 %v3426
  %v3463 = vunpack.c.l.b16 %v3427
  %v3464 = vpack.c.b16 %v3449, %v3448
  %v3465 = vpack.c.b16 %v3451, %v3450
  %v3466 = vpack.c.b16 %v3453, %v3452
  %v3467 = vpack.c.b16 %v3455, %v3454
  %v3468 = vpack.c.b16 %v3457, %v3456
  %v3469 = vpack.c.b16 %v3459, %v3458
  %v3470 = vpack.c.b16 %v3461, %v3460
  %v3471 = vpack.c.b16 %v3463, %v3462
  %3480 = vmatpush.bf16.msra.mxu0 %v3471
  %3481 = vmatpush.bf16.msra.mxu0 %v3470
  %3482 = vmatpush.bf16.msra.mxu0 %v3469
  %3483 = vmatpush.bf16.msra.mxu0 %v3468
  %3484 = vmatpush.bf16.msra.mxu0 %v3467
  %3485 = vmatpush.bf16.msra.mxu0 %v3466
  %3486 = vmatpush.bf16.msra.mxu0 %v3465
  %3487 = vmatpush.bf16.msra.mxu0 %v3464
  %3488 = vmatmul.bf16.gmra.mxu0 %v3411
  %v3489 = vpop.f32.mrf.mxu0
  %v3490 = vadd.f32 %v3430, %v3489
  %v3491 = vpop.f32.mrf.mxu0
  %3492 = vdwg.mxu0
  %3493 = vst [vmem:[%s9] sm:$0xff] %v3490
  // Predicated region
  $region38: #{small_network_forward.1} parent=0 // pred_check
    _
  $region39: #{small_network_forward.1} parent=0 // pred_check_branch
    %3495 = sbr.rel (0) target = $region41
  $region40: #{small_network_forward.1} parent=0 // pred_region
    _
  $region41: #{small_network_forward.1} parent=0 // pred_fallthru
    _
  // Predicated region
  $region42: #{small_network_forward.1} parent=0 // pred_check
    _
  $region43: #{small_network_forward.1} parent=0 // pred_check_branch
    %3497 = sbr.rel (0) target = $region45
  $region44: #{small_network_forward.1} parent=0 // pred_region
    _
  $region45: #{small_network_forward.1} parent=0 // pred_fallthru
    _

</llo_original>
